<compile_context>
chip_gen: v6e
topology: v6e:2x2x1
jax: 0.10.0
libtpu: 0.0.40
codegen_flags: <defaults>
</compile_context>

<pallas_src>
import functools

import numpy as np
import jax
import jax.numpy as jnp
from jax import lax
from jax.experimental import pallas as pl
from jax.experimental.pallas import tpu as pltpu


TN_DEFAULT = 1024   # classifier output tile (lane-dense; review: 512-1024)
TK_DEFAULT = 2048   # classifier reduction tile (review: 1024-2048)


def _round_up(x, m):
    return ((x + m - 1) // m) * m


@functools.lru_cache(maxsize=None)
def _vmem_limit_bytes():
    # Explicit scoped-VMEM limit (the defaults would cap the larger classifier tiles and
    # the fused feature kernel at real VGG sizes).  Leave 25% headroom below physical
    # capacity (128 MiB on v5e/v6e, 64 MiB on v7x).
    try:
        cap = int(pltpu.get_tpu_info().vmem_capacity_bytes)
    except Exception:
        cap = 64 * 1024 * 1024
    return cap * 3 // 4


# ----------------------------------------------------------------------------
# Fused feature-stage kernel (one grid step per batch element):
#   conv1(3x3,pad=1)+ReLU -> maxpool2x2 -> conv2(3x3,pad=1)+ReLU -> maxpool2x2
#   -> AdaptiveAvgPool2d((7,7))
# ----------------------------------------------------------------------------
def features_kernel(p1_ref, w1_ref, b1_ref, w2_ref, b2_ref, pm_ref, o_ref,
                    xp2_ref, im2_ref, *, H, W):
    # p1_ref : (1, H*W, 9*Cin)        bf16  im2col patches for conv1
    # w1_ref : (9*Cin, C1)            bf16  conv1 weight, rows in (ky, kx, cin) order
    # b1_ref : (1, C1)                f32
    # w2_ref : (9*C1, C2)             bf16  conv2 weight, rows in (ky, kx, c1) order
    # b2_ref : (1, C2)                f32
    # pm_ref : (49, (H//4)*(W//4))    f32   exact AdaptiveAvgPool2d((7,7)) matrix
    # o_ref  : (1, 49, C2)            bf16
    # xp2_ref: (H//2+2, W//2+2, C1)   f32   VMEM scratch: zero-padded conv2 input
    # im2_ref: ((H//2)*(W//2), 9*C1)  bf16  VMEM scratch: conv2 im2col
    C1 = w1_ref.shape[1]
    C2 = w2_ref.shape[1]
    H2, W2 = H // 2, W // 2
    H4, W4 = H2 // 2, W2 // 2

    # --- conv1: single im2col matmul (K = 9*Cin) + bias + ReLU ----------------
    a1 = jnp.dot(p1_ref[0], w1_ref[...], preferred_element_type=jnp.float32)
    a1 = jnp.maximum(a1 + b1_ref[...], 0.0).reshape(H, W, C1)

    # --- fused 2x2 maxpool (f32: v5e's VPU has no bf16) -----------------------
    # TODO(synk): an even/odd strided max along W would avoid splitting the sublane dim;
    #             kept the reshape form (proven lowering path, modest win only).
    a1 = jnp.max(a1.reshape(H2, 2, W, C1), axis=1)
    a1 = jnp.max(a1.reshape(H2, W2, 2, C1), axis=2)          # (H2, W2, C1)

    # --- conv2 input: zero-padded, staged in VMEM -----------------------------
    # Zero only the 4 halo edges (interior is fully rewritten every step); the previous
    # full-buffer zero fill was wasted vector-store bandwidth.
    zrow = jnp.zeros((1, W2 + 2, C1), jnp.float32)
    zcol = jnp.zeros((H2 + 2, 1, C1), jnp.float32)
    xp2_ref[0:1, :, :] = zrow
    xp2_ref[H2 + 1:H2 + 2, :, :] = zrow
    xp2_ref[:, 0:1, :] = zcol
    xp2_ref[:, W2 + 1:W2 + 2, :] = zcol
    xp2_ref[1:H2 + 1, 1:W2 + 1, :] = a1

    # --- conv2: in-kernel im2col -> ONE K=9*C1 MXU matmul ---------------------
    # Column order of im2_ref is (ky, kx, c1), matching w2_ref's row order.
    for tap in range(9):
        ky, kx = tap // 3, tap % 3
        slab = xp2_ref[ky:ky + H2, kx:kx + W2, :].reshape(H2 * W2, C1)
        im2_ref[:, tap * C1:(tap + 1) * C1] = slab.astype(im2_ref.dtype)
    a2 = jnp.dot(im2_ref[...], w2_ref[...], preferred_element_type=jnp.float32)
    a2 = jnp.maximum(a2 + b2_ref[...], 0.0).reshape(H2, W2, C2)

    # --- fused 2x2 maxpool -----------------------------------------------------
    a2 = jnp.max(a2.reshape(H4, 2, W2, C2), axis=1)
    a2 = jnp.max(a2.reshape(H4, W4, 2, C2), axis=2)           # (H4, W4, C2)

    # --- AdaptiveAvgPool2d((7,7)) as a single small f32 matmul -----------------
    pooled = jnp.dot(pm_ref[...], a2.reshape(H4 * W4, C2),
                     preferred_element_type=jnp.float32)      # (49, C2)
    o_ref[0] = pooled.astype(o_ref.dtype)


def _adaptive_pool_matrix(hin, win, hout, wout):
    # Exact PyTorch AdaptiveAvgPool2d index arithmetic as a dense averaging matrix (f32;
    # 1/count weights are not exactly representable in bf16, keep this matmul in f32).
    P = np.zeros((hout * wout, hin * win), np.float32)
    for oy in range(hout):
        ys = (oy * hin) // hout
        ye = ((oy + 1) * hin + hout - 1) // hout
        for ox in range(wout):
            xs = (ox * win) // wout
            xe = ((ox + 1) * win + wout - 1) // wout
            cnt = (ye - ys) * (xe - xs)
            for iy in range(ys, ye):
                for ix in range(xs, xe):
                    P[oy * wout + ox, iy * win + ix] = 1.0 / cnt
    return P


def features_forward(x_nhwc, params):
    # x_nhwc: (N, H, W, Cin) f32 -> (N, 49, C2) bf16
    N, H, W, Cin = x_nhwc.shape
    assert H % 4 == 0 and W % 4 == 0, "spatial dims must be divisible by 4"
    C1 = params["w1"].shape[-1]
    w2 = params["w2"]
    if w2.ndim == 4:                         # not pre-flattened via prepare_params()
        w2 = w2.reshape(9 * C1, -1)
    C2 = w2.shape[-1]
    H2, W2, H4, W4 = H // 2, W // 2, H // 4, W // 4

    # conv1 im2col in the wrapper: the network input only has Cin=3 channels, so the 9x
    # channel expansion is cheap and it turns conv1 into one K=9*Cin MXU matmul.
    xp = jnp.pad(x_nhwc, ((0, 0), (1, 1), (1, 1), (0, 0)))
    slabs = [xp[:, ky:ky + H, kx:kx + W, :] for ky in range(3) for kx in range(3)]
    patches1 = jnp.concatenate(slabs, axis=-1).reshape(N, H * W, 9 * Cin)
    patches1 = patches1.astype(jnp.bfloat16)

    w1 = params["w1"].reshape(9 * Cin, C1)            # rows in (ky, kx, cin) order
    b1 = params["b1"].reshape(1, C1)
    b2 = params["b2"].reshape(1, C2)
    P = jnp.asarray(_adaptive_pool_matrix(H4, W4, 7, 7))

    return pl.pallas_call(
        functools.partial(features_kernel, H=H, W=W),
        out_shape=jax.ShapeDtypeStruct((N, 49, C2), jnp.bfloat16),
        grid=(N,),
        in_specs=[
            pl.BlockSpec((1, H * W, 9 * Cin), lambda n: (n, 0, 0)),
            pl.BlockSpec((9 * Cin, C1), lambda n: (0, 0)),
            pl.BlockSpec((1, C1), lambda n: (0, 0)),
            pl.BlockSpec((9 * C1, C2), lambda n: (0, 0)),
            pl.BlockSpec((1, C2), lambda n: (0, 0)),
            pl.BlockSpec((49, H4 * W4), lambda n: (0, 0)),
        ],
        out_specs=pl.BlockSpec((1, 49, C2), lambda n: (n, 0, 0)),
        scratch_shapes=[
            pltpu.VMEM((H2 + 2, W2 + 2, C1), jnp.float32),    # padded conv2 input
            pltpu.VMEM((H2 * W2, 9 * C1), jnp.bfloat16),      # conv2 im2col (bf16)
        ],
        compiler_params=pltpu.CompilerParams(
            dimension_semantics=("parallel",),
            vmem_limit_bytes=_vmem_limit_bytes()),
    )(patches1, w1, b1, w2, b2, P)


# ----------------------------------------------------------------------------
# Tiled Linear (+ optional ReLU): grid = (Dout tiles, Din reduction), f32 VMEM
# accumulator, pl.when init/finalize, reduction axis last & "arbitrary".
# ----------------------------------------------------------------------------
def linear_kernel(x_ref, w_ref, b_ref, o_ref, acc_ref, *, apply_relu):
    k = pl.program_id(1)

    @pl.when(k == 0)
    def _():
        acc_ref[...] = jnp.zeros_like(acc_ref)

    acc_ref[...] += jnp.dot(x_ref[...], w_ref[...],
                            preferred_element_type=jnp.float32)

    @pl.when(k == pl.num_programs(1) - 1)
    def _():
        y = acc_ref[...] + b_ref[...]
        if apply_relu:
            y = jnp.maximum(y, 0.0)
        o_ref[...] = y.astype(o_ref.dtype)


def _linear_tiles(din, dout, tn=TN_DEFAULT, tk=TK_DEFAULT):
    # Clamp the large default tiles down for small layers; tiles stay 128-multiples.
    return min(tn, _round_up(dout, 128)), min(tk, _round_up(din, 128))


def pad_linear_weight(w):
    # Pad a (Din, Dout) weight to tile multiples ONCE (outside jit / the hot path).
    din, dout = w.shape
    tn, tk = _linear_tiles(din, dout)
    dp, npad = _round_up(din, tk), _round_up(dout, tn)
    if (dp, npad) != (din, dout):
        w = jnp.pad(w, ((0, dp - din), (0, npad - dout)))
    return w


def linear(x, w, b, *, relu=False, out_dtype=jnp.float32):
    # x: (B, Din) bf16; w: (Dp, Np) bf16, ideally pre-padded via prepare_params();
    # b: (Dout,) f32 unpadded (tiny, padded here).
    B, Din = x.shape
    Dout = b.shape[0]
    tn, tk = _linear_tiles(w.shape[0], w.shape[1])
    if (w.shape[0] % tk) or (w.shape[1] % tn):
        # Fallback for un-prepared weights; prepare_params() avoids this per-call HBM copy.
        w = jnp.pad(w, ((0, _round_up(w.shape[0], tk) - w.shape[0]),
                        (0, _round_up(w.shape[1], tn) - w.shape[1])))
    Dp, Np = w.shape
    if Din != Dp:
        x = jnp.pad(x, ((0, 0), (0, Dp - Din)))
    bp = b if Dout == Np else jnp.pad(b, (0, Np - Dout))

    out = pl.pallas_call(
        functools.partial(linear_kernel, apply_relu=relu),
        out_shape=jax.ShapeDtypeStruct((B, Np), out_dtype),
        grid=(Np // tn, Dp // tk),                         # reduction axis last
        in_specs=[
            pl.BlockSpec((B, tk), lambda j, k: (0, k)),
            # TODO(synk): pipeline_mode=pl.Buffered(3) here if weight DMA is exposed (v5e).
            pl.BlockSpec((tk, tn), lambda j, k: (k, j)),
            pl.BlockSpec((1, tn), lambda j, k: (0, j)),
        ],
        out_specs=pl.BlockSpec((B, tn), lambda j, k: (0, j)),
        scratch_shapes=[pltpu.VMEM((B, tn), jnp.float32)],
        compiler_params=pltpu.CompilerParams(
            dimension_semantics=("parallel", "arbitrary"),
            vmem_limit_bytes=_vmem_limit_bytes()),
    )(x, w, bp.reshape(1, Np))
    return out if Np == Dout else out[:, :Dout]


# ----------------------------------------------------------------------------
# One-time parameter preparation (outside jit): flatten conv2 weight for the fused
# feature kernel and pre-pad classifier weights to tile multiples so the forward pass
# never pays a full-weight HBM pad copy.
# ----------------------------------------------------------------------------
def prepare_params(params):
    p = dict(params)
    w2 = params["w2"]
    if w2.ndim == 4:
        p["w2"] = w2.reshape(-1, w2.shape[-1])             # (9*C1, C2), (ky,kx,c1) rows
    for name in ("wf1", "wf2", "wf3"):
        p[name] = pad_linear_weight(params[name])
    return p


# ----------------------------------------------------------------------------
# VGG forward
# ----------------------------------------------------------------------------
def vgg_forward(x_nchw, params):
    # NCHW (PyTorch) -> NHWC so channels sit on the TPU lane dim.
    x = jnp.transpose(x_nchw, (0, 2, 3, 1)).astype(jnp.float32)
    feat = features_forward(x, params)                      # (N, 49, C2) bf16
    N, _, C2 = feat.shape

    # Flatten in (h, w, c) order; wf1's rows are stored in that same order, so no
    # transpose / relayout sits between the feature and classifier stages.
    z = feat.reshape(N, 49 * C2)

    # classifier: Linear-ReLU-[Dropout]-Linear-ReLU-[Dropout]-Linear
    # TODO(synk): Dropout is identity (eval mode); training-mode masking not implemented.
    z = linear(z, params["wf1"], params["bf1"], relu=True, out_dtype=jnp.bfloat16)
    z = linear(z, params["wf2"], params["bf2"], relu=True, out_dtype=jnp.bfloat16)
    z = linear(z, params["wf3"], params["bf3"], relu=False, out_dtype=jnp.float32)
    return z


# ----------------------------------------------------------------------------
# Deterministic parameter init (mirrors VGG._initialize_weights).
# Weights are stored in bf16 (halves HBM / DMA traffic); biases stay f32.
# wf1 rows are in the kernel's (h, w, c) flatten order — permute rows when importing
# PyTorch weights (torch flattens (c, h, w)).
# ----------------------------------------------------------------------------
def init_params(key, cin, c1, c2, hidden, num_classes, wdtype=jnp.bfloat16):
    ks = jax.random.split(key, 5)

    def kaiming_conv(k, ci, co):
        fan_out = co * 3 * 3
        std = (2.0 / fan_out) ** 0.5       # kaiming_normal_, mode='fan_out', relu
        return (jax.random.normal(k, (3, 3, ci, co), jnp.float32) * std).astype(wdtype)

    def lin_init(k, di, do):
        return (jax.random.normal(k, (di, do), jnp.float32) * 0.01).astype(wdtype)

    flat_dim = c2 * 7 * 7
    return {
        "w1": kaiming_conv(ks[0], cin, c1), "b1": jnp.zeros((c1,), jnp.float32),
        "w2": kaiming_conv(ks[1], c1, c2), "b2": jnp.zeros((c2,), jnp.float32),
        "wf1": lin_init(ks[2], flat_dim, hidden), "bf1": jnp.zeros((hidden,), jnp.float32),
        "wf2": lin_init(ks[3], hidden, hidden), "bf2": jnp.zeros((hidden,), jnp.float32),
        "wf3": lin_init(ks[4], hidden, num_classes),
        "bf3": jnp.zeros((num_classes,), jnp.float32),
    }


# ----------------------------------------------------------------------------
# Pure-JAX reference (same bf16 cast points as the kernels, f32 accumulation).
# ----------------------------------------------------------------------------
def _ref_forward(x_nchw, params_raw):
    x = jnp.transpose(x_nchw, (0, 2, 3, 1)).astype(jnp.float32)

    def conv3x3(x, w, b):
        y = lax.conv_general_dilated(
            x.astype(jnp.bfloat16), w.astype(jnp.bfloat16),
            window_strides=(1, 1), padding="SAME",
            dimension_numbers=("NHWC", "HWIO", "NHWC"),
            preferred_element_type=jnp.float32)
        return jnp.maximum(y + b, 0.0)

    def pool2(x):
        n, h, w, c = x.shape
        return jnp.max(x.reshape(n, h // 2, 2, w // 2, 2, c), axis=(2, 4))

    a = pool2(conv3x3(x, params_raw["w1"], params_raw["b1"]))
    a = pool2(conv3x3(a, params_raw["w2"], params_raw["b2"]))
    N, H4, W4, C2 = a.shape
    P = jnp.asarray(_adaptive_pool_matrix(H4, W4, 7, 7))
    a = jnp.einsum("pq,nqc->npc", P, a.reshape(N, H4 * W4, C2))
    z = a.reshape(N, 49 * C2).astype(jnp.bfloat16)

    def lin(z, w, b, relu, odt):
        y = jnp.dot(z.astype(jnp.bfloat16), w,
                    preferred_element_type=jnp.float32) + b
        if relu:
            y = jnp.maximum(y, 0.0)
        return y.astype(odt)

    z = lin(z, params_raw["wf1"], params_raw["bf1"], True, jnp.bfloat16)
    z = lin(z, params_raw["wf2"], params_raw["bf2"], True, jnp.bfloat16)
    z = lin(z, params_raw["wf3"], params_raw["bf3"], False, jnp.float32)
    return z


if __name__ == "__main__":
    key = jax.random.PRNGKey(0)
    k_param, k_x = jax.random.split(key)

    # Small, VGG-consistent shapes: batch=2, 3 input channels, 16x16 spatial,
    # feature channels 16 -> 32, classifier hidden 128, 10 classes.
    N, Cin, Hin, Win = 2, 3, 16, 16
    C1, C2, HIDDEN, NUM_CLASSES = 16, 32, 128, 10

    params = init_params(k_param, Cin, C1, C2, HIDDEN, NUM_CLASSES)
    run_params = prepare_params(params)        # pad / flatten once, outside the hot path
    x = jax.random.normal(k_x, (N, Cin, Hin, Win), jnp.float32)   # NCHW, like PyTorch

    fwd = jax.jit(vgg_forward)
    out = jax.block_until_ready(fwd(x, run_params))
    assert out.shape == (N, NUM_CLASSES), out.shape

    ref = jax.block_until_ready(jax.jit(_ref_forward)(x, params))
    np.testing.assert_allclose(np.asarray(out), np.asarray(ref), rtol=5e-2, atol=5e-3)
    print("KERNEL_OK")
</pallas_src>

<mosaic_0001>
module attributes {stable_mosaic.version = 11 : i64} {
  func.func @features_kernel(%arg0: i32, %arg1: memref<1x256x27xbf16, #tpu.memory_space<vmem>>, %arg2: memref<27x16xbf16, #tpu.memory_space<vmem>>, %arg3: memref<1x16xf32, #tpu.memory_space<vmem>>, %arg4: memref<144x32xbf16, #tpu.memory_space<vmem>>, %arg5: memref<1x32xf32, #tpu.memory_space<vmem>>, %arg6: memref<49x16xf32, #tpu.memory_space<vmem>>, %arg7: memref<1x49x32xbf16, #tpu.memory_space<vmem>>, %arg8: memref<10x10x16xf32, #tpu.memory_space<vmem>>, %arg9: memref<64x144xbf16, #tpu.memory_space<vmem>>) attributes {dimension_semantics = [#tpu.dimension_semantics<parallel>], iteration_bounds = array<i64: 2>, scalar_prefetch = 0 : i64, scratch_operands = 2 : i64, tpu.core_type = #tpu.core_type<tc>, window_params = [{transform_indices = @transform_0, window_bounds = array<i64: 1, 256, 27>}, {pipeline_mode = #tpu.pipeline_mode<synchronous>, transform_indices = @transform_1, window_bounds = array<i64: 27, 16>}, {pipeline_mode = #tpu.pipeline_mode<synchronous>, transform_indices = @transform_2, window_bounds = array<i64: 1, 16>}, {pipeline_mode = #tpu.pipeline_mode<synchronous>, transform_indices = @transform_3, window_bounds = array<i64: 144, 32>}, {pipeline_mode = #tpu.pipeline_mode<synchronous>, transform_indices = @transform_4, window_bounds = array<i64: 1, 32>}, {pipeline_mode = #tpu.pipeline_mode<synchronous>, transform_indices = @transform_5, window_bounds = array<i64: 49, 16>}, {transform_indices = @transform_6, window_bounds = array<i64: 1, 49, 32>}]} {
    %c0 = arith.constant 0 : index
    %c0_0 = arith.constant 0 : index
    %c0_1 = arith.constant 0 : index
    %0 = vector.load %arg1[%c0, %c0_0, %c0_1] : memref<1x256x27xbf16, #tpu.memory_space<vmem>>, vector<1x256x27xbf16>
    %1 = vector.shape_cast %0 : vector<1x256x27xbf16> to vector<256x27xbf16>
    %c0_2 = arith.constant 0 : index
    %c0_3 = arith.constant 0 : index
    %2 = vector.load %arg2[%c0_2, %c0_3] : memref<27x16xbf16, #tpu.memory_space<vmem>>, vector<27x16xbf16>
    %cst = arith.constant dense<0.000000e+00> : vector<256x16xf32>
    %3 = tpu.matmul %1, %2, %cst {dimension_numbers = #tpu.dot_dimension_numbers<[1], [0], [0], [1], [0, 0, 1, 1], [], []>} : vector<256x27xbf16>, vector<27x16xbf16>, vector<256x16xf32> -> vector<256x16xf32>
    %c0_4 = arith.constant 0 : index
    %c0_5 = arith.constant 0 : index
    %4 = vector.load %arg3[%c0_4, %c0_5] : memref<1x16xf32, #tpu.memory_space<vmem>>, vector<1x16xf32>
    %5 = vector.broadcast %4 : vector<1x16xf32> to vector<256x16xf32>
    %6 = arith.addf %3, %5 : vector<256x16xf32>
    %cst_6 = arith.constant 0.000000e+00 : f32
    %7 = vector.broadcast %cst_6 : f32 to vector<256x16xf32>
    %8 = arith.maximumf %6, %7 : vector<256x16xf32>
    %9 = vector.shape_cast %8 : vector<256x16xf32> to vector<16x16x16xf32>
    %10 = vector.shape_cast %9 : vector<16x16x16xf32> to vector<8x2x16x16xf32>
    %cst_7 = arith.constant dense<0xFF800000> : vector<8x16x16xf32>
    %11 = vector.multi_reduction <maximumf>, %10, %cst_7 [1] : vector<8x2x16x16xf32> to vector<8x16x16xf32>
    %12 = vector.shape_cast %11 : vector<8x16x16xf32> to vector<8x8x2x16xf32>
    %cst_8 = arith.constant dense<0xFF800000> : vector<8x8x16xf32>
    %13 = vector.multi_reduction <maximumf>, %12, %cst_8 [2] : vector<8x8x2x16xf32> to vector<8x8x16xf32>
    %cst_9 = arith.constant 0.000000e+00 : f32
    %14 = vector.broadcast %cst_9 : f32 to vector<1x10x16xf32>
    %cst_10 = arith.constant 0.000000e+00 : f32
    %15 = vector.broadcast %cst_10 : f32 to vector<10x1x16xf32>
    %c0_11 = arith.constant 0 : index
    %c0_12 = arith.constant 0 : index
    %c0_13 = arith.constant 0 : index
    %16 = vector.load %arg8[%c0_11, %c0_12, %c0_13] : memref<10x10x16xf32, #tpu.memory_space<vmem>>, vector<1x10x16xf32>
    tpu.vector_store %arg8[%c0_11, %c0_12, %c0_13], %14 {strides = array<i32>} : memref<10x10x16xf32, #tpu.memory_space<vmem>>, vector<1x10x16xf32>,
    %c9 = arith.constant 9 : index
    %c0_14 = arith.constant 0 : index
    %c0_15 = arith.constant 0 : index
    %17 = vector.load %arg8[%c9, %c0_14, %c0_15] : memref<10x10x16xf32, #tpu.memory_space<vmem>>, vector<1x10x16xf32>
    tpu.vector_store %arg8[%c9, %c0_14, %c0_15], %14 {strides = array<i32>} : memref<10x10x16xf32, #tpu.memory_space<vmem>>, vector<1x10x16xf32>,
    %c0_16 = arith.constant 0 : index
    %c0_17 = arith.constant 0 : index
    %c0_18 = arith.constant 0 : index
    %18 = vector.load %arg8[%c0_16, %c0_17, %c0_18] : memref<10x10x16xf32, #tpu.memory_space<vmem>>, vector<10x1x16xf32>
    tpu.vector_store %arg8[%c0_16, %c0_17, %c0_18], %15 {strides = array<i32>} : memref<10x10x16xf32, #tpu.memory_space<vmem>>, vector<10x1x16xf32>,
    %c0_19 = arith.constant 0 : index
    %c9_20 = arith.constant 9 : index
    %c0_21 = arith.constant 0 : index
    %19 = vector.load %arg8[%c0_19, %c9_20, %c0_21] : memref<10x10x16xf32, #tpu.memory_space<vmem>>, vector<10x1x16xf32>
    tpu.vector_store %arg8[%c0_19, %c9_20, %c0_21], %15 {strides = array<i32>} : memref<10x10x16xf32, #tpu.memory_space<vmem>>, vector<10x1x16xf32>,
    %c1 = arith.constant 1 : index
    %c1_22 = arith.constant 1 : index
    %c0_23 = arith.constant 0 : index
    %20 = vector.load %arg8[%c1, %c1_22, %c0_23] : memref<10x10x16xf32, #tpu.memory_space<vmem>>, vector<8x8x16xf32>
    tpu.vector_store %arg8[%c1, %c1_22, %c0_23], %13 {strides = array<i32>} : memref<10x10x16xf32, #tpu.memory_space<vmem>>, vector<8x8x16xf32>,
    %c0_24 = arith.constant 0 : index
    %c0_25 = arith.constant 0 : index
    %c0_26 = arith.constant 0 : index
    %21 = vector.load %arg8[%c0_24, %c0_25, %c0_26] : memref<10x10x16xf32, #tpu.memory_space<vmem>>, vector<8x8x16xf32>
    %22 = vector.shape_cast %21 : vector<8x8x16xf32> to vector<64x16xf32>
    %23 = arith.truncf %22 : vector<64x16xf32> to vector<64x16xbf16>
    %c0_27 = arith.constant 0 : index
    %c0_28 = arith.constant 0 : index
    %24 = vector.load %arg9[%c0_27, %c0_28] : memref<64x144xbf16, #tpu.memory_space<vmem>>, vector<64x16xbf16>
    tpu.vector_store %arg9[%c0_27, %c0_28], %23 {strides = array<i32>} : memref<64x144xbf16, #tpu.memory_space<vmem>>, vector<64x16xbf16>,
    %c0_29 = arith.constant 0 : index
    %c1_30 = arith.constant 1 : index
    %c0_31 = arith.constant 0 : index
    %25 = vector.load %arg8[%c0_29, %c1_30, %c0_31] : memref<10x10x16xf32, #tpu.memory_space<vmem>>, vector<8x8x16xf32>
    %26 = vector.shape_cast %25 : vector<8x8x16xf32> to vector<64x16xf32>
    %27 = arith.truncf %26 : vector<64x16xf32> to vector<64x16xbf16>
    %c0_32 = arith.constant 0 : index
    %c16 = arith.constant 16 : index
    %28 = vector.load %arg9[%c0_32, %c16] : memref<64x144xbf16, #tpu.memory_space<vmem>>, vector<64x16xbf16>
    tpu.vector_store %arg9[%c0_32, %c16], %27 {strides = array<i32>} : memref<64x144xbf16, #tpu.memory_space<vmem>>, vector<64x16xbf16>,
    %c0_33 = arith.constant 0 : index
    %c2 = arith.constant 2 : index
    %c0_34 = arith.constant 0 : index
    %29 = vector.load %arg8[%c0_33, %c2, %c0_34] : memref<10x10x16xf32, #tpu.memory_space<vmem>>, vector<8x8x16xf32>
    %30 = vector.shape_cast %29 : vector<8x8x16xf32> to vector<64x16xf32>
    %31 = arith.truncf %30 : vector<64x16xf32> to vector<64x16xbf16>
    %c0_35 = arith.constant 0 : index
    %c32 = arith.constant 32 : index
    %32 = vector.load %arg9[%c0_35, %c32] : memref<64x144xbf16, #tpu.memory_space<vmem>>, vector<64x16xbf16>
    tpu.vector_store %arg9[%c0_35, %c32], %31 {strides = array<i32>} : memref<64x144xbf16, #tpu.memory_space<vmem>>, vector<64x16xbf16>,
    %c1_36 = arith.constant 1 : index
    %c0_37 = arith.constant 0 : index
    %c0_38 = arith.constant 0 : index
    %33 = vector.load %arg8[%c1_36, %c0_37, %c0_38] : memref<10x10x16xf32, #tpu.memory_space<vmem>>, vector<8x8x16xf32>
    %34 = vector.shape_cast %33 : vector<8x8x16xf32> to vector<64x16xf32>
    %35 = arith.truncf %34 : vector<64x16xf32> to vector<64x16xbf16>
    %c0_39 = arith.constant 0 : index
    %c48 = arith.constant 48 : index
    %36 = vector.load %arg9[%c0_39, %c48] : memref<64x144xbf16, #tpu.memory_space<vmem>>, vector<64x16xbf16>
    tpu.vector_store %arg9[%c0_39, %c48], %35 {strides = array<i32>} : memref<64x144xbf16, #tpu.memory_space<vmem>>, vector<64x16xbf16>,
    %c1_40 = arith.constant 1 : index
    %c1_41 = arith.constant 1 : index
    %c0_42 = arith.constant 0 : index
    %37 = vector.load %arg8[%c1_40, %c1_41, %c0_42] : memref<10x10x16xf32, #tpu.memory_space<vmem>>, vector<8x8x16xf32>
    %38 = vector.shape_cast %37 : vector<8x8x16xf32> to vector<64x16xf32>
    %39 = arith.truncf %38 : vector<64x16xf32> to vector<64x16xbf16>
    %c0_43 = arith.constant 0 : index
    %c64 = arith.constant 64 : index
    %40 = vector.load %arg9[%c0_43, %c64] : memref<64x144xbf16, #tpu.memory_space<vmem>>, vector<64x16xbf16>
    tpu.vector_store %arg9[%c0_43, %c64], %39 {strides = array<i32>} : memref<64x144xbf16, #tpu.memory_space<vmem>>, vector<64x16xbf16>,
    %c1_44 = arith.constant 1 : index
    %c2_45 = arith.constant 2 : index
    %c0_46 = arith.constant 0 : index
    %41 = vector.load %arg8[%c1_44, %c2_45, %c0_46] : memref<10x10x16xf32, #tpu.memory_space<vmem>>, vector<8x8x16xf32>
    %42 = vector.shape_cast %41 : vector<8x8x16xf32> to vector<64x16xf32>
    %43 = arith.truncf %42 : vector<64x16xf32> to vector<64x16xbf16>
    %c0_47 = arith.constant 0 : index
    %c80 = arith.constant 80 : index
    %44 = vector.load %arg9[%c0_47, %c80] : memref<64x144xbf16, #tpu.memory_space<vmem>>, vector<64x16xbf16>
    tpu.vector_store %arg9[%c0_47, %c80], %43 {strides = array<i32>} : memref<64x144xbf16, #tpu.memory_space<vmem>>, vector<64x16xbf16>,
    %c2_48 = arith.constant 2 : index
    %c0_49 = arith.constant 0 : index
    %c0_50 = arith.constant 0 : index
    %45 = vector.load %arg8[%c2_48, %c0_49, %c0_50] : memref<10x10x16xf32, #tpu.memory_space<vmem>>, vector<8x8x16xf32>
    %46 = vector.shape_cast %45 : vector<8x8x16xf32> to vector<64x16xf32>
    %47 = arith.truncf %46 : vector<64x16xf32> to vector<64x16xbf16>
    %c0_51 = arith.constant 0 : index
    %c96 = arith.constant 96 : index
    %48 = vector.load %arg9[%c0_51, %c96] : memref<64x144xbf16, #tpu.memory_space<vmem>>, vector<64x16xbf16>
    tpu.vector_store %arg9[%c0_51, %c96], %47 {strides = array<i32>} : memref<64x144xbf16, #tpu.memory_space<vmem>>, vector<64x16xbf16>,
    %c2_52 = arith.constant 2 : index
    %c1_53 = arith.constant 1 : index
    %c0_54 = arith.constant 0 : index
    %49 = vector.load %arg8[%c2_52, %c1_53, %c0_54] : memref<10x10x16xf32, #tpu.memory_space<vmem>>, vector<8x8x16xf32>
    %50 = vector.shape_cast %49 : vector<8x8x16xf32> to vector<64x16xf32>
    %51 = arith.truncf %50 : vector<64x16xf32> to vector<64x16xbf16>
    %c0_55 = arith.constant 0 : index
    %c112 = arith.constant 112 : index
    %52 = vector.load %arg9[%c0_55, %c112] : memref<64x144xbf16, #tpu.memory_space<vmem>>, vector<64x16xbf16>
    tpu.vector_store %arg9[%c0_55, %c112], %51 {strides = array<i32>} : memref<64x144xbf16, #tpu.memory_space<vmem>>, vector<64x16xbf16>,
    %c2_56 = arith.constant 2 : index
    %c2_57 = arith.constant 2 : index
    %c0_58 = arith.constant 0 : index
    %53 = vector.load %arg8[%c2_56, %c2_57, %c0_58] : memref<10x10x16xf32, #tpu.memory_space<vmem>>, vector<8x8x16xf32>
    %54 = vector.shape_cast %53 : vector<8x8x16xf32> to vector<64x16xf32>
    %55 = arith.truncf %54 : vector<64x16xf32> to vector<64x16xbf16>
    %c0_59 = arith.constant 0 : index
    %c128 = arith.constant 128 : index
    %56 = vector.load %arg9[%c0_59, %c128] : memref<64x144xbf16, #tpu.memory_space<vmem>>, vector<64x16xbf16>
    tpu.vector_store %arg9[%c0_59, %c128], %55 {strides = array<i32>} : memref<64x144xbf16, #tpu.memory_space<vmem>>, vector<64x16xbf16>,
    %c0_60 = arith.constant 0 : index
    %c0_61 = arith.constant 0 : index
    %57 = vector.load %arg9[%c0_60, %c0_61] : memref<64x144xbf16, #tpu.memory_space<vmem>>, vector<64x144xbf16>
    %c0_62 = arith.constant 0 : index
    %c0_63 = arith.constant 0 : index
    %58 = vector.load %arg4[%c0_62, %c0_63] : memref<144x32xbf16, #tpu.memory_space<vmem>>, vector<144x32xbf16>
    %cst_64 = arith.constant dense<0.000000e+00> : vector<64x32xf32>
    %59 = tpu.matmul %57, %58, %cst_64 {dimension_numbers = #tpu.dot_dimension_numbers<[1], [0], [0], [1], [0, 0, 1, 1], [], []>} : vector<64x144xbf16>, vector<144x32xbf16>, vector<64x32xf32> -> vector<64x32xf32>
    %c0_65 = arith.constant 0 : index
    %c0_66 = arith.constant 0 : index
    %60 = vector.load %arg5[%c0_65, %c0_66] : memref<1x32xf32, #tpu.memory_space<vmem>>, vector<1x32xf32>
    %61 = vector.broadcast %60 : vector<1x32xf32> to vector<64x32xf32>
    %62 = arith.addf %59, %61 : vector<64x32xf32>
    %cst_67 = arith.constant 0.000000e+00 : f32
    %63 = vector.broadcast %cst_67 : f32 to vector<64x32xf32>
    %64 = arith.maximumf %62, %63 : vector<64x32xf32>
    %65 = vector.shape_cast %64 : vector<64x32xf32> to vector<8x8x32xf32>
    %66 = vector.shape_cast %65 : vector<8x8x32xf32> to vector<4x2x8x32xf32>
    %cst_68 = arith.constant dense<0xFF800000> : vector<4x8x32xf32>
    %67 = vector.multi_reduction <maximumf>, %66, %cst_68 [1] : vector<4x2x8x32xf32> to vector<4x8x32xf32>
    %68 = vector.shape_cast %67 : vector<4x8x32xf32> to vector<4x4x2x32xf32>
    %cst_69 = arith.constant dense<0xFF800000> : vector<4x4x32xf32>
    %69 = vector.multi_reduction <maximumf>, %68, %cst_69 [2] : vector<4x4x2x32xf32> to vector<4x4x32xf32>
    %c0_70 = arith.constant 0 : index
    %c0_71 = arith.constant 0 : index
    %70 = vector.load %arg6[%c0_70, %c0_71] : memref<49x16xf32, #tpu.memory_space<vmem>>, vector<49x16xf32>
    %71 = vector.shape_cast %69 : vector<4x4x32xf32> to vector<16x32xf32>
    %cst_72 = arith.constant dense<0.000000e+00> : vector<49x32xf32>
    %72 = tpu.matmul %70, %71, %cst_72 {dimension_numbers = #tpu.dot_dimension_numbers<[1], [0], [0], [1], [0, 0, 1, 1], [], []>} : vector<49x16xf32>, vector<16x32xf32>, vector<49x32xf32> -> vector<49x32xf32>
    %73 = arith.truncf %72 : vector<49x32xf32> to vector<49x32xbf16>
    %c0_73 = arith.constant 0 : index
    %c0_74 = arith.constant 0 : index
    %c0_75 = arith.constant 0 : index
    %74 = vector.load %arg7[%c0_73, %c0_74, %c0_75] : memref<1x49x32xbf16, #tpu.memory_space<vmem>>, vector<1x49x32xbf16>
    %75 = vector.shape_cast %74 : vector<1x49x32xbf16> to vector<49x32xbf16>
    %76 = vector.shape_cast %73 : vector<49x32xbf16> to vector<1x49x32xbf16>
    tpu.vector_store %arg7[%c0_73, %c0_74, %c0_75], %76 {strides = array<i32>} : memref<1x49x32xbf16, #tpu.memory_space<vmem>>, vector<1x49x32xbf16>,
    return
  }
  func.func @transform_0(%arg0: i32) -> (i32, i32, i32) {
    %c0_i32 = arith.constant 0 : i32
    %c0_i32_0 = arith.constant 0 : i32
    %c0_i32_1 = arith.constant 0 : i32
    return %arg0, %c0_i32, %c0_i32_0 : i32, i32, i32
  }
  func.func @transform_1(%arg0: i32) -> (i32, i32) {
    %c0_i32 = arith.constant 0 : i32
    %c0_i32_0 = arith.constant 0 : i32
    %c0_i32_1 = arith.constant 0 : i32
    return %c0_i32, %c0_i32_0 : i32, i32
  }
  func.func @transform_2(%arg0: i32) -> (i32, i32) {
    %c0_i32 = arith.constant 0 : i32
    %c0_i32_0 = arith.constant 0 : i32
    %c0_i32_1 = arith.constant 0 : i32
    return %c0_i32, %c0_i32_0 : i32, i32
  }
  func.func @transform_3(%arg0: i32) -> (i32, i32) {
    %c0_i32 = arith.constant 0 : i32
    %c0_i32_0 = arith.constant 0 : i32
    %c0_i32_1 = arith.constant 0 : i32
    return %c0_i32, %c0_i32_0 : i32, i32
  }
  func.func @transform_4(%arg0: i32) -> (i32, i32) {
    %c0_i32 = arith.constant 0 : i32
    %c0_i32_0 = arith.constant 0 : i32
    %c0_i32_1 = arith.constant 0 : i32
    return %c0_i32, %c0_i32_0 : i32, i32
  }
  func.func @transform_5(%arg0: i32) -> (i32, i32) {
    %c0_i32 = arith.constant 0 : i32
    %c0_i32_0 = arith.constant 0 : i32
    %c0_i32_1 = arith.constant 0 : i32
    return %c0_i32, %c0_i32_0 : i32, i32
  }
  func.func @transform_6(%arg0: i32) -> (i32, i32, i32) {
    %c0_i32 = arith.constant 0 : i32
    %c0_i32_0 = arith.constant 0 : i32
    %c0_i32_1 = arith.constant 0 : i32
    return %arg0, %c0_i32, %c0_i32_0 : i32, i32, i32
  }
}

module attributes {stable_mosaic.version = 11 : i64} {
  func.func @linear_kernel(%arg0: i32, %arg1: i32, %arg2: memref<2x1664xbf16, #tpu.memory_space<vmem>>, %arg3: memref<1664x128xbf16, #tpu.memory_space<vmem>>, %arg4: memref<1x128xf32, #tpu.memory_space<vmem>>, %arg5: memref<2x128xbf16, #tpu.memory_space<vmem>>, %arg6: memref<2x128xf32, #tpu.memory_space<vmem>>) attributes {dimension_semantics = [#tpu.dimension_semantics<parallel>, #tpu.dimension_semantics<arbitrary>], iteration_bounds = array<i64: 1, 1>, scalar_prefetch = 0 : i64, scratch_operands = 1 : i64, tpu.core_type = #tpu.core_type<tc>, window_params = [{transform_indices = @transform_0, window_bounds = array<i64: 2, 1664>}, {transform_indices = @transform_1, window_bounds = array<i64: 1664, 128>}, {transform_indices = @transform_2, window_bounds = array<i64: 1, 128>}, {transform_indices = @transform_3, window_bounds = array<i64: 2, 128>}]} {
    %c0_i32 = arith.constant 0 : i32
    %0 = arith.cmpi eq, %arg1, %c0_i32 : i32
    %1 = arith.extui %0 : i1 to i32
    %c0_i32_0 = arith.constant 0 : i32
    %2 = arith.cmpi ne, %1, %c0_i32_0 : i32
    scf.if %2 {
      %cst_10 = arith.constant 0.000000e+00 : f32
      %12 = vector.broadcast %cst_10 : f32 to vector<2x128xf32>
      %c0_11 = arith.constant 0 : index
      %c0_12 = arith.constant 0 : index
      %13 = vector.load %arg6[%c0_11, %c0_12] : memref<2x128xf32, #tpu.memory_space<vmem>>, vector<2x128xf32>
      tpu.vector_store %arg6[%c0_11, %c0_12], %12 {strides = array<i32>} : memref<2x128xf32, #tpu.memory_space<vmem>>, vector<2x128xf32>,
    } else {
    }
    %c0 = arith.constant 0 : index
    %c0_1 = arith.constant 0 : index
    %3 = vector.load %arg6[%c0, %c0_1] : memref<2x128xf32, #tpu.memory_space<vmem>>, vector<2x128xf32>
    %c0_2 = arith.constant 0 : index
    %c0_3 = arith.constant 0 : index
    %4 = vector.load %arg2[%c0_2, %c0_3] : memref<2x1664xbf16, #tpu.memory_space<vmem>>, vector<2x1664xbf16>
    %c0_4 = arith.constant 0 : index
    %c0_5 = arith.constant 0 : index
    %5 = vector.load %arg3[%c0_4, %c0_5] : memref<1664x128xbf16, #tpu.memory_space<vmem>>, vector<1664x128xbf16>
    %cst = arith.constant dense<0.000000e+00> : vector<2x128xf32>
    %6 = tpu.matmul %4, %5, %cst {dimension_numbers = #tpu.dot_dimension_numbers<[1], [0], [0], [1], [0, 0, 1, 1], [], []>} : vector<2x1664xbf16>, vector<1664x128xbf16>, vector<2x128xf32> -> vector<2x128xf32>
    %7 = arith.addf %3, %6 : vector<2x128xf32>
    %c0_6 = arith.constant 0 : index
    %c0_7 = arith.constant 0 : index
    %8 = vector.load %arg6[%c0_6, %c0_7] : memref<2x128xf32, #tpu.memory_space<vmem>>, vector<2x128xf32>
    tpu.vector_store %arg6[%c0_6, %c0_7], %7 {strides = array<i32>} : memref<2x128xf32, #tpu.memory_space<vmem>>, vector<2x128xf32>,
    %c0_i32_8 = arith.constant 0 : i32
    %9 = arith.cmpi eq, %arg1, %c0_i32_8 : i32
    %10 = arith.extui %9 : i1 to i32
    %c0_i32_9 = arith.constant 0 : i32
    %11 = arith.cmpi ne, %10, %c0_i32_9 : i32
    scf.if %11 {
      %c0_10 = arith.constant 0 : index
      %c0_11 = arith.constant 0 : index
      %12 = vector.load %arg6[%c0_10, %c0_11] : memref<2x128xf32, #tpu.memory_space<vmem>>, vector<2x128xf32>
      %c0_12 = arith.constant 0 : index
      %c0_13 = arith.constant 0 : index
      %13 = vector.load %arg4[%c0_12, %c0_13] : memref<1x128xf32, #tpu.memory_space<vmem>>, vector<1x128xf32>
      %14 = vector.broadcast %13 : vector<1x128xf32> to vector<2x128xf32>
      %15 = arith.addf %12, %14 : vector<2x128xf32>
      %cst_14 = arith.constant 0.000000e+00 : f32
      %16 = vector.broadcast %cst_14 : f32 to vector<2x128xf32>
      %17 = arith.maximumf %15, %16 : vector<2x128xf32>
      %18 = arith.truncf %17 : vector<2x128xf32> to vector<2x128xbf16>
      %c0_15 = arith.constant 0 : index
      %c0_16 = arith.constant 0 : index
      %19 = vector.load %arg5[%c0_15, %c0_16] : memref<2x128xbf16, #tpu.memory_space<vmem>>, vector<2x128xbf16>
      tpu.vector_store %arg5[%c0_15, %c0_16], %18 {strides = array<i32>} : memref<2x128xbf16, #tpu.memory_space<vmem>>, vector<2x128xbf16>,
    } else {
    }
    return
  }
  func.func @transform_0(%arg0: i32, %arg1: i32) -> (i32, i32) {
    %c0_i32 = arith.constant 0 : i32
    %c0_i32_0 = arith.constant 0 : i32
    return %c0_i32, %arg1 : i32, i32
  }
  func.func @transform_1(%arg0: i32, %arg1: i32) -> (i32, i32) {
    %c0_i32 = arith.constant 0 : i32
    return %arg1, %arg0 : i32, i32
  }
  func.func @transform_2(%arg0: i32, %arg1: i32) -> (i32, i32) {
    %c0_i32 = arith.constant 0 : i32
    %c0_i32_0 = arith.constant 0 : i32
    return %c0_i32, %arg0 : i32, i32
  }
  func.func @transform_3(%arg0: i32, %arg1: i32) -> (i32, i32) {
    %c0_i32 = arith.constant 0 : i32
    %c0_i32_0 = arith.constant 0 : i32
    return %c0_i32, %arg0 : i32, i32
  }
}

module attributes {stable_mosaic.version = 11 : i64} {
  func.func @linear_kernel(%arg0: i32, %arg1: i32, %arg2: memref<2x128xbf16, #tpu.memory_space<vmem>>, %arg3: memref<128x128xbf16, #tpu.memory_space<vmem>>, %arg4: memref<1x128xf32, #tpu.memory_space<vmem>>, %arg5: memref<2x128xbf16, #tpu.memory_space<vmem>>, %arg6: memref<2x128xf32, #tpu.memory_space<vmem>>) attributes {dimension_semantics = [#tpu.dimension_semantics<parallel>, #tpu.dimension_semantics<arbitrary>], iteration_bounds = array<i64: 1, 1>, scalar_prefetch = 0 : i64, scratch_operands = 1 : i64, tpu.core_type = #tpu.core_type<tc>, window_params = [{transform_indices = @transform_0, window_bounds = array<i64: 2, 128>}, {transform_indices = @transform_1, window_bounds = array<i64: 128, 128>}, {transform_indices = @transform_2, window_bounds = array<i64: 1, 128>}, {transform_indices = @transform_3, window_bounds = array<i64: 2, 128>}]} {
    %c0_i32 = arith.constant 0 : i32
    %0 = arith.cmpi eq, %arg1, %c0_i32 : i32
    %1 = arith.extui %0 : i1 to i32
    %c0_i32_0 = arith.constant 0 : i32
    %2 = arith.cmpi ne, %1, %c0_i32_0 : i32
    scf.if %2 {
      %cst_10 = arith.constant 0.000000e+00 : f32
      %12 = vector.broadcast %cst_10 : f32 to vector<2x128xf32>
      %c0_11 = arith.constant 0 : index
      %c0_12 = arith.constant 0 : index
      %13 = vector.load %arg6[%c0_11, %c0_12] : memref<2x128xf32, #tpu.memory_space<vmem>>, vector<2x128xf32>
      tpu.vector_store %arg6[%c0_11, %c0_12], %12 {strides = array<i32>} : memref<2x128xf32, #tpu.memory_space<vmem>>, vector<2x128xf32>,
    } else {
    }
    %c0 = arith.constant 0 : index
    %c0_1 = arith.constant 0 : index
    %3 = vector.load %arg6[%c0, %c0_1] : memref<2x128xf32, #tpu.memory_space<vmem>>, vector<2x128xf32>
    %c0_2 = arith.constant 0 : index
    %c0_3 = arith.constant 0 : index
    %4 = vector.load %arg2[%c0_2, %c0_3] : memref<2x128xbf16, #tpu.memory_space<vmem>>, vector<2x128xbf16>
    %c0_4 = arith.constant 0 : index
    %c0_5 = arith.constant 0 : index
    %5 = vector.load %arg3[%c0_4, %c0_5] : memref<128x128xbf16, #tpu.memory_space<vmem>>, vector<128x128xbf16>
    %cst = arith.constant dense<0.000000e+00> : vector<2x128xf32>
    %6 = tpu.matmul %4, %5, %cst {dimension_numbers = #tpu.dot_dimension_numbers<[1], [0], [0], [1], [0, 0, 1, 1], [], []>} : vector<2x128xbf16>, vector<128x128xbf16>, vector<2x128xf32> -> vector<2x128xf32>
    %7 = arith.addf %3, %6 : vector<2x128xf32>
    %c0_6 = arith.constant 0 : index
    %c0_7 = arith.constant 0 : index
    %8 = vector.load %arg6[%c0_6, %c0_7] : memref<2x128xf32, #tpu.memory_space<vmem>>, vector<2x128xf32>
    tpu.vector_store %arg6[%c0_6, %c0_7], %7 {strides = array<i32>} : memref<2x128xf32, #tpu.memory_space<vmem>>, vector<2x128xf32>,
    %c0_i32_8 = arith.constant 0 : i32
    %9 = arith.cmpi eq, %arg1, %c0_i32_8 : i32
    %10 = arith.extui %9 : i1 to i32
    %c0_i32_9 = arith.constant 0 : i32
    %11 = arith.cmpi ne, %10, %c0_i32_9 : i32
    scf.if %11 {
      %c0_10 = arith.constant 0 : index
      %c0_11 = arith.constant 0 : index
      %12 = vector.load %arg6[%c0_10, %c0_11] : memref<2x128xf32, #tpu.memory_space<vmem>>, vector<2x128xf32>
      %c0_12 = arith.constant 0 : index
      %c0_13 = arith.constant 0 : index
      %13 = vector.load %arg4[%c0_12, %c0_13] : memref<1x128xf32, #tpu.memory_space<vmem>>, vector<1x128xf32>
      %14 = vector.broadcast %13 : vector<1x128xf32> to vector<2x128xf32>
      %15 = arith.addf %12, %14 : vector<2x128xf32>
      %cst_14 = arith.constant 0.000000e+00 : f32
      %16 = vector.broadcast %cst_14 : f32 to vector<2x128xf32>
      %17 = arith.maximumf %15, %16 : vector<2x128xf32>
      %18 = arith.truncf %17 : vector<2x128xf32> to vector<2x128xbf16>
      %c0_15 = arith.constant 0 : index
      %c0_16 = arith.constant 0 : index
      %19 = vector.load %arg5[%c0_15, %c0_16] : memref<2x128xbf16, #tpu.memory_space<vmem>>, vector<2x128xbf16>
      tpu.vector_store %arg5[%c0_15, %c0_16], %18 {strides = array<i32>} : memref<2x128xbf16, #tpu.memory_space<vmem>>, vector<2x128xbf16>,
    } else {
    }
    return
  }
  func.func @transform_0(%arg0: i32, %arg1: i32) -> (i32, i32) {
    %c0_i32 = arith.constant 0 : i32
    %c0_i32_0 = arith.constant 0 : i32
    return %c0_i32, %arg1 : i32, i32
  }
  func.func @transform_1(%arg0: i32, %arg1: i32) -> (i32, i32) {
    %c0_i32 = arith.constant 0 : i32
    return %arg1, %arg0 : i32, i32
  }
  func.func @transform_2(%arg0: i32, %arg1: i32) -> (i32, i32) {
    %c0_i32 = arith.constant 0 : i32
    %c0_i32_0 = arith.constant 0 : i32
    return %c0_i32, %arg0 : i32, i32
  }
  func.func @transform_3(%arg0: i32, %arg1: i32) -> (i32, i32) {
    %c0_i32 = arith.constant 0 : i32
    %c0_i32_0 = arith.constant 0 : i32
    return %c0_i32, %arg0 : i32, i32
  }
}

module attributes {stable_mosaic.version = 11 : i64} {
  func.func @linear_kernel(%arg0: i32, %arg1: i32, %arg2: memref<2x128xbf16, #tpu.memory_space<vmem>>, %arg3: memref<128x128xbf16, #tpu.memory_space<vmem>>, %arg4: memref<1x128xf32, #tpu.memory_space<vmem>>, %arg5: memref<2x128xf32, #tpu.memory_space<vmem>>, %arg6: memref<2x128xf32, #tpu.memory_space<vmem>>) attributes {dimension_semantics = [#tpu.dimension_semantics<parallel>, #tpu.dimension_semantics<arbitrary>], iteration_bounds = array<i64: 1, 1>, scalar_prefetch = 0 : i64, scratch_operands = 1 : i64, tpu.core_type = #tpu.core_type<tc>, window_params = [{transform_indices = @transform_0, window_bounds = array<i64: 2, 128>}, {transform_indices = @transform_1, window_bounds = array<i64: 128, 128>}, {transform_indices = @transform_2, window_bounds = array<i64: 1, 128>}, {transform_indices = @transform_3, window_bounds = array<i64: 2, 128>}]} {
    %c0_i32 = arith.constant 0 : i32
    %0 = arith.cmpi eq, %arg1, %c0_i32 : i32
    %1 = arith.extui %0 : i1 to i32
    %c0_i32_0 = arith.constant 0 : i32
    %2 = arith.cmpi ne, %1, %c0_i32_0 : i32
    scf.if %2 {
      %cst_10 = arith.constant 0.000000e+00 : f32
      %12 = vector.broadcast %cst_10 : f32 to vector<2x128xf32>
      %c0_11 = arith.constant 0 : index
      %c0_12 = arith.constant 0 : index
      %13 = vector.load %arg6[%c0_11, %c0_12] : memref<2x128xf32, #tpu.memory_space<vmem>>, vector<2x128xf32>
      tpu.vector_store %arg6[%c0_11, %c0_12], %12 {strides = array<i32>} : memref<2x128xf32, #tpu.memory_space<vmem>>, vector<2x128xf32>,
    } else {
    }
    %c0 = arith.constant 0 : index
    %c0_1 = arith.constant 0 : index
    %3 = vector.load %arg6[%c0, %c0_1] : memref<2x128xf32, #tpu.memory_space<vmem>>, vector<2x128xf32>
    %c0_2 = arith.constant 0 : index
    %c0_3 = arith.constant 0 : index
    %4 = vector.load %arg2[%c0_2, %c0_3] : memref<2x128xbf16, #tpu.memory_space<vmem>>, vector<2x128xbf16>
    %c0_4 = arith.constant 0 : index
    %c0_5 = arith.constant 0 : index
    %5 = vector.load %arg3[%c0_4, %c0_5] : memref<128x128xbf16, #tpu.memory_space<vmem>>, vector<128x128xbf16>
    %cst = arith.constant dense<0.000000e+00> : vector<2x128xf32>
    %6 = tpu.matmul %4, %5, %cst {dimension_numbers = #tpu.dot_dimension_numbers<[1], [0], [0], [1], [0, 0, 1, 1], [], []>} : vector<2x128xbf16>, vector<128x128xbf16>, vector<2x128xf32> -> vector<2x128xf32>
    %7 = arith.addf %3, %6 : vector<2x128xf32>
    %c0_6 = arith.constant 0 : index
    %c0_7 = arith.constant 0 : index
    %8 = vector.load %arg6[%c0_6, %c0_7] : memref<2x128xf32, #tpu.memory_space<vmem>>, vector<2x128xf32>
    tpu.vector_store %arg6[%c0_6, %c0_7], %7 {strides = array<i32>} : memref<2x128xf32, #tpu.memory_space<vmem>>, vector<2x128xf32>,
    %c0_i32_8 = arith.constant 0 : i32
    %9 = arith.cmpi eq, %arg1, %c0_i32_8 : i32
    %10 = arith.extui %9 : i1 to i32
    %c0_i32_9 = arith.constant 0 : i32
    %11 = arith.cmpi ne, %10, %c0_i32_9 : i32
    scf.if %11 {
      %c0_10 = arith.constant 0 : index
      %c0_11 = arith.constant 0 : index
      %12 = vector.load %arg6[%c0_10, %c0_11] : memref<2x128xf32, #tpu.memory_space<vmem>>, vector<2x128xf32>
      %c0_12 = arith.constant 0 : index
      %c0_13 = arith.constant 0 : index
      %13 = vector.load %arg4[%c0_12, %c0_13] : memref<1x128xf32, #tpu.memory_space<vmem>>, vector<1x128xf32>
      %14 = vector.broadcast %13 : vector<1x128xf32> to vector<2x128xf32>
      %15 = arith.addf %12, %14 : vector<2x128xf32>
      %c0_14 = arith.constant 0 : index
      %c0_15 = arith.constant 0 : index
      %16 = vector.load %arg5[%c0_14, %c0_15] : memref<2x128xf32, #tpu.memory_space<vmem>>, vector<2x128xf32>
      tpu.vector_store %arg5[%c0_14, %c0_15], %15 {strides = array<i32>} : memref<2x128xf32, #tpu.memory_space<vmem>>, vector<2x128xf32>,
    } else {
    }
    return
  }
  func.func @transform_0(%arg0: i32, %arg1: i32) -> (i32, i32) {
    %c0_i32 = arith.constant 0 : i32
    %c0_i32_0 = arith.constant 0 : i32
    return %c0_i32, %arg1 : i32, i32
  }
  func.func @transform_1(%arg0: i32, %arg1: i32) -> (i32, i32) {
    %c0_i32 = arith.constant 0 : i32
    return %arg1, %arg0 : i32, i32
  }
  func.func @transform_2(%arg0: i32, %arg1: i32) -> (i32, i32) {
    %c0_i32 = arith.constant 0 : i32
    %c0_i32_0 = arith.constant 0 : i32
    return %c0_i32, %arg0 : i32, i32
  }
  func.func @transform_3(%arg0: i32, %arg1: i32) -> (i32, i32) {
    %c0_i32 = arith.constant 0 : i32
    %c0_i32_0 = arith.constant 0 : i32
    return %c0_i32, %arg0 : i32, i32
  }
}

</mosaic_0001>

<llo_original>
// kernel: vgg_forward.6
$region0: #{vgg_forward.6}
  #allocation0 [shape = 'u32[]', space=smem, size = 0x4, offset = 0x4, fixed_abs, tag = 'smem constant byte address 0x4 - core index']
  #allocation1 [shape = 'u32[144,128]{1,0:T(1,128)}', space=vmem, size = 0x12000, scoped, tag = 'internal scratch']
  #allocation2 [shape = 'f32[2,128]{1,0:T(2,128)}', space=vmem, size = 0x400, scoped, tag = 'scratch operand']
  %s0 = inlined_call_operand.vmem [shape: bf16[2,128], index: 0, kind: input, shape index: {}]
  %s1 = inlined_call_operand.vmem [shape: bf16[128,128], index: 1, kind: input, shape index: {}]
  %s2 = inlined_call_operand.vmem [shape: f32[1,128], index: 2, kind: input, shape index: {}]
  %s3 = inlined_call_operand.vmem [shape: bf16[2,128], index: 3, kind: output, shape index: {}]
  %s4 = sld [smem:[#allocation0]]
  $region30: #{vgg_forward.6} parent=0
    _
  %s6 = ssub.s32 1, %s4
  %s7 = scalar_select 0, %s6, %s4
  // Predicated region
  $region2: #{vgg_forward.6} parent=0 // pred_check
    _
  $region3: #{vgg_forward.6} parent=0 // pred_check_branch
    %9 = sbr.rel (0) target = $region5
  $region4: #{vgg_forward.6} parent=0 // pred_region
    _
  $region5: #{vgg_forward.6} parent=0 // pred_fallthru
    _
  // Predicated region
  $region6: #{vgg_forward.6} parent=0 // pred_check
    _
  $region7: #{vgg_forward.6} parent=0 // pred_check_branch
    %11 = sbr.rel (0) target = $region9
  $region8: #{vgg_forward.6} parent=0 // pred_region
    _
  $region9: #{vgg_forward.6} parent=0 // pred_fallthru
    _
  // Predicated region
  $region10: #{vgg_forward.6} parent=0 // pred_check
    _
  $region11: #{vgg_forward.6} parent=0 // pred_check_branch
    %13 = sbr.rel (0) target = $region13
  $region12: #{vgg_forward.6} parent=0 // pred_region
    _
  $region13: #{vgg_forward.6} parent=0 // pred_fallthru
    _
  %p15 = scmp.eq.s32.totalorder 0, 0
  // Predicated region
  $region14: #{vgg_forward.6} parent=0 // pred_check
    %p16 = pneg %p15
  $region15: #{vgg_forward.6} parent=0 // pred_check_branch
    %18 = sbr.rel (%p16) target = $region17
  $region16: #{vgg_forward.6} parent=0 // pred_region
    %19 = vst [vmem:[#allocation2] sm:$0x3] 0.0
  $region17: #{vgg_forward.6} parent=0 // pred_fallthru
    _
  %v20 = vld [vmem:[#allocation2] sm:$0x3]
  %v21 = vld [vmem:[%s0] sm:$0x1]
  %v22 = vld [vmem:[%s1] sm:$0xf]
  %v23 = vld [vmem:[%s1 + $0x4] sm:$0xf]
  %v24 = vld [vmem:[%s1 + $0x8] sm:$0xf]
  %v25 = vld [vmem:[%s1 + $0xc] sm:$0xf]
  %v26 = vld [vmem:[%s1 + $0x10] sm:$0xf]
  %v27 = vld [vmem:[%s1 + $0x14] sm:$0xf]
  %v28 = vld [vmem:[%s1 + $0x18] sm:$0xf]
  %v29 = vld [vmem:[%s1 + $0x1c] sm:$0xf]
  %v30 = vld [vmem:[%s1 + $0x20] sm:$0xf]
  %v31 = vld [vmem:[%s1 + $0x24] sm:$0xf]
  %v32 = vld [vmem:[%s1 + $0x28] sm:$0xf]
  %v33 = vld [vmem:[%s1 + $0x2c] sm:$0xf]
  %v34 = vld [vmem:[%s1 + $0x30] sm:$0xf]
  %v35 = vld [vmem:[%s1 + $0x34] sm:$0xf]
  %v36 = vld [vmem:[%s1 + $0x38] sm:$0xf]
  %v37 = vld [vmem:[%s1 + $0x3c] sm:$0xf]
  %v54 = vunpack.c.l.b16 %v22
  %v55 = vunpack.c.l.b16 %v23
  %v56 = vunpack.c.l.b16 %v24
  %v57 = vunpack.c.l.b16 %v25
  %v58 = vunpack.c.l.b16 %v26
  %v59 = vunpack.c.l.b16 %v27
  %v60 = vunpack.c.l.b16 %v28
  %v61 = vunpack.c.l.b16 %v29
  %v62 = vunpack.c.l.b16 %v30
  %v63 = vunpack.c.l.b16 %v31
  %v64 = vunpack.c.l.b16 %v32
  %v65 = vunpack.c.l.b16 %v33
  %v66 = vunpack.c.l.b16 %v34
  %v67 = vunpack.c.l.b16 %v35
  %v68 = vunpack.c.l.b16 %v36
  %v69 = vunpack.c.l.b16 %v37
  %v70 = vpack.c.b16 %v55, %v54
  %v71 = vpack.c.b16 %v57, %v56
  %v72 = vpack.c.b16 %v59, %v58
  %v73 = vpack.c.b16 %v61, %v60
  %v74 = vpack.c.b16 %v63, %v62
  %v75 = vpack.c.b16 %v65, %v64
  %v76 = vpack.c.b16 %v67, %v66
  %v77 = vpack.c.b16 %v69, %v68
  %86 = vmatprep.subr.bf16.mxu0 0
  %87 = vmatpush1.bf16.msra.mxu0 %v77
  %88 = vmatprep.subr.bf16.mxu0 0
  %89 = vmatpush1.bf16.msra.mxu0 %v76
  %90 = vmatprep.subr.bf16.mxu0 0
  %91 = vmatpush1.bf16.msra.mxu0 %v75
  %92 = vmatprep.subr.bf16.mxu0 0
  %93 = vmatpush1.bf16.msra.mxu0 %v74
  %94 = vmatprep.subr.bf16.mxu0 0
  %95 = vmatpush1.bf16.msra.mxu0 %v73
  %96 = vmatprep.subr.bf16.mxu0 0
  %97 = vmatpush1.bf16.msra.mxu0 %v72
  %98 = vmatprep.subr.bf16.mxu0 0
  %99 = vmatpush1.bf16.msra.mxu0 %v71
  %100 = vmatprep.subr.bf16.mxu0 0
  %101 = vmatpush1.bf16.msra.mxu0 %v70
  %102 = vmatprep.subr.bf16.mxu0 0
  %103 = vmatpush2.bf16.msra.mxu0 0
  %104 = vmatprep.subr.bf16.mxu0 0
  %105 = vmatpush2.bf16.msra.mxu0 0
  %106 = vmatprep.subr.bf16.mxu0 0
  %107 = vmatpush2.bf16.msra.mxu0 0
  %108 = vmatprep.subr.bf16.mxu0 0
  %109 = vmatpush2.bf16.msra.mxu0 0
  %110 = vmatprep.subr.bf16.mxu0 0
  %111 = vmatpush2.bf16.msra.mxu0 0
  %112 = vmatprep.subr.bf16.mxu0 0
  %113 = vmatpush2.bf16.msra.mxu0 0
  %114 = vmatprep.subr.bf16.mxu0 0
  %115 = vmatpush2.bf16.msra.mxu0 0
  %116 = vmatprep.subr.bf16.mxu0 0
  %117 = vmatpush2.bf16.msra.mxu0 0
  %118 = vmatprep.mubr.bf16.mxu0 0
  %119 = vmatmul.mubr.bf16.gmra.mxu0 %v21
  %v120 = vpop.f32.mrf.mxu0
  %v121 = vadd.f32 0.0, %v120
  %v122 = vpop.f32.mrf.mxu0
  %v123 = vpop.f32.mrf.mxu0
  %v124 = vpop.f32.mrf.mxu0
  %125 = vdwg.mxu0
  %v126 = vadd.f32 %v20, %v121
  %127 = vst [vmem:[#allocation2] sm:$0x3] %v126
  // Predicated region
  $region18: #{vgg_forward.6} parent=0 // pred_check
    %p128 = pneg %p15
  $region19: #{vgg_forward.6} parent=0 // pred_check_branch
    %130 = sbr.rel (%p128) target = $region21
  $region20: #{vgg_forward.6} parent=0 // pred_region
    %v131 = vld [vmem:[#allocation2] sm:$0x3]
    %v132 = vld [vmem:[%s2] sm:$0x1]
    %v134 = vlaneseq
    %v135 = vshrl.u32 %v134, 7
    %v136 = vsub.s32 0, %v135
    %v137 = vrot.slane %v132, %v136
    %v139 = vadd.f32 %v131, %v137
    %v140 = vmax.f32 %v139, 0.0
    %v141 = vpack.c.bf16 %v140, %v140
    %142 = vst [vmem:[%s3] sm:$0x1] %v141
  $region21: #{vgg_forward.6} parent=0 // pred_fallthru
    _
  // Predicated region
  $region22: #{vgg_forward.6} parent=0 // pred_check
    _
  $region23: #{vgg_forward.6} parent=0 // pred_check_branch
    %144 = sbr.rel (0) target = $region25
  $region24: #{vgg_forward.6} parent=0 // pred_region
    _
  $region25: #{vgg_forward.6} parent=0 // pred_fallthru
    _
  // Predicated region
  $region26: #{vgg_forward.6} parent=0 // pred_check
    _
  $region27: #{vgg_forward.6} parent=0 // pred_check_branch
    %146 = sbr.rel (0) target = $region29
  $region28: #{vgg_forward.6} parent=0 // pred_region
    _
  $region29: #{vgg_forward.6} parent=0 // pred_fallthru
    _

// kernel: vgg_forward.7
$region0: #{vgg_forward.7}
  #allocation0 [shape = 'u32[]', space=smem, size = 0x4, offset = 0x4, fixed_abs, tag = 'smem constant byte address 0x4 - core index']
  #allocation1 [shape = 'u32[144,128]{1,0:T(1,128)}', space=vmem, size = 0x12000, scoped, tag = 'internal scratch']
  #allocation2 [shape = 'f32[2,128]{1,0:T(2,128)}', space=vmem, size = 0x400, scoped, tag = 'scratch operand']
  %s0 = inlined_call_operand.vmem [shape: bf16[2,128], index: 0, kind: input, shape index: {}]
  %s1 = inlined_call_operand.vmem [shape: bf16[128,128], index: 1, kind: input, shape index: {}]
  %s2 = inlined_call_operand.vmem [shape: f32[1,128], index: 2, kind: input, shape index: {}]
  %s3 = inlined_call_operand.hbm [shape: f32[2,128], index: 3, kind: output, shape index: {}]
  %s4 = sld [smem:[#allocation0]]
  $region30: #{vgg_forward.7} parent=0
    _
  %s6 = ssub.s32 1, %s4
  %s7 = scalar_select 0, %s6, %s4
  $region1: #{vgg_forward.7} parent=0
    #allocation3 [shape = 'u8[1024]{0}', space=vmem, size = 0x400, scoped, tag = 'output window, operand 0, single buffered']
    #allocation4 [shape = 's32[1]{0}', space=sflag, size = 0x4, scoped, tag = 'scoped memory for vgg_forward.7']
    %8 = vsyncpa [#allocation4], 0
    // Predicated region
    $region2: #{vgg_forward.7} parent=1 // pred_check
      _
    $region3: #{vgg_forward.7} parent=1 // pred_check_branch
      %10 = sbr.rel (0) target = $region5
    $region4: #{vgg_forward.7} parent=1 // pred_region
      _
    $region5: #{vgg_forward.7} parent=1 // pred_fallthru
      _
    // Predicated region
    $region6: #{vgg_forward.7} parent=1 // pred_check
      _
    $region7: #{vgg_forward.7} parent=1 // pred_check_branch
      %12 = sbr.rel (0) target = $region9
    $region8: #{vgg_forward.7} parent=1 // pred_region
      _
    $region9: #{vgg_forward.7} parent=1 // pred_fallthru
      _
    // Predicated region
    $region10: #{vgg_forward.7} parent=1 // pred_check
      _
    $region11: #{vgg_forward.7} parent=1 // pred_check_branch
      %14 = sbr.rel (0) target = $region13
    $region12: #{vgg_forward.7} parent=1 // pred_region
      _
    $region13: #{vgg_forward.7} parent=1 // pred_fallthru
      _
    %p16 = scmp.eq.s32.totalorder 0, 0
    // Predicated region
    $region14: #{vgg_forward.7} parent=1 // pred_check
      %p17 = pneg %p16
    $region15: #{vgg_forward.7} parent=1 // pred_check_branch
      %19 = sbr.rel (%p17) target = $region17
    $region16: #{vgg_forward.7} parent=1 // pred_region
      %20 = vst [vmem:[#allocation2] sm:$0x3] 0.0
    $region17: #{vgg_forward.7} parent=1 // pred_fallthru
      _
    %v21 = vld [vmem:[#allocation2] sm:$0x3]
    %v22 = vld [vmem:[%s0] sm:$0x1]
    %v23 = vld [vmem:[%s1] sm:$0xf]
    %v24 = vld [vmem:[%s1 + $0x4] sm:$0xf]
    %v25 = vld [vmem:[%s1 + $0x8] sm:$0xf]
    %v26 = vld [vmem:[%s1 + $0xc] sm:$0xf]
    %v27 = vld [vmem:[%s1 + $0x10] sm:$0xf]
    %v28 = vld [vmem:[%s1 + $0x14] sm:$0xf]
    %v29 = vld [vmem:[%s1 + $0x18] sm:$0xf]
    %v30 = vld [vmem:[%s1 + $0x1c] sm:$0xf]
    %v31 = vld [vmem:[%s1 + $0x20] sm:$0xf]
    %v32 = vld [vmem:[%s1 + $0x24] sm:$0xf]
    %v33 = vld [vmem:[%s1 + $0x28] sm:$0xf]
    %v34 = vld [vmem:[%s1 + $0x2c] sm:$0xf]
    %v35 = vld [vmem:[%s1 + $0x30] sm:$0xf]
    %v36 = vld [vmem:[%s1 + $0x34] sm:$0xf]
    %v37 = vld [vmem:[%s1 + $0x38] sm:$0xf]
    %v38 = vld [vmem:[%s1 + $0x3c] sm:$0xf]
    %v55 = vunpack.c.l.b16 %v23
    %v56 = vunpack.c.l.b16 %v24
    %v57 = vunpack.c.l.b16 %v25
    %v58 = vunpack.c.l.b16 %v26
    %v59 = vunpack.c.l.b16 %v27
    %v60 = vunpack.c.l.b16 %v28
    %v61 = vunpack.c.l.b16 %v29
    %v62 = vunpack.c.l.b16 %v30
    %v63 = vunpack.c.l.b16 %v31
    %v64 = vunpack.c.l.b16 %v32
    %v65 = vunpack.c.l.b16 %v33
    %v66 = vunpack.c.l.b16 %v34
    %v67 = vunpack.c.l.b16 %v35
    %v68 = vunpack.c.l.b16 %v36
    %v69 = vunpack.c.l.b16 %v37
    %v70 = vunpack.c.l.b16 %v38
    %v71 = vpack.c.b16 %v56, %v55
    %v72 = vpack.c.b16 %v58, %v57
    %v73 = vpack.c.b16 %v60, %v59
    %v74 = vpack.c.b16 %v62, %v61
    %v75 = vpack.c.b16 %v64, %v63
    %v76 = vpack.c.b16 %v66, %v65
    %v77 = vpack.c.b16 %v68, %v67
    %v78 = vpack.c.b16 %v70, %v69
    %87 = vmatprep.subr.bf16.mxu0 0
    %88 = vmatpush1.bf16.msra.mxu0 %v78
    %89 = vmatprep.subr.bf16.mxu0 0
    %90 = vmatpush1.bf16.msra.mxu0 %v77
    %91 = vmatprep.subr.bf16.mxu0 0
    %92 = vmatpush1.bf16.msra.mxu0 %v76
    %93 = vmatprep.subr.bf16.mxu0 0
    %94 = vmatpush1.bf16.msra.mxu0 %v75
    %95 = vmatprep.subr.bf16.mxu0 0
    %96 = vmatpush1.bf16.msra.mxu0 %v74
    %97 = vmatprep.subr.bf16.mxu0 0
    %98 = vmatpush1.bf16.msra.mxu0 %v73
    %99 = vmatprep.subr.bf16.mxu0 0
    %100 = vmatpush1.bf16.msra.mxu0 %v72
    %101 = vmatprep.subr.bf16.mxu0 0
    %102 = vmatpush1.bf16.msra.mxu0 %v71
    %103 = vmatprep.subr.bf16.mxu0 0
    %104 = vmatpush2.bf16.msra.mxu0 0
    %105 = vmatprep.subr.bf16.mxu0 0
    %106 = vmatpush2.bf16.msra.mxu0 0
    %107 = vmatprep.subr.bf16.mxu0 0
    %108 = vmatpush2.bf16.msra.mxu0 0
    %109 = vmatprep.subr.bf16.mxu0 0
    %110 = vmatpush2.bf16.msra.mxu0 0
    %111 = vmatprep.subr.bf16.mxu0 0
    %112 = vmatpush2.bf16.msra.mxu0 0
    %113 = vmatprep.subr.bf16.mxu0 0
    %114 = vmatpush2.bf16.msra.mxu0 0
    %115 = vmatprep.subr.bf16.mxu0 0
    %116 = vmatpush2.bf16.msra.mxu0 0
    %117 = vmatprep.subr.bf16.mxu0 0
    %118 = vmatpush2.bf16.msra.mxu0 0
    %119 = vmatprep.mubr.bf16.mxu0 0
    %120 = vmatmul.mubr.bf16.gmra.mxu0 %v22
    %v121 = vpop.f32.mrf.mxu0
    %v122 = vadd.f32 0.0, %v121
    %v123 = vpop.f32.mrf.mxu0
    %v124 = vpop.f32.mrf.mxu0
    %v125 = vpop.f32.mrf.mxu0
    %126 = vdwg.mxu0
    %v127 = vadd.f32 %v21, %v122
    %128 = vst [vmem:[#allocation2] sm:$0x3] %v127
    // Predicated region
    $region18: #{vgg_forward.7} parent=1 // pred_check
      %p129 = pneg %p16
    $region19: #{vgg_forward.7} parent=1 // pred_check_branch
      %131 = sbr.rel (%p129) target = $region21
    $region20: #{vgg_forward.7} parent=1 // pred_region
      %v132 = vld [vmem:[#allocation2] sm:$0x3]
      %v133 = vld [vmem:[%s2] sm:$0x1]
      %v135 = vlaneseq
      %v136 = vshrl.u32 %v135, 7
      %v137 = vsub.s32 0, %v136
      %v138 = vrot.slane %v133, %v137
      %v140 = vadd.f32 %v132, %v138
      %141 = vst [vmem:[#allocation3] sm:$0x3] %v140
    $region21: #{vgg_forward.7} parent=1 // pred_fallthru
      _
    // Predicated region
    $region22: #{vgg_forward.7} parent=1 // pred_check
      _
    $region23: #{vgg_forward.7} parent=1 // pred_check_branch
      %143 = sbr.rel (0) target = $region25
    $region24: #{vgg_forward.7} parent=1 // pred_region
      %s145 = ssub.s32 32, 32
      %146 = vsyncadd [#allocation4], %s145
      %s148 = sshll.u32 [#allocation3], 4
      %s149 = int_to_ptr.vmem [resolvable:$true] %s148
      %151 = dma.vmem_to_hbm [thread:$0]  %s149, 32, %s3, [#allocation4]
    $region25: #{vgg_forward.7} parent=1 // pred_fallthru
      _
    // Predicated region
    $region26: #{vgg_forward.7} parent=1 // pred_check
      _
    $region27: #{vgg_forward.7} parent=1 // pred_check_branch
      %153 = sbr.rel (0) target = $region29
    $region28: #{vgg_forward.7} parent=1 // pred_region
      %154 = dma.done [#allocation4], 32
    $region29: #{vgg_forward.7} parent=1 // pred_fallthru
      _
    %155 = vsyncpa [#allocation4], 1

// kernel: vgg_forward.5
$region0: #{vgg_forward.5}
  #allocation0 [shape = 'u32[]', space=smem, size = 0x4, offset = 0x4, fixed_abs, tag = 'smem constant byte address 0x4 - core index']
  #allocation1 [shape = 'u32[144,128]{1,0:T(1,128)}', space=vmem, size = 0x12000, scoped, tag = 'internal scratch']
  #allocation2 [shape = 'f32[2,128]{1,0:T(2,128)}', space=vmem, size = 0x400, scoped, tag = 'scratch operand']
  %s0 = inlined_call_operand.vmem [shape: bf16[2,1664], index: 0, kind: input, shape index: {}]
  %s1 = inlined_call_operand.vmem [shape: bf16[1664,128], index: 1, kind: input, shape index: {}]
  %s2 = inlined_call_operand.vmem [shape: f32[1,128], index: 2, kind: input, shape index: {}]
  %s3 = inlined_call_operand.vmem [shape: bf16[2,128], index: 3, kind: output, shape index: {}]
  %s4 = sld [smem:[#allocation0]]
  $region30: #{vgg_forward.5} parent=0
    _
  %s6 = ssub.s32 1, %s4
  %s7 = scalar_select 0, %s6, %s4
  // Predicated region
  $region2: #{vgg_forward.5} parent=0 // pred_check
    _
  $region3: #{vgg_forward.5} parent=0 // pred_check_branch
    %9 = sbr.rel (0) target = $region5
  $region4: #{vgg_forward.5} parent=0 // pred_region
    _
  $region5: #{vgg_forward.5} parent=0 // pred_fallthru
    _
  // Predicated region
  $region6: #{vgg_forward.5} parent=0 // pred_check
    _
  $region7: #{vgg_forward.5} parent=0 // pred_check_branch
    %11 = sbr.rel (0) target = $region9
  $region8: #{vgg_forward.5} parent=0 // pred_region
    _
  $region9: #{vgg_forward.5} parent=0 // pred_fallthru
    _
  // Predicated region
  $region10: #{vgg_forward.5} parent=0 // pred_check
    _
  $region11: #{vgg_forward.5} parent=0 // pred_check_branch
    %13 = sbr.rel (0) target = $region13
  $region12: #{vgg_forward.5} parent=0 // pred_region
    _
  $region13: #{vgg_forward.5} parent=0 // pred_fallthru
    _
  %p15 = scmp.eq.s32.totalorder 0, 0
  // Predicated region
  $region14: #{vgg_forward.5} parent=0 // pred_check
    %p16 = pneg %p15
  $region15: #{vgg_forward.5} parent=0 // pred_check_branch
    %18 = sbr.rel (%p16) target = $region17
  $region16: #{vgg_forward.5} parent=0 // pred_region
    %19 = vst [vmem:[#allocation2] sm:$0x3] 0.0
  $region17: #{vgg_forward.5} parent=0 // pred_fallthru
    _
  %v20 = vld [vmem:[#allocation2] sm:$0x3]
  %v21 = vld [vmem:[%s0] sm:$0xff]
  %v22 = vld [vmem:[%s0 + $0x8] sm:$0x1f]
  %v23 = vld [vmem:[%s1] sm:$0xf]
  %v24 = vld [vmem:[%s1 + $0x4] sm:$0xf]
  %v25 = vld [vmem:[%s1 + $0x8] sm:$0xf]
  %v26 = vld [vmem:[%s1 + $0xc] sm:$0xf]
  %v27 = vld [vmem:[%s1 + $0x10] sm:$0xf]
  %v28 = vld [vmem:[%s1 + $0x14] sm:$0xf]
  %v29 = vld [vmem:[%s1 + $0x18] sm:$0xf]
  %v30 = vld [vmem:[%s1 + $0x1c] sm:$0xf]
  %v31 = vld [vmem:[%s1 + $0x20] sm:$0xf]
  %v32 = vld [vmem:[%s1 + $0x24] sm:$0xf]
  %v33 = vld [vmem:[%s1 + $0x28] sm:$0xf]
  %v34 = vld [vmem:[%s1 + $0x2c] sm:$0xf]
  %v35 = vld [vmem:[%s1 + $0x30] sm:$0xf]
  %v36 = vld [vmem:[%s1 + $0x34] sm:$0xf]
  %v37 = vld [vmem:[%s1 + $0x38] sm:$0xf]
  %v38 = vld [vmem:[%s1 + $0x3c] sm:$0xf]
  %v39 = vld [vmem:[%s1 + $0x40] sm:$0xf]
  %v40 = vld [vmem:[%s1 + $0x44] sm:$0xf]
  %v41 = vld [vmem:[%s1 + $0x48] sm:$0xf]
  %v42 = vld [vmem:[%s1 + $0x4c] sm:$0xf]
  %v43 = vld [vmem:[%s1 + $0x50] sm:$0xf]
  %v44 = vld [vmem:[%s1 + $0x54] sm:$0xf]
  %v45 = vld [vmem:[%s1 + $0x58] sm:$0xf]
  %v46 = vld [vmem:[%s1 + $0x5c] sm:$0xf]
  %v47 = vld [vmem:[%s1 + $0x60] sm:$0xf]
  %v48 = vld [vmem:[%s1 + $0x64] sm:$0xf]
  %v49 = vld [vmem:[%s1 + $0x68] sm:$0xf]
  %v50 = vld [vmem:[%s1 + $0x6c] sm:$0xf]
  %v51 = vld [vmem:[%s1 + $0x70] sm:$0xf]
  %v52 = vld [vmem:[%s1 + $0x74] sm:$0xf]
  %v53 = vld [vmem:[%s1 + $0x78] sm:$0xf]
  %v54 = vld [vmem:[%s1 + $0x7c] sm:$0xf]
  %v55 = vld [vmem:[%s1 + $0x80] sm:$0xf]
  %v56 = vld [vmem:[%s1 + $0x84] sm:$0xf]
  %v57 = vld [vmem:[%s1 + $0x88] sm:$0xf]
  %v58 = vld [vmem:[%s1 + $0x8c] sm:$0xf]
  %v59 = vld [vmem:[%s1 + $0x90] sm:$0xf]
  %v60 = vld [vmem:[%s1 + $0x94] sm:$0xf]
  %v61 = vld [vmem:[%s1 + $0x98] sm:$0xf]
  %v62 = vld [vmem:[%s1 + $0x9c] sm:$0xf]
  %v63 = vld [vmem:[%s1 + $0xa0] sm:$0xf]
  %v64 = vld [vmem:[%s1 + $0xa4] sm:$0xf]
  %v65 = vld [vmem:[%s1 + $0xa8] sm:$0xf]
  %v66 = vld [vmem:[%s1 + $0xac] sm:$0xf]
  %v67 = vld [vmem:[%s1 + $0xb0] sm:$0xf]
  %v68 = vld [vmem:[%s1 + $0xb4] sm:$0xf]
  %v69 = vld [vmem:[%s1 + $0xb8] sm:$0xf]
  %v70 = vld [vmem:[%s1 + $0xbc] sm:$0xf]
  %v71 = vld [vmem:[%s1 + $0xc0] sm:$0xf]
  %v72 = vld [vmem:[%s1 + $0xc4] sm:$0xf]
  %v73 = vld [vmem:[%s1 + $0xc8] sm:$0xf]
  %v74 = vld [vmem:[%s1 + $0xcc] sm:$0xf]
  %v75 = vld [vmem:[%s1 + $0xd0] sm:$0xf]
  %v76 = vld [vmem:[%s1 + $0xd4] sm:$0xf]
  %v77 = vld [vmem:[%s1 + $0xd8] sm:$0xf]
  %v78 = vld [vmem:[%s1 + $0xdc] sm:$0xf]
  %v79 = vld [vmem:[%s1 + $0xe0] sm:$0xf]
  %v80 = vld [vmem:[%s1 + $0xe4] sm:$0xf]
  %v81 = vld [vmem:[%s1 + $0xe8] sm:$0xf]
  %v82 = vld [vmem:[%s1 + $0xec] sm:$0xf]
  %v83 = vld [vmem:[%s1 + $0xf0] sm:$0xf]
  %v84 = vld [vmem:[%s1 + $0xf4] sm:$0xf]
  %v85 = vld [vmem:[%s1 + $0xf8] sm:$0xf]
  %v86 = vld [vmem:[%s1 + $0xfc] sm:$0xf]
  %v87 = vld [vmem:[%s1 + $0x100] sm:$0xf]
  %v88 = vld [vmem:[%s1 + $0x104] sm:$0xf]
  %v89 = vld [vmem:[%s1 + $0x108] sm:$0xf]
  %v90 = vld [vmem:[%s1 + $0x10c] sm:$0xf]
  %v91 = vld [vmem:[%s1 + $0x110] sm:$0xf]
  %v92 = vld [vmem:[%s1 + $0x114] sm:$0xf]
  %v93 = vld [vmem:[%s1 + $0x118] sm:$0xf]
  %v94 = vld [vmem:[%s1 + $0x11c] sm:$0xf]
  %v95 = vld [vmem:[%s1 + $0x120] sm:$0xf]
  %v96 = vld [vmem:[%s1 + $0x124] sm:$0xf]
  %v97 = vld [vmem:[%s1 + $0x128] sm:$0xf]
  %v98 = vld [vmem:[%s1 + $0x12c] sm:$0xf]
  %v99 = vld [vmem:[%s1 + $0x130] sm:$0xf]
  %v100 = vld [vmem:[%s1 + $0x134] sm:$0xf]
  %v101 = vld [vmem:[%s1 + $0x138] sm:$0xf]
  %v102 = vld [vmem:[%s1 + $0x13c] sm:$0xf]
  %v103 = vld [vmem:[%s1 + $0x140] sm:$0xf]
  %v104 = vld [vmem:[%s1 + $0x144] sm:$0xf]
  %v105 = vld [vmem:[%s1 + $0x148] sm:$0xf]
  %v106 = vld [vmem:[%s1 + $0x14c] sm:$0xf]
  %v107 = vld [vmem:[%s1 + $0x150] sm:$0xf]
  %v108 = vld [vmem:[%s1 + $0x154] sm:$0xf]
  %v109 = vld [vmem:[%s1 + $0x158] sm:$0xf]
  %v110 = vld [vmem:[%s1 + $0x15c] sm:$0xf]
  %v111 = vld [vmem:[%s1 + $0x160] sm:$0xf]
  %v112 = vld [vmem:[%s1 + $0x164] sm:$0xf]
  %v113 = vld [vmem:[%s1 + $0x168] sm:$0xf]
  %v114 = vld [vmem:[%s1 + $0x16c] sm:$0xf]
  %v115 = vld [vmem:[%s1 + $0x170] sm:$0xf]
  %v116 = vld [vmem:[%s1 + $0x174] sm:$0xf]
  %v117 = vld [vmem:[%s1 + $0x178] sm:$0xf]
  %v118 = vld [vmem:[%s1 + $0x17c] sm:$0xf]
  %v119 = vld [vmem:[%s1 + $0x180] sm:$0xf]
  %v120 = vld [vmem:[%s1 + $0x184] sm:$0xf]
  %v121 = vld [vmem:[%s1 + $0x188] sm:$0xf]
  %v122 = vld [vmem:[%s1 + $0x18c] sm:$0xf]
  %v123 = vld [vmem:[%s1 + $0x190] sm:$0xf]
  %v124 = vld [vmem:[%s1 + $0x194] sm:$0xf]
  %v125 = vld [vmem:[%s1 + $0x198] sm:$0xf]
  %v126 = vld [vmem:[%s1 + $0x19c] sm:$0xf]
  %v127 = vld [vmem:[%s1 + $0x1a0] sm:$0xf]
  %v128 = vld [vmem:[%s1 + $0x1a4] sm:$0xf]
  %v129 = vld [vmem:[%s1 + $0x1a8] sm:$0xf]
  %v130 = vld [vmem:[%s1 + $0x1ac] sm:$0xf]
  %v131 = vld [vmem:[%s1 + $0x1b0] sm:$0xf]
  %v132 = vld [vmem:[%s1 + $0x1b4] sm:$0xf]
  %v133 = vld [vmem:[%s1 + $0x1b8] sm:$0xf]
  %v134 = vld [vmem:[%s1 + $0x1bc] sm:$0xf]
  %v135 = vld [vmem:[%s1 + $0x1c0] sm:$0xf]
  %v136 = vld [vmem:[%s1 + $0x1c4] sm:$0xf]
  %v137 = vld [vmem:[%s1 + $0x1c8] sm:$0xf]
  %v138 = vld [vmem:[%s1 + $0x1cc] sm:$0xf]
  %v139 = vld [vmem:[%s1 + $0x1d0] sm:$0xf]
  %v140 = vld [vmem:[%s1 + $0x1d4] sm:$0xf]
  %v141 = vld [vmem:[%s1 + $0x1d8] sm:$0xf]
  %v142 = vld [vmem:[%s1 + $0x1dc] sm:$0xf]
  %v143 = vld [vmem:[%s1 + $0x1e0] sm:$0xf]
  %v144 = vld [vmem:[%s1 + $0x1e4] sm:$0xf]
  %v145 = vld [vmem:[%s1 + $0x1e8] sm:$0xf]
  %v146 = vld [vmem:[%s1 + $0x1ec] sm:$0xf]
  %v147 = vld [vmem:[%s1 + $0x1f0] sm:$0xf]
  %v148 = vld [vmem:[%s1 + $0x1f4] sm:$0xf]
  %v149 = vld [vmem:[%s1 + $0x1f8] sm:$0xf]
  %v150 = vld [vmem:[%s1 + $0x1fc] sm:$0xf]
  %v151 = vld [vmem:[%s1 + $0x200] sm:$0xf]
  %v152 = vld [vmem:[%s1 + $0x204] sm:$0xf]
  %v153 = vld [vmem:[%s1 + $0x208] sm:$0xf]
  %v154 = vld [vmem:[%s1 + $0x20c] sm:$0xf]
  %v155 = vld [vmem:[%s1 + $0x210] sm:$0xf]
  %v156 = vld [vmem:[%s1 + $0x214] sm:$0xf]
  %v157 = vld [vmem:[%s1 + $0x218] sm:$0xf]
  %v158 = vld [vmem:[%s1 + $0x21c] sm:$0xf]
  %v159 = vld [vmem:[%s1 + $0x220] sm:$0xf]
  %v160 = vld [vmem:[%s1 + $0x224] sm:$0xf]
  %v161 = vld [vmem:[%s1 + $0x228] sm:$0xf]
  %v162 = vld [vmem:[%s1 + $0x22c] sm:$0xf]
  %v163 = vld [vmem:[%s1 + $0x230] sm:$0xf]
  %v164 = vld [vmem:[%s1 + $0x234] sm:$0xf]
  %v165 = vld [vmem:[%s1 + $0x238] sm:$0xf]
  %v166 = vld [vmem:[%s1 + $0x23c] sm:$0xf]
  %v167 = vld [vmem:[%s1 + $0x240] sm:$0xf]
  %v168 = vld [vmem:[%s1 + $0x244] sm:$0xf]
  %v169 = vld [vmem:[%s1 + $0x248] sm:$0xf]
  %v170 = vld [vmem:[%s1 + $0x24c] sm:$0xf]
  %v171 = vld [vmem:[%s1 + $0x250] sm:$0xf]
  %v172 = vld [vmem:[%s1 + $0x254] sm:$0xf]
  %v173 = vld [vmem:[%s1 + $0x258] sm:$0xf]
  %v174 = vld [vmem:[%s1 + $0x25c] sm:$0xf]
  %v175 = vld [vmem:[%s1 + $0x260] sm:$0xf]
  %v176 = vld [vmem:[%s1 + $0x264] sm:$0xf]
  %v177 = vld [vmem:[%s1 + $0x268] sm:$0xf]
  %v178 = vld [vmem:[%s1 + $0x26c] sm:$0xf]
  %v179 = vld [vmem:[%s1 + $0x270] sm:$0xf]
  %v180 = vld [vmem:[%s1 + $0x274] sm:$0xf]
  %v181 = vld [vmem:[%s1 + $0x278] sm:$0xf]
  %v182 = vld [vmem:[%s1 + $0x27c] sm:$0xf]
  %v183 = vld [vmem:[%s1 + $0x280] sm:$0xf]
  %v184 = vld [vmem:[%s1 + $0x284] sm:$0xf]
  %v185 = vld [vmem:[%s1 + $0x288] sm:$0xf]
  %v186 = vld [vmem:[%s1 + $0x28c] sm:$0xf]
  %v187 = vld [vmem:[%s1 + $0x290] sm:$0xf]
  %v188 = vld [vmem:[%s1 + $0x294] sm:$0xf]
  %v189 = vld [vmem:[%s1 + $0x298] sm:$0xf]
  %v190 = vld [vmem:[%s1 + $0x29c] sm:$0xf]
  %v191 = vld [vmem:[%s1 + $0x2a0] sm:$0xf]
  %v192 = vld [vmem:[%s1 + $0x2a4] sm:$0xf]
  %v193 = vld [vmem:[%s1 + $0x2a8] sm:$0xf]
  %v194 = vld [vmem:[%s1 + $0x2ac] sm:$0xf]
  %v195 = vld [vmem:[%s1 + $0x2b0] sm:$0xf]
  %v196 = vld [vmem:[%s1 + $0x2b4] sm:$0xf]
  %v197 = vld [vmem:[%s1 + $0x2b8] sm:$0xf]
  %v198 = vld [vmem:[%s1 + $0x2bc] sm:$0xf]
  %v199 = vld [vmem:[%s1 + $0x2c0] sm:$0xf]
  %v200 = vld [vmem:[%s1 + $0x2c4] sm:$0xf]
  %v201 = vld [vmem:[%s1 + $0x2c8] sm:$0xf]
  %v202 = vld [vmem:[%s1 + $0x2cc] sm:$0xf]
  %v203 = vld [vmem:[%s1 + $0x2d0] sm:$0xf]
  %v204 = vld [vmem:[%s1 + $0x2d4] sm:$0xf]
  %v205 = vld [vmem:[%s1 + $0x2d8] sm:$0xf]
  %v206 = vld [vmem:[%s1 + $0x2dc] sm:$0xf]
  %v207 = vld [vmem:[%s1 + $0x2e0] sm:$0xf]
  %v208 = vld [vmem:[%s1 + $0x2e4] sm:$0xf]
  %v209 = vld [vmem:[%s1 + $0x2e8] sm:$0xf]
  %v210 = vld [vmem:[%s1 + $0x2ec] sm:$0xf]
  %v211 = vld [vmem:[%s1 + $0x2f0] sm:$0xf]
  %v212 = vld [vmem:[%s1 + $0x2f4] sm:$0xf]
  %v213 = vld [vmem:[%s1 + $0x2f8] sm:$0xf]
  %v214 = vld [vmem:[%s1 + $0x2fc] sm:$0xf]
  %v215 = vld [vmem:[%s1 + $0x300] sm:$0xf]
  %v216 = vld [vmem:[%s1 + $0x304] sm:$0xf]
  %v217 = vld [vmem:[%s1 + $0x308] sm:$0xf]
  %v218 = vld [vmem:[%s1 + $0x30c] sm:$0xf]
  %v219 = vld [vmem:[%s1 + $0x310] sm:$0xf]
  %v220 = vld [vmem:[%s1 + $0x314] sm:$0xf]
  %v221 = vld [vmem:[%s1 + $0x318] sm:$0xf]
  %v222 = vld [vmem:[%s1 + $0x31c] sm:$0xf]
  %v223 = vld [vmem:[%s1 + $0x320] sm:$0xf]
  %v224 = vld [vmem:[%s1 + $0x324] sm:$0xf]
  %v225 = vld [vmem:[%s1 + $0x328] sm:$0xf]
  %v226 = vld [vmem:[%s1 + $0x32c] sm:$0xf]
  %v227 = vld [vmem:[%s1 + $0x330] sm:$0xf]
  %v228 = vld [vmem:[%s1 + $0x334] sm:$0xf]
  %v229 = vld [vmem:[%s1 + $0x338] sm:$0xf]
  %v230 = vld [vmem:[%s1 + $0x33c] sm:$0xf]
  %v233 = vcombine.high %v21, %v21
  %v235 = vunpack.c.l.s4 1966171168
  %v236 = vunpack.c.0.s8 %v235
  %v237 = vlaneseq
  %v238 = vshrl.u32 %v237, 7
  %v239 = vsub.s32 %v236, %v238
  %v240 = vrot.slane %v21, %v239
  %v242 = vunpack.c.l.s4 1966171168
  %v243 = vunpack.c.0.s8 %v242
  %v244 = vlaneseq
  %v245 = vshrl.u32 %v244, 7
  %v246 = vsub.s32 %v243, %v245
  %v247 = vrot.slane %v233, %v246
  %v248 = vcombine.high %v240, %v240
  %v249 = vcombine.high %v247, %v247
  %v251 = vunpack.c.l.s4 1966171168
  %v252 = vunpack.c.0.s8 %v251
  %v253 = vlaneseq
  %v254 = vshrl.u32 %v253, 7
  %v255 = vsub.s32 %v252, %v254
  %v256 = vrot.slane %v240, %v255
  %v258 = vunpack.c.l.s4 1966171168
  %v259 = vunpack.c.0.s8 %v258
  %v260 = vlaneseq
  %v261 = vshrl.u32 %v260, 7
  %v262 = vsub.s32 %v259, %v261
  %v263 = vrot.slane %v247, %v262
  %v265 = vunpack.c.l.s4 1966171168
  %v266 = vunpack.c.0.s8 %v265
  %v267 = vlaneseq
  %v268 = vshrl.u32 %v267, 7
  %v269 = vsub.s32 %v266, %v268
  %v270 = vrot.slane %v248, %v269
  %v272 = vunpack.c.l.s4 1966171168
  %v273 = vunpack.c.0.s8 %v272
  %v274 = vlaneseq
  %v275 = vshrl.u32 %v274, 7
  %v276 = vsub.s32 %v273, %v275
  %v277 = vrot.slane %v249, %v276
  %v278 = vcombine.high %v256, %v256
  %v279 = vcombine.high %v263, %v263
  %v280 = vcombine.high %v270, %v270
  %v281 = vcombine.high %v277, %v277
  %v282 = vcombine.high %v22, %v22
  %v284 = vunpack.c.l.s4 1966171168
  %v285 = vunpack.c.0.s8 %v284
  %v286 = vlaneseq
  %v287 = vshrl.u32 %v286, 7
  %v288 = vsub.s32 %v285, %v287
  %v289 = vrot.slane %v22, %v288
  %v291 = vunpack.c.l.s4 1966171168
  %v292 = vunpack.c.0.s8 %v291
  %v293 = vlaneseq
  %v294 = vshrl.u32 %v293, 7
  %v295 = vsub.s32 %v292, %v294
  %v296 = vrot.slane %v282, %v295
  %v297 = vcombine.high %v289, %v289
  %v299 = vunpack.c.l.s4 1966171168
  %v300 = vunpack.c.0.s8 %v299
  %v301 = vlaneseq
  %v302 = vshrl.u32 %v301, 7
  %v303 = vsub.s32 %v300, %v302
  %v304 = vrot.slane %v289, %v303
  %v306 = vunpack.c.l.s4 1966171168
  %v307 = vunpack.c.0.s8 %v306
  %v308 = vlaneseq
  %v309 = vshrl.u32 %v308, 7
  %v310 = vsub.s32 %v307, %v309
  %v311 = vrot.slane %v296, %v310
  %v313 = vunpack.c.l.s4 1966171168
  %v314 = vunpack.c.0.s8 %v313
  %v315 = vlaneseq
  %v316 = vshrl.u32 %v315, 7
  %v317 = vsub.s32 %v314, %v316
  %v318 = vrot.slane %v297, %v317
  %v319 = vcombine.high %v304, %v304
  %v320 = vcombine.high %v318, %v318
  %v542 = vunpack.c.l.b16 %v23
  %v543 = vunpack.c.l.b16 %v24
  %v544 = vunpack.c.l.b16 %v25
  %v545 = vunpack.c.l.b16 %v26
  %v546 = vunpack.c.l.b16 %v27
  %v547 = vunpack.c.l.b16 %v28
  %v548 = vunpack.c.l.b16 %v29
  %v549 = vunpack.c.l.b16 %v30
  %v550 = vunpack.c.l.b16 %v31
  %v551 = vunpack.c.l.b16 %v32
  %v552 = vunpack.c.l.b16 %v33
  %v553 = vunpack.c.l.b16 %v34
  %v554 = vunpack.c.l.b16 %v35
  %v555 = vunpack.c.l.b16 %v36
  %v556 = vunpack.c.l.b16 %v37
  %v557 = vunpack.c.l.b16 %v38
  %v558 = vunpack.c.l.b16 %v39
  %v559 = vunpack.c.l.b16 %v40
  %v560 = vunpack.c.l.b16 %v41
  %v561 = vunpack.c.l.b16 %v42
  %v562 = vunpack.c.l.b16 %v43
  %v563 = vunpack.c.l.b16 %v44
  %v564 = vunpack.c.l.b16 %v45
  %v565 = vunpack.c.l.b16 %v46
  %v566 = vunpack.c.l.b16 %v47
  %v567 = vunpack.c.l.b16 %v48
  %v568 = vunpack.c.l.b16 %v49
  %v569 = vunpack.c.l.b16 %v50
  %v570 = vunpack.c.l.b16 %v51
  %v571 = vunpack.c.l.b16 %v52
  %v572 = vunpack.c.l.b16 %v53
  %v573 = vunpack.c.l.b16 %v54
  %v574 = vunpack.c.l.b16 %v55
  %v575 = vunpack.c.l.b16 %v56
  %v576 = vunpack.c.l.b16 %v57
  %v577 = vunpack.c.l.b16 %v58
  %v578 = vunpack.c.l.b16 %v59
  %v579 = vunpack.c.l.b16 %v60
  %v580 = vunpack.c.l.b16 %v61
  %v581 = vunpack.c.l.b16 %v62
  %v582 = vunpack.c.l.b16 %v63
  %v583 = vunpack.c.l.b16 %v64
  %v584 = vunpack.c.l.b16 %v65
  %v585 = vunpack.c.l.b16 %v66
  %v586 = vunpack.c.l.b16 %v67
  %v587 = vunpack.c.l.b16 %v68
  %v588 = vunpack.c.l.b16 %v69
  %v589 = vunpack.c.l.b16 %v70
  %v590 = vunpack.c.l.b16 %v71
  %v591 = vunpack.c.l.b16 %v72
  %v592 = vunpack.c.l.b16 %v73
  %v593 = vunpack.c.l.b16 %v74
  %v594 = vunpack.c.l.b16 %v75
  %v595 = vunpack.c.l.b16 %v76
  %v596 = vunpack.c.l.b16 %v77
  %v597 = vunpack.c.l.b16 %v78
  %v598 = vunpack.c.l.b16 %v79
  %v599 = vunpack.c.l.b16 %v80
  %v600 = vunpack.c.l.b16 %v81
  %v601 = vunpack.c.l.b16 %v82
  %v602 = vunpack.c.l.b16 %v83
  %v603 = vunpack.c.l.b16 %v84
  %v604 = vunpack.c.l.b16 %v85
  %v605 = vunpack.c.l.b16 %v86
  %v606 = vunpack.c.l.b16 %v87
  %v607 = vunpack.c.l.b16 %v88
  %v608 = vunpack.c.l.b16 %v89
  %v609 = vunpack.c.l.b16 %v90
  %v610 = vunpack.c.l.b16 %v91
  %v611 = vunpack.c.l.b16 %v92
  %v612 = vunpack.c.l.b16 %v93
  %v613 = vunpack.c.l.b16 %v94
  %v614 = vunpack.c.l.b16 %v95
  %v615 = vunpack.c.l.b16 %v96
  %v616 = vunpack.c.l.b16 %v97
  %v617 = vunpack.c.l.b16 %v98
  %v618 = vunpack.c.l.b16 %v99
  %v619 = vunpack.c.l.b16 %v100
  %v620 = vunpack.c.l.b16 %v101
  %v621 = vunpack.c.l.b16 %v102
  %v622 = vunpack.c.l.b16 %v103
  %v623 = vunpack.c.l.b16 %v104
  %v624 = vunpack.c.l.b16 %v105
  %v625 = vunpack.c.l.b16 %v106
  %v626 = vunpack.c.l.b16 %v107
  %v627 = vunpack.c.l.b16 %v108
  %v628 = vunpack.c.l.b16 %v109
  %v629 = vunpack.c.l.b16 %v110
  %v630 = vunpack.c.l.b16 %v111
  %v631 = vunpack.c.l.b16 %v112
  %v632 = vunpack.c.l.b16 %v113
  %v633 = vunpack.c.l.b16 %v114
  %v634 = vunpack.c.l.b16 %v115
  %v635 = vunpack.c.l.b16 %v116
  %v636 = vunpack.c.l.b16 %v117
  %v637 = vunpack.c.l.b16 %v118
  %v638 = vunpack.c.l.b16 %v119
  %v639 = vunpack.c.l.b16 %v120
  %v640 = vunpack.c.l.b16 %v121
  %v641 = vunpack.c.l.b16 %v122
  %v642 = vunpack.c.l.b16 %v123
  %v643 = vunpack.c.l.b16 %v124
  %v644 = vunpack.c.l.b16 %v125
  %v645 = vunpack.c.l.b16 %v126
  %v646 = vunpack.c.l.b16 %v127
  %v647 = vunpack.c.l.b16 %v128
  %v648 = vunpack.c.l.b16 %v129
  %v649 = vunpack.c.l.b16 %v130
  %v650 = vunpack.c.l.b16 %v131
  %v651 = vunpack.c.l.b16 %v132
  %v652 = vunpack.c.l.b16 %v133
  %v653 = vunpack.c.l.b16 %v134
  %v654 = vunpack.c.l.b16 %v135
  %v655 = vunpack.c.l.b16 %v136
  %v656 = vunpack.c.l.b16 %v137
  %v657 = vunpack.c.l.b16 %v138
  %v658 = vunpack.c.l.b16 %v139
  %v659 = vunpack.c.l.b16 %v140
  %v660 = vunpack.c.l.b16 %v141
  %v661 = vunpack.c.l.b16 %v142
  %v662 = vunpack.c.l.b16 %v143
  %v663 = vunpack.c.l.b16 %v144
  %v664 = vunpack.c.l.b16 %v145
  %v665 = vunpack.c.l.b16 %v146
  %v666 = vunpack.c.l.b16 %v147
  %v667 = vunpack.c.l.b16 %v148
  %v668 = vunpack.c.l.b16 %v149
  %v669 = vunpack.c.l.b16 %v150
  %v670 = vunpack.c.l.b16 %v151
  %v671 = vunpack.c.l.b16 %v152
  %v672 = vunpack.c.l.b16 %v153
  %v673 = vunpack.c.l.b16 %v154
  %v674 = vunpack.c.l.b16 %v155
  %v675 = vunpack.c.l.b16 %v156
  %v676 = vunpack.c.l.b16 %v157
  %v677 = vunpack.c.l.b16 %v158
  %v678 = vunpack.c.l.b16 %v159
  %v679 = vunpack.c.l.b16 %v160
  %v680 = vunpack.c.l.b16 %v161
  %v681 = vunpack.c.l.b16 %v162
  %v682 = vunpack.c.l.b16 %v163
  %v683 = vunpack.c.l.b16 %v164
  %v684 = vunpack.c.l.b16 %v165
  %v685 = vunpack.c.l.b16 %v166
  %v686 = vunpack.c.l.b16 %v167
  %v687 = vunpack.c.l.b16 %v168
  %v688 = vunpack.c.l.b16 %v169
  %v689 = vunpack.c.l.b16 %v170
  %v690 = vunpack.c.l.b16 %v171
  %v691 = vunpack.c.l.b16 %v172
  %v692 = vunpack.c.l.b16 %v173
  %v693 = vunpack.c.l.b16 %v174
  %v694 = vunpack.c.l.b16 %v175
  %v695 = vunpack.c.l.b16 %v176
  %v696 = vunpack.c.l.b16 %v177
  %v697 = vunpack.c.l.b16 %v178
  %v698 = vunpack.c.l.b16 %v179
  %v699 = vunpack.c.l.b16 %v180
  %v700 = vunpack.c.l.b16 %v181
  %v701 = vunpack.c.l.b16 %v182
  %v702 = vunpack.c.l.b16 %v183
  %v703 = vunpack.c.l.b16 %v184
  %v704 = vunpack.c.l.b16 %v185
  %v705 = vunpack.c.l.b16 %v186
  %v706 = vunpack.c.l.b16 %v187
  %v707 = vunpack.c.l.b16 %v188
  %v708 = vunpack.c.l.b16 %v189
  %v709 = vunpack.c.l.b16 %v190
  %v710 = vunpack.c.l.b16 %v191
  %v711 = vunpack.c.l.b16 %v192
  %v712 = vunpack.c.l.b16 %v193
  %v713 = vunpack.c.l.b16 %v194
  %v714 = vunpack.c.l.b16 %v195
  %v715 = vunpack.c.l.b16 %v196
  %v716 = vunpack.c.l.b16 %v197
  %v717 = vunpack.c.l.b16 %v198
  %v718 = vunpack.c.l.b16 %v199
  %v719 = vunpack.c.l.b16 %v200
  %v720 = vunpack.c.l.b16 %v201
  %v721 = vunpack.c.l.b16 %v202
  %v722 = vunpack.c.l.b16 %v203
  %v723 = vunpack.c.l.b16 %v204
  %v724 = vunpack.c.l.b16 %v205
  %v725 = vunpack.c.l.b16 %v206
  %v726 = vunpack.c.l.b16 %v207
  %v727 = vunpack.c.l.b16 %v208
  %v728 = vunpack.c.l.b16 %v209
  %v729 = vunpack.c.l.b16 %v210
  %v730 = vunpack.c.l.b16 %v211
  %v731 = vunpack.c.l.b16 %v212
  %v732 = vunpack.c.l.b16 %v213
  %v733 = vunpack.c.l.b16 %v214
  %v734 = vunpack.c.l.b16 %v215
  %v735 = vunpack.c.l.b16 %v216
  %v736 = vunpack.c.l.b16 %v217
  %v737 = vunpack.c.l.b16 %v218
  %v738 = vunpack.c.l.b16 %v219
  %v739 = vunpack.c.l.b16 %v220
  %v740 = vunpack.c.l.b16 %v221
  %v741 = vunpack.c.l.b16 %v222
  %v742 = vunpack.c.l.b16 %v223
  %v743 = vunpack.c.l.b16 %v224
  %v744 = vunpack.c.l.b16 %v225
  %v745 = vunpack.c.l.b16 %v226
  %v746 = vunpack.c.l.b16 %v227
  %v747 = vunpack.c.l.b16 %v228
  %v748 = vunpack.c.l.b16 %v229
  %v749 = vunpack.c.l.b16 %v230
  %v750 = vpack.c.b16 %v543, %v542
  %v751 = vpack.c.b16 %v545, %v544
  %v752 = vpack.c.b16 %v547, %v546
  %v753 = vpack.c.b16 %v549, %v548
  %v754 = vpack.c.b16 %v551, %v550
  %v755 = vpack.c.b16 %v553, %v552
  %v756 = vpack.c.b16 %v555, %v554
  %v757 = vpack.c.b16 %v557, %v556
  %v758 = vpack.c.b16 %v559, %v558
  %v759 = vpack.c.b16 %v561, %v560
  %v760 = vpack.c.b16 %v563, %v562
  %v761 = vpack.c.b16 %v565, %v564
  %v762 = vpack.c.b16 %v567, %v566
  %v763 = vpack.c.b16 %v569, %v568
  %v764 = vpack.c.b16 %v571, %v570
  %v765 = vpack.c.b16 %v573, %v572
  %v766 = vpack.c.b16 %v575, %v574
  %v767 = vpack.c.b16 %v577, %v576
  %v768 = vpack.c.b16 %v579, %v578
  %v769 = vpack.c.b16 %v581, %v580
  %v770 = vpack.c.b16 %v583, %v582
  %v771 = vpack.c.b16 %v585, %v584
  %v772 = vpack.c.b16 %v587, %v586
  %v773 = vpack.c.b16 %v589, %v588
  %v774 = vpack.c.b16 %v591, %v590
  %v775 = vpack.c.b16 %v593, %v592
  %v776 = vpack.c.b16 %v595, %v594
  %v777 = vpack.c.b16 %v597, %v596
  %v778 = vpack.c.b16 %v599, %v598
  %v779 = vpack.c.b16 %v601, %v600
  %v780 = vpack.c.b16 %v603, %v602
  %v781 = vpack.c.b16 %v605, %v604
  %v782 = vpack.c.b16 %v607, %v606
  %v783 = vpack.c.b16 %v609, %v608
  %v784 = vpack.c.b16 %v611, %v610
  %v785 = vpack.c.b16 %v613, %v612
  %v786 = vpack.c.b16 %v615, %v614
  %v787 = vpack.c.b16 %v617, %v616
  %v788 = vpack.c.b16 %v619, %v618
  %v789 = vpack.c.b16 %v621, %v620
  %v790 = vpack.c.b16 %v623, %v622
  %v791 = vpack.c.b16 %v625, %v624
  %v792 = vpack.c.b16 %v627, %v626
  %v793 = vpack.c.b16 %v629, %v628
  %v794 = vpack.c.b16 %v631, %v630
  %v795 = vpack.c.b16 %v633, %v632
  %v796 = vpack.c.b16 %v635, %v634
  %v797 = vpack.c.b16 %v637, %v636
  %v798 = vpack.c.b16 %v639, %v638
  %v799 = vpack.c.b16 %v641, %v640
  %v800 = vpack.c.b16 %v643, %v642
  %v801 = vpack.c.b16 %v645, %v644
  %v802 = vpack.c.b16 %v647, %v646
  %v803 = vpack.c.b16 %v649, %v648
  %v804 = vpack.c.b16 %v651, %v650
  %v805 = vpack.c.b16 %v653, %v652
  %v806 = vpack.c.b16 %v655, %v654
  %v807 = vpack.c.b16 %v657, %v656
  %v808 = vpack.c.b16 %v659, %v658
  %v809 = vpack.c.b16 %v661, %v660
  %v810 = vpack.c.b16 %v663, %v662
  %v811 = vpack.c.b16 %v665, %v664
  %v812 = vpack.c.b16 %v667, %v666
  %v813 = vpack.c.b16 %v669, %v668
  %v814 = vpack.c.b16 %v671, %v670
  %v815 = vpack.c.b16 %v673, %v672
  %v816 = vpack.c.b16 %v675, %v674
  %v817 = vpack.c.b16 %v677, %v676
  %v818 = vpack.c.b16 %v679, %v678
  %v819 = vpack.c.b16 %v681, %v680
  %v820 = vpack.c.b16 %v683, %v682
  %v821 = vpack.c.b16 %v685, %v684
  %v822 = vpack.c.b16 %v687, %v686
  %v823 = vpack.c.b16 %v689, %v688
  %v824 = vpack.c.b16 %v691, %v690
  %v825 = vpack.c.b16 %v693, %v692
  %v826 = vpack.c.b16 %v695, %v694
  %v827 = vpack.c.b16 %v697, %v696
  %v828 = vpack.c.b16 %v699, %v698
  %v829 = vpack.c.b16 %v701, %v700
  %v830 = vpack.c.b16 %v703, %v702
  %v831 = vpack.c.b16 %v705, %v704
  %v832 = vpack.c.b16 %v707, %v706
  %v833 = vpack.c.b16 %v709, %v708
  %v834 = vpack.c.b16 %v711, %v710
  %v835 = vpack.c.b16 %v713, %v712
  %v836 = vpack.c.b16 %v715, %v714
  %v837 = vpack.c.b16 %v717, %v716
  %v838 = vpack.c.b16 %v719, %v718
  %v839 = vpack.c.b16 %v721, %v720
  %v840 = vpack.c.b16 %v723, %v722
  %v841 = vpack.c.b16 %v725, %v724
  %v842 = vpack.c.b16 %v727, %v726
  %v843 = vpack.c.b16 %v729, %v728
  %v844 = vpack.c.b16 %v731, %v730
  %v845 = vpack.c.b16 %v733, %v732
  %v846 = vpack.c.b16 %v735, %v734
  %v847 = vpack.c.b16 %v737, %v736
  %v848 = vpack.c.b16 %v739, %v738
  %v849 = vpack.c.b16 %v741, %v740
  %v850 = vpack.c.b16 %v743, %v742
  %v851 = vpack.c.b16 %v745, %v744
  %v852 = vpack.c.b16 %v747, %v746
  %v853 = vpack.c.b16 %v749, %v748
  %958 = vmatprep.subr.bf16.mxu0 0
  %959 = vmatpush1.bf16.msra.mxu0 %v757
  %960 = vmatprep.subr.bf16.mxu0 0
  %961 = vmatpush1.bf16.msra.mxu0 %v756
  %962 = vmatprep.subr.bf16.mxu0 0
  %963 = vmatpush1.bf16.msra.mxu0 %v755
  %964 = vmatprep.subr.bf16.mxu0 0
  %965 = vmatpush1.bf16.msra.mxu0 %v754
  %966 = vmatprep.subr.bf16.mxu0 0
  %967 = vmatpush1.bf16.msra.mxu0 %v753
  %968 = vmatprep.subr.bf16.mxu0 0
  %969 = vmatpush1.bf16.msra.mxu0 %v752
  %970 = vmatprep.subr.bf16.mxu0 0
  %971 = vmatpush1.bf16.msra.mxu0 %v751
  %972 = vmatprep.subr.bf16.mxu0 0
  %973 = vmatpush1.bf16.msra.mxu0 %v750
  %974 = vmatprep.subr.bf16.mxu0 0
  %975 = vmatpush2.bf16.msra.mxu0 %v765
  %976 = vmatprep.subr.bf16.mxu0 0
  %977 = vmatpush2.bf16.msra.mxu0 %v764
  %978 = vmatprep.subr.bf16.mxu0 0
  %979 = vmatpush2.bf16.msra.mxu0 %v763
  %980 = vmatprep.subr.bf16.mxu0 0
  %981 = vmatpush2.bf16.msra.mxu0 %v762
  %982 = vmatprep.subr.bf16.mxu0 0
  %983 = vmatpush2.bf16.msra.mxu0 %v761
  %984 = vmatprep.subr.bf16.mxu0 0
  %985 = vmatpush2.bf16.msra.mxu0 %v760
  %986 = vmatprep.subr.bf16.mxu0 0
  %987 = vmatpush2.bf16.msra.mxu0 %v759
  %988 = vmatprep.subr.bf16.mxu0 0
  %989 = vmatpush2.bf16.msra.mxu0 %v758
  %990 = vmatprep.mubr.bf16.mxu0 %v270
  %991 = vmatmul.mubr.bf16.gmra.mxu0 %v256
  %v992 = vpop.f32.mrf.mxu0
  %v993 = vadd.f32 0.0, %v992
  %v994 = vpop.f32.mrf.mxu0
  %v995 = vpop.f32.mrf.mxu0
  %v996 = vpop.f32.mrf.mxu0
  %997 = vdwg.mxu0
  %998 = vmatprep.subr.bf16.mxu0 0
  %999 = vmatpush1.bf16.msra.mxu0 %v773
  %1000 = vmatprep.subr.bf16.mxu0 0
  %1001 = vmatpush1.bf16.msra.mxu0 %v772
  %1002 = vmatprep.subr.bf16.mxu0 0
  %1003 = vmatpush1.bf16.msra.mxu0 %v771
  %1004 = vmatprep.subr.bf16.mxu0 0
  %1005 = vmatpush1.bf16.msra.mxu0 %v770
  %1006 = vmatprep.subr.bf16.mxu0 0
  %1007 = vmatpush1.bf16.msra.mxu0 %v769
  %1008 = vmatprep.subr.bf16.mxu0 0
  %1009 = vmatpush1.bf16.msra.mxu0 %v768
  %1010 = vmatprep.subr.bf16.mxu0 0
  %1011 = vmatpush1.bf16.msra.mxu0 %v767
  %1012 = vmatprep.subr.bf16.mxu0 0
  %1013 = vmatpush1.bf16.msra.mxu0 %v766
  %1014 = vmatprep.subr.bf16.mxu0 0
  %1015 = vmatpush2.bf16.msra.mxu0 %v781
  %1016 = vmatprep.subr.bf16.mxu0 0
  %1017 = vmatpush2.bf16.msra.mxu0 %v780
  %1018 = vmatprep.subr.bf16.mxu0 0
  %1019 = vmatpush2.bf16.msra.mxu0 %v779
  %1020 = vmatprep.subr.bf16.mxu0 0
  %1021 = vmatpush2.bf16.msra.mxu0 %v778
  %1022 = vmatprep.subr.bf16.mxu0 0
  %1023 = vmatpush2.bf16.msra.mxu0 %v777
  %1024 = vmatprep.subr.bf16.mxu0 0
  %1025 = vmatpush2.bf16.msra.mxu0 %v776
  %1026 = vmatprep.subr.bf16.mxu0 0
  %1027 = vmatpush2.bf16.msra.mxu0 %v775
  %1028 = vmatprep.subr.bf16.mxu0 0
  %1029 = vmatpush2.bf16.msra.mxu0 %v774
  %1030 = vmatprep.mubr.bf16.mxu0 %v280
  %1031 = vmatmul.mubr.bf16.gmra.mxu0 %v278
  %v1032 = vpop.f32.mrf.mxu0
  %v1033 = vadd.f32 %v993, %v1032
  %v1034 = vpop.f32.mrf.mxu0
  %v1035 = vpop.f32.mrf.mxu0
  %v1036 = vpop.f32.mrf.mxu0
  %1037 = vdwg.mxu0
  %1038 = vmatprep.subr.bf16.mxu0 0
  %1039 = vmatpush1.bf16.msra.mxu0 %v789
  %1040 = vmatprep.subr.bf16.mxu0 0
  %1041 = vmatpush1.bf16.msra.mxu0 %v788
  %1042 = vmatprep.subr.bf16.mxu0 0
  %1043 = vmatpush1.bf16.msra.mxu0 %v787
  %1044 = vmatprep.subr.bf16.mxu0 0
  %1045 = vmatpush1.bf16.msra.mxu0 %v786
  %1046 = vmatprep.subr.bf16.mxu0 0
  %1047 = vmatpush1.bf16.msra.mxu0 %v785
  %1048 = vmatprep.subr.bf16.mxu0 0
  %1049 = vmatpush1.bf16.msra.mxu0 %v784
  %1050 = vmatprep.subr.bf16.mxu0 0
  %1051 = vmatpush1.bf16.msra.mxu0 %v783
  %1052 = vmatprep.subr.bf16.mxu0 0
  %1053 = vmatpush1.bf16.msra.mxu0 %v782
  %1054 = vmatprep.subr.bf16.mxu0 0
  %1055 = vmatpush2.bf16.msra.mxu0 %v797
  %1056 = vmatprep.subr.bf16.mxu0 0
  %1057 = vmatpush2.bf16.msra.mxu0 %v796
  %1058 = vmatprep.subr.bf16.mxu0 0
  %1059 = vmatpush2.bf16.msra.mxu0 %v795
  %1060 = vmatprep.subr.bf16.mxu0 0
  %1061 = vmatpush2.bf16.msra.mxu0 %v794
  %1062 = vmatprep.subr.bf16.mxu0 0
  %1063 = vmatpush2.bf16.msra.mxu0 %v793
  %1064 = vmatprep.subr.bf16.mxu0 0
  %1065 = vmatpush2.bf16.msra.mxu0 %v792
  %1066 = vmatprep.subr.bf16.mxu0 0
  %1067 = vmatpush2.bf16.msra.mxu0 %v791
  %1068 = vmatprep.subr.bf16.mxu0 0
  %1069 = vmatpush2.bf16.msra.mxu0 %v790
  %1070 = vmatprep.mubr.bf16.mxu0 %v277
  %1071 = vmatmul.mubr.bf16.gmra.mxu0 %v263
  %v1072 = vpop.f32.mrf.mxu0
  %v1073 = vadd.f32 %v1033, %v1072
  %v1074 = vpop.f32.mrf.mxu0
  %v1075 = vpop.f32.mrf.mxu0
  %v1076 = vpop.f32.mrf.mxu0
  %1077 = vdwg.mxu0
  %1078 = vmatprep.subr.bf16.mxu0 0
  %1079 = vmatpush1.bf16.msra.mxu0 %v805
  %1080 = vmatprep.subr.bf16.mxu0 0
  %1081 = vmatpush1.bf16.msra.mxu0 %v804
  %1082 = vmatprep.subr.bf16.mxu0 0
  %1083 = vmatpush1.bf16.msra.mxu0 %v803
  %1084 = vmatprep.subr.bf16.mxu0 0
  %1085 = vmatpush1.bf16.msra.mxu0 %v802
  %1086 = vmatprep.subr.bf16.mxu0 0
  %1087 = vmatpush1.bf16.msra.mxu0 %v801
  %1088 = vmatprep.subr.bf16.mxu0 0
  %1089 = vmatpush1.bf16.msra.mxu0 %v800
  %1090 = vmatprep.subr.bf16.mxu0 0
  %1091 = vmatpush1.bf16.msra.mxu0 %v799
  %1092 = vmatprep.subr.bf16.mxu0 0
  %1093 = vmatpush1.bf16.msra.mxu0 %v798
  %1094 = vmatprep.subr.bf16.mxu0 0
  %1095 = vmatpush2.bf16.msra.mxu0 %v813
  %1096 = vmatprep.subr.bf16.mxu0 0
  %1097 = vmatpush2.bf16.msra.mxu0 %v812
  %1098 = vmatprep.subr.bf16.mxu0 0
  %1099 = vmatpush2.bf16.msra.mxu0 %v811
  %1100 = vmatprep.subr.bf16.mxu0 0
  %1101 = vmatpush2.bf16.msra.mxu0 %v810
  %1102 = vmatprep.subr.bf16.mxu0 0
  %1103 = vmatpush2.bf16.msra.mxu0 %v809
  %1104 = vmatprep.subr.bf16.mxu0 0
  %1105 = vmatpush2.bf16.msra.mxu0 %v808
  %1106 = vmatprep.subr.bf16.mxu0 0
  %1107 = vmatpush2.bf16.msra.mxu0 %v807
  %1108 = vmatprep.subr.bf16.mxu0 0
  %1109 = vmatpush2.bf16.msra.mxu0 %v806
  %1110 = vmatprep.mubr.bf16.mxu0 %v281
  %1111 = vmatmul.mubr.bf16.gmra.mxu0 %v279
  %v1112 = vpop.f32.mrf.mxu0
  %v1113 = vadd.f32 %v1073, %v1112
  %v1114 = vpop.f32.mrf.mxu0
  %v1115 = vpop.f32.mrf.mxu0
  %v1116 = vpop.f32.mrf.mxu0
  %1117 = vdwg.mxu0
  %1118 = vmatprep.subr.bf16.mxu0 0
  %1119 = vmatpush1.bf16.msra.mxu0 %v821
  %1120 = vmatprep.subr.bf16.mxu0 0
  %1121 = vmatpush1.bf16.msra.mxu0 %v820
  %1122 = vmatprep.subr.bf16.mxu0 0
  %1123 = vmatpush1.bf16.msra.mxu0 %v819
  %1124 = vmatprep.subr.bf16.mxu0 0
  %1125 = vmatpush1.bf16.msra.mxu0 %v818
  %1126 = vmatprep.subr.bf16.mxu0 0
  %1127 = vmatpush1.bf16.msra.mxu0 %v817
  %1128 = vmatprep.subr.bf16.mxu0 0
  %1129 = vmatpush1.bf16.msra.mxu0 %v816
  %1130 = vmatprep.subr.bf16.mxu0 0
  %1131 = vmatpush1.bf16.msra.mxu0 %v815
  %1132 = vmatprep.subr.bf16.mxu0 0
  %1133 = vmatpush1.bf16.msra.mxu0 %v814
  %1134 = vmatprep.subr.bf16.mxu0 0
  %1135 = vmatpush2.bf16.msra.mxu0 %v829
  %1136 = vmatprep.subr.bf16.mxu0 0
  %1137 = vmatpush2.bf16.msra.mxu0 %v828
  %1138 = vmatprep.subr.bf16.mxu0 0
  %1139 = vmatpush2.bf16.msra.mxu0 %v827
  %1140 = vmatprep.subr.bf16.mxu0 0
  %1141 = vmatpush2.bf16.msra.mxu0 %v826
  %1142 = vmatprep.subr.bf16.mxu0 0
  %1143 = vmatpush2.bf16.msra.mxu0 %v825
  %1144 = vmatprep.subr.bf16.mxu0 0
  %1145 = vmatpush2.bf16.msra.mxu0 %v824
  %1146 = vmatprep.subr.bf16.mxu0 0
  %1147 = vmatpush2.bf16.msra.mxu0 %v823
  %1148 = vmatprep.subr.bf16.mxu0 0
  %1149 = vmatpush2.bf16.msra.mxu0 %v822
  %1150 = vmatprep.mubr.bf16.mxu0 %v318
  %1151 = vmatmul.mubr.bf16.gmra.mxu0 %v304
  %v1152 = vpop.f32.mrf.mxu0
  %v1153 = vadd.f32 %v1113, %v1152
  %v1154 = vpop.f32.mrf.mxu0
  %v1155 = vpop.f32.mrf.mxu0
  %v1156 = vpop.f32.mrf.mxu0
  %1157 = vdwg.mxu0
  %1158 = vmatprep.subr.bf16.mxu0 0
  %1159 = vmatpush1.bf16.msra.mxu0 %v837
  %1160 = vmatprep.subr.bf16.mxu0 0
  %1161 = vmatpush1.bf16.msra.mxu0 %v836
  %1162 = vmatprep.subr.bf16.mxu0 0
  %1163 = vmatpush1.bf16.msra.mxu0 %v835
  %1164 = vmatprep.subr.bf16.mxu0 0
  %1165 = vmatpush1.bf16.msra.mxu0 %v834
  %1166 = vmatprep.subr.bf16.mxu0 0
  %1167 = vmatpush1.bf16.msra.mxu0 %v833
  %1168 = vmatprep.subr.bf16.mxu0 0
  %1169 = vmatpush1.bf16.msra.mxu0 %v832
  %1170 = vmatprep.subr.bf16.mxu0 0
  %1171 = vmatpush1.bf16.msra.mxu0 %v831
  %1172 = vmatprep.subr.bf16.mxu0 0
  %1173 = vmatpush1.bf16.msra.mxu0 %v830
  %1174 = vmatprep.subr.bf16.mxu0 0
  %1175 = vmatpush2.bf16.msra.mxu0 %v845
  %1176 = vmatprep.subr.bf16.mxu0 0
  %1177 = vmatpush2.bf16.msra.mxu0 %v844
  %1178 = vmatprep.subr.bf16.mxu0 0
  %1179 = vmatpush2.bf16.msra.mxu0 %v843
  %1180 = vmatprep.subr.bf16.mxu0 0
  %1181 = vmatpush2.bf16.msra.mxu0 %v842
  %1182 = vmatprep.subr.bf16.mxu0 0
  %1183 = vmatpush2.bf16.msra.mxu0 %v841
  %1184 = vmatprep.subr.bf16.mxu0 0
  %1185 = vmatpush2.bf16.msra.mxu0 %v840
  %1186 = vmatprep.subr.bf16.mxu0 0
  %1187 = vmatpush2.bf16.msra.mxu0 %v839
  %1188 = vmatprep.subr.bf16.mxu0 0
  %1189 = vmatpush2.bf16.msra.mxu0 %v838
  %1190 = vmatprep.mubr.bf16.mxu0 %v320
  %1191 = vmatmul.mubr.bf16.gmra.mxu0 %v319
  %v1192 = vpop.f32.mrf.mxu0
  %v1193 = vadd.f32 %v1153, %v1192
  %v1194 = vpop.f32.mrf.mxu0
  %v1195 = vpop.f32.mrf.mxu0
  %v1196 = vpop.f32.mrf.mxu0
  %1197 = vdwg.mxu0
  %1198 = vmatprep.subr.bf16.mxu0 0
  %1199 = vmatpush1.bf16.msra.mxu0 %v853
  %1200 = vmatprep.subr.bf16.mxu0 0
  %1201 = vmatpush1.bf16.msra.mxu0 %v852
  %1202 = vmatprep.subr.bf16.mxu0 0
  %1203 = vmatpush1.bf16.msra.mxu0 %v851
  %1204 = vmatprep.subr.bf16.mxu0 0
  %1205 = vmatpush1.bf16.msra.mxu0 %v850
  %1206 = vmatprep.subr.bf16.mxu0 0
  %1207 = vmatpush1.bf16.msra.mxu0 %v849
  %1208 = vmatprep.subr.bf16.mxu0 0
  %1209 = vmatpush1.bf16.msra.mxu0 %v848
  %1210 = vmatprep.subr.bf16.mxu0 0
  %1211 = vmatpush1.bf16.msra.mxu0 %v847
  %1212 = vmatprep.subr.bf16.mxu0 0
  %1213 = vmatpush1.bf16.msra.mxu0 %v846
  %1214 = vmatprep.subr.bf16.mxu0 0
  %1215 = vmatpush2.bf16.msra.mxu0 0
  %1216 = vmatprep.subr.bf16.mxu0 0
  %1217 = vmatpush2.bf16.msra.mxu0 0
  %1218 = vmatprep.subr.bf16.mxu0 0
  %1219 = vmatpush2.bf16.msra.mxu0 0
  %1220 = vmatprep.subr.bf16.mxu0 0
  %1221 = vmatpush2.bf16.msra.mxu0 0
  %1222 = vmatprep.subr.bf16.mxu0 0
  %1223 = vmatpush2.bf16.msra.mxu0 0
  %1224 = vmatprep.subr.bf16.mxu0 0
  %1225 = vmatpush2.bf16.msra.mxu0 0
  %1226 = vmatprep.subr.bf16.mxu0 0
  %1227 = vmatpush2.bf16.msra.mxu0 0
  %1228 = vmatprep.subr.bf16.mxu0 0
  %1229 = vmatpush2.bf16.msra.mxu0 0
  %1230 = vmatprep.mubr.bf16.mxu0 0
  %1231 = vmatmul.mubr.bf16.gmra.mxu0 %v311
  %v1232 = vpop.f32.mrf.mxu0
  %v1233 = vadd.f32 %v1193, %v1232
  %v1234 = vpop.f32.mrf.mxu0
  %v1235 = vpop.f32.mrf.mxu0
  %v1236 = vpop.f32.mrf.mxu0
  %1237 = vdwg.mxu0
  %v1238 = vadd.f32 %v20, %v1233
  %1239 = vst [vmem:[#allocation2] sm:$0x3] %v1238
  // Predicated region
  $region18: #{vgg_forward.5} parent=0 // pred_check
    %p1240 = pneg %p15
  $region19: #{vgg_forward.5} parent=0 // pred_check_branch
    %1242 = sbr.rel (%p1240) target = $region21
  $region20: #{vgg_forward.5} parent=0 // pred_region
    %v1243 = vld [vmem:[#allocation2] sm:$0x3]
    %v1244 = vld [vmem:[%s2] sm:$0x1]
    %v1246 = vlaneseq
    %v1247 = vshrl.u32 %v1246, 7
    %v1248 = vsub.s32 0, %v1247
    %v1249 = vrot.slane %v1244, %v1248
    %v1251 = vadd.f32 %v1243, %v1249
    %v1252 = vmax.f32 %v1251, 0.0
    %v1253 = vpack.c.bf16 %v1252, %v1252
    %1254 = vst [vmem:[%s3] sm:$0x1] %v1253
  $region21: #{vgg_forward.5} parent=0 // pred_fallthru
    _
  // Predicated region
  $region22: #{vgg_forward.5} parent=0 // pred_check
    _
  $region23: #{vgg_forward.5} parent=0 // pred_check_branch
    %1256 = sbr.rel (0) target = $region25
  $region24: #{vgg_forward.5} parent=0 // pred_region
    _
  $region25: #{vgg_forward.5} parent=0 // pred_fallthru
    _
  // Predicated region
  $region26: #{vgg_forward.5} parent=0 // pred_check
    _
  $region27: #{vgg_forward.5} parent=0 // pred_check_branch
    %1258 = sbr.rel (0) target = $region29
  $region28: #{vgg_forward.5} parent=0 // pred_region
    _
  $region29: #{vgg_forward.5} parent=0 // pred_fallthru
    _

// kernel: vgg_forward.4
$region0: #{vgg_forward.4}
  #allocation0 [shape = 'u32[]', space=smem, size = 0x4, offset = 0x4, fixed_abs, tag = 'smem constant byte address 0x4 - core index']
  #allocation1 [shape = 'u32[144,128]{1,0:T(1,128)}', space=vmem, size = 0x12000, scoped, tag = 'internal scratch']
  #allocation2 [shape = 'f32[10,10,16]{2,1,0:T(8,128)}', space=vmem, size = 0x14000, scoped, tag = 'scratch operand']
  #allocation3 [shape = 'bf16[64,144]{1,0:T(8,128)(2,1)}', space=vmem, size = 0x8000, scoped, tag = 'scratch operand']
  %s0 = inlined_call_operand.vmem [shape: bf16[2,256,27], index: 0, kind: input, shape index: {}]
  %s1 = inlined_call_operand.vmem [shape: bf16[27,16], index: 1, kind: input, shape index: {}]
  %s2 = inlined_call_operand.vmem [shape: f32[1,16], index: 2, kind: input, shape index: {}]
  %s3 = inlined_call_operand.vmem [shape: bf16[144,32], index: 3, kind: input, shape index: {}]
  %s4 = inlined_call_operand.vmem [shape: f32[1,32], index: 4, kind: input, shape index: {}]
  %s5 = inlined_call_operand.vmem [shape: f32[49,16], index: 5, kind: input, shape index: {}]
  %s6 = inlined_call_operand.vmem [shape: bf16[2,49,32], index: 6, kind: output, shape index: {}]
  %s7 = sld [smem:[#allocation0]]
  $region57: #{vgg_forward.4} parent=0
    _
  %s9 = ssub.s32 1, %s7
  %s10 = scalar_select 0, %s9, %s7
  loop: start=0, step=1, limit=4
  $region2: #{vgg_forward.4} parent=0 // loop_pre_header
    _
  $region3: #{vgg_forward.4} parent=0 // loop_header
    %s12 = sphi 0, %s16
    %p13 = scmp.ge.s32.totalorder %s12, 4
    %s22 = sphi 0, %s24
    %s25 = sphi 0, %s22
    %s26 = sphi 0, %s25
    %s42 = sphi 0, %s26
    %s46 = sphi 0, %s46
    %s48 = sphi 0, %s46
    %s49 = sphi 0, %s48
    %s63 = sphi 0, %s49
    %s67 = sphi 0, %s67
    %s69 = sphi 0, %s67
    %s70 = sphi 0, %s69
    %s84 = sphi 0, %s70
    %s88 = sphi 0, %s88
    %s90 = sphi 0, %s88
    %s91 = sphi 0, %s90
    %s105 = sphi 0, %s91
    %s109 = sphi 0, %s109
    %s111 = sphi 0, %s109
    %s112 = sphi 0, %s111
    %s126 = sphi 0, %s112
    %s130 = sphi 0, %s130
    %s132 = sphi 0, %s130
    %s133 = sphi 0, %s132
    %s147 = sphi 0, %s133
    %s153 = sphi 0, %s155
    %s156 = sphi 0, %s153
    %s157 = sphi 0, %s156
    %s173 = sphi 0, %s157
  $region4: #{vgg_forward.4} parent=0 // loop_header_branch
    %15 = sbr.rel (%p13) target = $region8
  $region5: #{vgg_forward.4} parent=0 // loop_body
    %s17 = ssub.s32 %s12, 1
    %s18 = ssub.s32 %s12, 2
    %s19 = sadd.s32 %s12, 1
    %s20 = ssub.s32 %s12, %s19
    %p21 = scmp.eq.s32.totalorder %s20, 0
    %s23 = sadd.s32 %s22, 1
    %s24 = scalar_select %p21, %s22, %s23
    %p27 = pneg %p21
    %p28 = scmp.eq.s32.totalorder %s12, 1
    %p29 = por %p27, %p28
    %p30 = scmp.ne.s32.totalorder %s22, %s25
    %p31 = scmp.eq.s32.totalorder %s12, 0
    %p32 = por %p30, %p31
    %p33 = scmp.ne.s32.totalorder %s22, %s25
    %p34 = scmp.eq.s32.totalorder %s17, 1
    %p35 = por %p33, %p34
    %p36 = scmp.ne.s32.totalorder %s25, %s26
    %p37 = scmp.eq.s32.totalorder %s17, 0
    %p38 = por %p36, %p37
    %p39 = scmp.ne.s32.totalorder %s25, %s26
    %p40 = scmp.eq.s32.totalorder %s18, 1
    %p41 = por %p39, %p40
    %p43 = scmp.ne.s32.totalorder %s26, %s42
    %p44 = scmp.eq.s32.totalorder %s18, 0
    %p45 = por %p43, %p44
    %s47 = sadd.s32 %s46, 1
    %p50 = scmp.eq.s32.totalorder %s12, 1
    %p51 = scmp.ne.s32.totalorder %s46, %s48
    %p52 = scmp.eq.s32.totalorder %s12, 0
    %p53 = por %p51, %p52
    %p54 = scmp.ne.s32.totalorder %s46, %s48
    %p55 = scmp.eq.s32.totalorder %s17, 1
    %p56 = por %p54, %p55
    %p57 = scmp.ne.s32.totalorder %s48, %s49
    %p58 = scmp.eq.s32.totalorder %s17, 0
    %p59 = por %p57, %p58
    %p60 = scmp.ne.s32.totalorder %s48, %s49
    %p61 = scmp.eq.s32.totalorder %s18, 1
    %p62 = por %p60, %p61
    %p64 = scmp.ne.s32.totalorder %s49, %s63
    %p65 = scmp.eq.s32.totalorder %s18, 0
    %p66 = por %p64, %p65
    %s68 = sadd.s32 %s67, 1
    %p71 = scmp.eq.s32.totalorder %s12, 1
    %p72 = scmp.ne.s32.totalorder %s67, %s69
    %p73 = scmp.eq.s32.totalorder %s12, 0
    %p74 = por %p72, %p73
    %p75 = scmp.ne.s32.totalorder %s67, %s69
    %p76 = scmp.eq.s32.totalorder %s17, 1
    %p77 = por %p75, %p76
    %p78 = scmp.ne.s32.totalorder %s69, %s70
    %p79 = scmp.eq.s32.totalorder %s17, 0
    %p80 = por %p78, %p79
    %p81 = scmp.ne.s32.totalorder %s69, %s70
    %p82 = scmp.eq.s32.totalorder %s18, 1
    %p83 = por %p81, %p82
    %p85 = scmp.ne.s32.totalorder %s70, %s84
    %p86 = scmp.eq.s32.totalorder %s18, 0
    %p87 = por %p85, %p86
    %s89 = sadd.s32 %s88, 1
    %p92 = scmp.eq.s32.totalorder %s12, 1
    %p93 = scmp.ne.s32.totalorder %s88, %s90
    %p94 = scmp.eq.s32.totalorder %s12, 0
    %p95 = por %p93, %p94
    %p96 = scmp.ne.s32.totalorder %s88, %s90
    %p97 = scmp.eq.s32.totalorder %s17, 1
    %p98 = por %p96, %p97
    %p99 = scmp.ne.s32.totalorder %s90, %s91
    %p100 = scmp.eq.s32.totalorder %s17, 0
    %p101 = por %p99, %p100
    %p102 = scmp.ne.s32.totalorder %s90, %s91
    %p103 = scmp.eq.s32.totalorder %s18, 1
    %p104 = por %p102, %p103
    %p106 = scmp.ne.s32.totalorder %s91, %s105
    %p107 = scmp.eq.s32.totalorder %s18, 0
    %p108 = por %p106, %p107
    %s110 = sadd.s32 %s109, 1
    %p113 = scmp.eq.s32.totalorder %s12, 1
    %p114 = scmp.ne.s32.totalorder %s109, %s111
    %p115 = scmp.eq.s32.totalorder %s12, 0
    %p116 = por %p114, %p115
    %p117 = scmp.ne.s32.totalorder %s109, %s111
    %p118 = scmp.eq.s32.totalorder %s17, 1
    %p119 = por %p117, %p118
    %p120 = scmp.ne.s32.totalorder %s111, %s112
    %p121 = scmp.eq.s32.totalorder %s17, 0
    %p122 = por %p120, %p121
    %p123 = scmp.ne.s32.totalorder %s111, %s112
    %p124 = scmp.eq.s32.totalorder %s18, 1
    %p125 = por %p123, %p124
    %p127 = scmp.ne.s32.totalorder %s112, %s126
    %p128 = scmp.eq.s32.totalorder %s18, 0
    %p129 = por %p127, %p128
    %s131 = sadd.s32 %s130, 1
    %p134 = scmp.eq.s32.totalorder %s12, 1
    %p135 = scmp.ne.s32.totalorder %s130, %s132
    %p136 = scmp.eq.s32.totalorder %s12, 0
    %p137 = por %p135, %p136
    %p138 = scmp.ne.s32.totalorder %s130, %s132
    %p139 = scmp.eq.s32.totalorder %s17, 1
    %p140 = por %p138, %p139
    %p141 = scmp.ne.s32.totalorder %s132, %s133
    %p142 = scmp.eq.s32.totalorder %s17, 0
    %p143 = por %p141, %p142
    %p144 = scmp.ne.s32.totalorder %s132, %s133
    %p145 = scmp.eq.s32.totalorder %s18, 1
    %p146 = por %p144, %p145
    %p148 = scmp.ne.s32.totalorder %s133, %s147
    %p149 = scmp.eq.s32.totalorder %s18, 0
    %p150 = por %p148, %p149
    %s151 = ssub.s32 %s12, %s19
    %p152 = scmp.eq.s32.totalorder %s151, 0
    %s154 = sadd.s32 %s153, 1
    %s155 = scalar_select %p152, %s153, %s154
    %p158 = pneg %p152
    %p159 = scmp.eq.s32.totalorder %s12, 1
    %p160 = por %p158, %p159
    %p161 = scmp.ne.s32.totalorder %s153, %s156
    %p162 = scmp.eq.s32.totalorder %s12, 0
    %p163 = por %p161, %p162
    %p164 = scmp.ne.s32.totalorder %s153, %s156
    %p165 = scmp.eq.s32.totalorder %s17, 1
    %p166 = por %p164, %p165
    %p167 = scmp.ne.s32.totalorder %s156, %s157
    %p168 = scmp.eq.s32.totalorder %s17, 0
    %p169 = por %p167, %p168
    %p170 = scmp.ne.s32.totalorder %s156, %s157
    %p171 = scmp.eq.s32.totalorder %s18, 1
    %p172 = por %p170, %p171
    %p174 = scmp.ne.s32.totalorder %s157, %s173
    %p175 = scmp.eq.s32.totalorder %s18, 0
    %p176 = por %p174, %p175
    %p177 = scmp.le.s32.totalorder 1, %s12
    %p178 = scmp.lt.s32.totalorder %s12, 3
    %p179 = pnand %p177, %p178
    %p180 = pneg %p179
    // Predicated region
    $region9: #{vgg_forward.4} parent=5 // pred_check
      _
    $region10: #{vgg_forward.4} parent=5 // pred_check_branch
      %182 = sbr.rel (%p179) target = $region12
    $region11: #{vgg_forward.4} parent=5 // pred_region
      %s183 = ssub.s32 %s12, 1
      // Predicated region
      $region13: #{vgg_forward.4} parent=11 // pred_check
        %p184 = pneg %p59
      $region14: #{vgg_forward.4} parent=11 // pred_check_branch
        %186 = sbr.rel (%p184) target = $region16
      $region15: #{vgg_forward.4} parent=11 // pred_region
        _
      $region16: #{vgg_forward.4} parent=11 // pred_fallthru
        _
      // Predicated region
      $region17: #{vgg_forward.4} parent=11 // pred_check
        %p187 = pneg %p80
      $region18: #{vgg_forward.4} parent=11 // pred_check_branch
        %189 = sbr.rel (%p187) target = $region20
      $region19: #{vgg_forward.4} parent=11 // pred_region
        _
      $region20: #{vgg_forward.4} parent=11 // pred_fallthru
        _
      // Predicated region
      $region21: #{vgg_forward.4} parent=11 // pred_check
        %p190 = pneg %p101
      $region22: #{vgg_forward.4} parent=11 // pred_check_branch
        %192 = sbr.rel (%p190) target = $region24
      $region23: #{vgg_forward.4} parent=11 // pred_region
        _
      $region24: #{vgg_forward.4} parent=11 // pred_fallthru
        _
      // Predicated region
      $region25: #{vgg_forward.4} parent=11 // pred_check
        %p193 = pneg %p122
      $region26: #{vgg_forward.4} parent=11 // pred_check_branch
        %195 = sbr.rel (%p193) target = $region28
      $region27: #{vgg_forward.4} parent=11 // pred_region
        _
      $region28: #{vgg_forward.4} parent=11 // pred_fallthru
        _
      // Predicated region
      $region29: #{vgg_forward.4} parent=11 // pred_check
        %p196 = pneg %p143
      $region30: #{vgg_forward.4} parent=11 // pred_check_branch
        %198 = sbr.rel (%p196) target = $region32
      $region31: #{vgg_forward.4} parent=11 // pred_region
        _
      $region32: #{vgg_forward.4} parent=11 // pred_fallthru
        _
    $region12: #{vgg_forward.4} parent=5 // pred_fallthru
      _
    %p199 = scmp.lt.s32.totalorder %s12, 2
    // Predicated region
    $region33: #{vgg_forward.4} parent=5 // pred_check
      %p200 = pneg %p199
    $region34: #{vgg_forward.4} parent=5 // pred_check_branch
      %202 = sbr.rel (%p200) target = $region36
    $region35: #{vgg_forward.4} parent=5 // pred_region
      // Predicated region
      $region37: #{vgg_forward.4} parent=35 // pred_check
        %p203 = pneg %p32
      $region38: #{vgg_forward.4} parent=35 // pred_check_branch
        %205 = sbr.rel (%p203) target = $region40
      $region39: #{vgg_forward.4} parent=35 // pred_region
        %p206 = scmp.lt.s32.totalorder %s12, 1
        %s207 = scalar_select %p206, %s12, 1
        %s208 = smul.addr %s207, 32
        %s209 = smul.addr %s208, 4
        %s210 = scalar_lea.vmem %s0, %s209
      $region40: #{vgg_forward.4} parent=35 // pred_fallthru
        _
    $region36: #{vgg_forward.4} parent=5 // pred_fallthru
      _
    %p211 = scmp.le.s32.totalorder 1, %s12
    %p212 = scmp.lt.s32.totalorder %s12, 3
    %p213 = pnand %p211, %p212
    %p214 = pneg %p213
    // Predicated region
    $region41: #{vgg_forward.4} parent=5 // pred_check
      _
    $region42: #{vgg_forward.4} parent=5 // pred_check_branch
      %216 = sbr.rel (%p213) target = $region44
    $region43: #{vgg_forward.4} parent=5 // pred_region
      %s217 = ssub.s32 %s12, 1
      %p218 = scmp.lt.s32.totalorder %s17, 1
      %s219 = scalar_select %p218, %s17, 1
      %s220 = smul.addr %s219, 32
      %s221 = smul.addr %s220, 4
      %s222 = scalar_lea.vmem %s0, %s221
      %p223 = pneg %p38
      %p224 = pneg %p35
      %p225 = pneg %p59
      %p226 = pneg %p56
      %p227 = pneg %p80
      %p228 = pneg %p77
      %p229 = pneg %p101
      %p230 = pneg %p98
      %p231 = pneg %p122
      %p232 = pneg %p119
      %p233 = pneg %p143
      %p234 = pneg %p140
      %p235 = pneg %p169
      %p236 = pneg %p166
      %p237 = scmp.lt.s32.totalorder %s17, 1
      %s238 = scalar_select %p237, %s17, 1
      %s239 = smul.addr %s238, 7
      %s240 = smul.addr %s239, 4
      %s241 = scalar_lea.vmem %s6, %s240
      %p242 = scmp.lt.s32.totalorder %s17, 1
      %s243 = scalar_select %p242, %s17, 1
      %s244 = smul.addr %s243, 32
      %s245 = smul.addr %s244, 4
      %s246 = scalar_lea.vmem %s0, %s245
      %p247 = scmp.lt.s32.totalorder %s17, 1
      %s248 = scalar_select %p247, %s17, 1
      %s249 = smul.addr %s248, 7
      %s250 = smul.addr %s249, 4
      %s251 = scalar_lea.vmem %s6, %s250
      %v253 = vld [vmem:[%s246] sm:$0xf]
      %v254 = vld [vmem:[%s246 + $0x4] sm:$0xf]
      %v255 = vld [vmem:[%s246 + $0x8] sm:$0xf]
      %v256 = vld [vmem:[%s246 + $0xc] sm:$0xf]
      %v257 = vld [vmem:[%s246 + $0x10] sm:$0xf]
      %v258 = vld [vmem:[%s246 + $0x14] sm:$0xf]
      %v259 = vld [vmem:[%s246 + $0x18] sm:$0xf]
      %v260 = vld [vmem:[%s246 + $0x1c] sm:$0xf]
      %v261 = vld [vmem:[%s246 + $0x20] sm:$0xf]
      %v262 = vld [vmem:[%s246 + $0x24] sm:$0xf]
      %v263 = vld [vmem:[%s246 + $0x28] sm:$0xf]
      %v264 = vld [vmem:[%s246 + $0x2c] sm:$0xf]
      %v265 = vld [vmem:[%s246 + $0x30] sm:$0xf]
      %v266 = vld [vmem:[%s246 + $0x34] sm:$0xf]
      %v267 = vld [vmem:[%s246 + $0x38] sm:$0xf]
      %v268 = vld [vmem:[%s246 + $0x3c] sm:$0xf]
      %v269 = vld [vmem:[%s246 + $0x40] sm:$0xf]
      %v270 = vld [vmem:[%s246 + $0x44] sm:$0xf]
      %v271 = vld [vmem:[%s246 + $0x48] sm:$0xf]
      %v272 = vld [vmem:[%s246 + $0x4c] sm:$0xf]
      %v273 = vld [vmem:[%s246 + $0x50] sm:$0xf]
      %v274 = vld [vmem:[%s246 + $0x54] sm:$0xf]
      %v275 = vld [vmem:[%s246 + $0x58] sm:$0xf]
      %v276 = vld [vmem:[%s246 + $0x5c] sm:$0xf]
      %v277 = vld [vmem:[%s246 + $0x60] sm:$0xf]
      %v278 = vld [vmem:[%s246 + $0x64] sm:$0xf]
      %v279 = vld [vmem:[%s246 + $0x68] sm:$0xf]
      %v280 = vld [vmem:[%s246 + $0x6c] sm:$0xf]
      %v281 = vld [vmem:[%s246 + $0x70] sm:$0xf]
      %v282 = vld [vmem:[%s246 + $0x74] sm:$0xf]
      %v283 = vld [vmem:[%s246 + $0x78] sm:$0xf]
      %v284 = vld [vmem:[%s246 + $0x7c] sm:$0xf]
      %v285 = vld [vmem:[%s1] sm:$0xf]
      %v286 = vld [vmem:[%s1 + $0x4] sm:$0xf]
      %v287 = vld [vmem:[%s1 + $0x8] sm:$0xf]
      %v288 = vld [vmem:[%s1 + $0xc] sm:$0x3]
      %v289 = vld [vmem:[%s2] sm:$0x1]
      %v291 = vlaneseq
      %v292 = vshrl.u32 %v291, 7
      %v293 = vsub.s32 0, %v292
      %v294 = vrot.slane %v289, %v293
      %v328 = vunpack.c.l.b16 %v253
      %v329 = vunpack.c.l.b16 %v254
      %v330 = vunpack.c.l.b16 %v255
      %v331 = vunpack.c.l.b16 %v256
      %v332 = vunpack.c.l.b16 %v257
      %v333 = vunpack.c.l.b16 %v258
      %v334 = vunpack.c.l.b16 %v259
      %v335 = vunpack.c.l.b16 %v260
      %v336 = vunpack.c.l.b16 %v261
      %v337 = vunpack.c.l.b16 %v262
      %v338 = vunpack.c.l.b16 %v263
      %v339 = vunpack.c.l.b16 %v264
      %v340 = vunpack.c.l.b16 %v265
      %v341 = vunpack.c.l.b16 %v266
      %v342 = vunpack.c.l.b16 %v267
      %v343 = vunpack.c.l.b16 %v268
      %v344 = vunpack.c.l.b16 %v269
      %v345 = vunpack.c.l.b16 %v270
      %v346 = vunpack.c.l.b16 %v271
      %v347 = vunpack.c.l.b16 %v272
      %v348 = vunpack.c.l.b16 %v273
      %v349 = vunpack.c.l.b16 %v274
      %v350 = vunpack.c.l.b16 %v275
      %v351 = vunpack.c.l.b16 %v276
      %v352 = vunpack.c.l.b16 %v277
      %v353 = vunpack.c.l.b16 %v278
      %v354 = vunpack.c.l.b16 %v279
      %v355 = vunpack.c.l.b16 %v280
      %v356 = vunpack.c.l.b16 %v281
      %v357 = vunpack.c.l.b16 %v282
      %v358 = vunpack.c.l.b16 %v283
      %v359 = vunpack.c.l.b16 %v284
      %v360 = vpack.c.b16 %v329, %v328
      %v361 = vpack.c.b16 %v331, %v330
      %v362 = vpack.c.b16 %v333, %v332
      %v363 = vpack.c.b16 %v335, %v334
      %v364 = vpack.c.b16 %v337, %v336
      %v365 = vpack.c.b16 %v339, %v338
      %v366 = vpack.c.b16 %v341, %v340
      %v367 = vpack.c.b16 %v343, %v342
      %v368 = vpack.c.b16 %v345, %v344
      %v369 = vpack.c.b16 %v347, %v346
      %v370 = vpack.c.b16 %v349, %v348
      %v371 = vpack.c.b16 %v351, %v350
      %v372 = vpack.c.b16 %v353, %v352
      %v373 = vpack.c.b16 %v355, %v354
      %v374 = vpack.c.b16 %v357, %v356
      %v375 = vpack.c.b16 %v359, %v358
      %v380 = vunpack.c.l.b16 %v285
      %v381 = vunpack.c.l.b16 %v286
      %v382 = vunpack.c.l.b16 %v287
      %v383 = vunpack.c.l.b16 %v288
      %v384 = vpack.c.b16 %v381, %v380
      %v385 = vpack.c.b16 %v383, %v382
      %vm387 = vcmask 220160
      %v389 = vsel %vm387, %v360, 0
      %v392 = vsel %vm387, %v361, 0
      %v395 = vsel %vm387, %v362, 0
      %v398 = vsel %vm387, %v363, 0
      %v401 = vsel %vm387, %v364, 0
      %v404 = vsel %vm387, %v365, 0
      %v407 = vsel %vm387, %v366, 0
      %v410 = vsel %vm387, %v367, 0
      %v413 = vsel %vm387, %v368, 0
      %v416 = vsel %vm387, %v369, 0
      %v419 = vsel %vm387, %v370, 0
      %v422 = vsel %vm387, %v371, 0
      %v425 = vsel %vm387, %v372, 0
      %v428 = vsel %vm387, %v373, 0
      %v431 = vsel %vm387, %v374, 0
      %v434 = vsel %vm387, %v375, 0
      %vm436 = vcmask 1044480
      %vm437 = vcmask 1045504
      %v438 = vsel %vm436, 4294967295, 65535
      %v439 = vsel %vm437, %v438, 0
      %v441 = vand.u32 %v385, %v439
      %443 = vmatprep.subr.bf16.mxu0 0
      %444 = vmatpush1.bf16.msra.mxu0 0
      %445 = vmatprep.subr.bf16.mxu0 0
      %446 = vmatpush1.bf16.msra.mxu0 0
      %447 = vmatprep.subr.bf16.mxu0 0
      %448 = vmatpush1.bf16.msra.mxu0 0
      %449 = vmatprep.subr.bf16.mxu0 0
      %450 = vmatpush1.bf16.msra.mxu0 0
      %451 = vmatprep.subr.bf16.mxu0 0
      %452 = vmatpush1.bf16.msra.mxu0 0
      %453 = vmatprep.subr.bf16.mxu0 0
      %454 = vmatpush1.bf16.msra.mxu0 0
      %455 = vmatprep.subr.bf16.mxu0 0
      %456 = vmatpush1.bf16.msra.mxu0 %v441
      %457 = vmatprep.subr.bf16.mxu0 0
      %458 = vmatpush1.bf16.msra.mxu0 %v384
      %459 = vmatprep.subr.bf16.mxu0 0
      %460 = vmatpush2.bf16.msra.mxu0 0
      %461 = vmatprep.subr.bf16.mxu0 0
      %462 = vmatpush2.bf16.msra.mxu0 0
      %463 = vmatprep.subr.bf16.mxu0 0
      %464 = vmatpush2.bf16.msra.mxu0 0
      %465 = vmatprep.subr.bf16.mxu0 0
      %466 = vmatpush2.bf16.msra.mxu0 0
      %467 = vmatprep.subr.bf16.mxu0 0
      %468 = vmatpush2.bf16.msra.mxu0 0
      %469 = vmatprep.subr.bf16.mxu0 0
      %470 = vmatpush2.bf16.msra.mxu0 0
      %471 = vmatprep.subr.bf16.mxu0 0
      %472 = vmatpush2.bf16.msra.mxu0 0
      %473 = vmatprep.subr.bf16.mxu0 0
      %474 = vmatpush2.bf16.msra.mxu0 0
      %475 = vmatprep.mubr.bf16.mxu0 0
      %476 = vmatmul.mubr.bf16.gmra.mxu0 %v389
      %v477 = vpop.f32.mrf.mxu0
      %v478 = vadd.f32 %v294, %v477
      %v479 = vpop.f32.mrf.mxu0
      %v480 = vpop.f32.mrf.mxu0
      %v481 = vadd.f32 %v294, %v480
      %v482 = vpop.f32.mrf.mxu0
      %483 = vmatprep.mubr.bf16.mxu0 0
      %484 = vmatmul.mubr.bf16.gmra.mxu0 %v392
      %v485 = vpop.f32.mrf.mxu0
      %v486 = vadd.f32 %v294, %v485
      %v487 = vpop.f32.mrf.mxu0
      %v488 = vpop.f32.mrf.mxu0
      %v489 = vadd.f32 %v294, %v488
      %v490 = vpop.f32.mrf.mxu0
      %491 = vmatprep.mubr.bf16.mxu0 0
      %492 = vmatmul.mubr.bf16.gmra.mxu0 %v395
      %v493 = vpop.f32.mrf.mxu0
      %v494 = vadd.f32 %v294, %v493
      %v495 = vpop.f32.mrf.mxu0
      %v496 = vpop.f32.mrf.mxu0
      %v497 = vadd.f32 %v294, %v496
      %v498 = vpop.f32.mrf.mxu0
      %499 = vmatprep.mubr.bf16.mxu0 0
      %500 = vmatmul.mubr.bf16.gmra.mxu0 %v398
      %v501 = vpop.f32.mrf.mxu0
      %v502 = vadd.f32 %v294, %v501
      %v503 = vpop.f32.mrf.mxu0
      %v504 = vpop.f32.mrf.mxu0
      %v505 = vadd.f32 %v294, %v504
      %v506 = vpop.f32.mrf.mxu0
      %507 = vmatprep.mubr.bf16.mxu0 0
      %508 = vmatmul.mubr.bf16.gmra.mxu0 %v401
      %v509 = vpop.f32.mrf.mxu0
      %v510 = vadd.f32 %v294, %v509
      %v511 = vpop.f32.mrf.mxu0
      %v512 = vpop.f32.mrf.mxu0
      %v513 = vadd.f32 %v294, %v512
      %v514 = vpop.f32.mrf.mxu0
      %515 = vmatprep.mubr.bf16.mxu0 0
      %516 = vmatmul.mubr.bf16.gmra.mxu0 %v404
      %v517 = vpop.f32.mrf.mxu0
      %v518 = vadd.f32 %v294, %v517
      %v519 = vpop.f32.mrf.mxu0
      %v520 = vpop.f32.mrf.mxu0
      %v521 = vadd.f32 %v294, %v520
      %v522 = vpop.f32.mrf.mxu0
      %523 = vmatprep.mubr.bf16.mxu0 0
      %524 = vmatmul.mubr.bf16.gmra.mxu0 %v407
      %v525 = vpop.f32.mrf.mxu0
      %v526 = vadd.f32 %v294, %v525
      %v527 = vpop.f32.mrf.mxu0
      %v528 = vpop.f32.mrf.mxu0
      %v529 = vadd.f32 %v294, %v528
      %v530 = vpop.f32.mrf.mxu0
      %531 = vmatprep.mubr.bf16.mxu0 0
      %532 = vmatmul.mubr.bf16.gmra.mxu0 %v410
      %v533 = vpop.f32.mrf.mxu0
      %v534 = vadd.f32 %v294, %v533
      %v535 = vpop.f32.mrf.mxu0
      %v536 = vpop.f32.mrf.mxu0
      %v537 = vadd.f32 %v294, %v536
      %v538 = vpop.f32.mrf.mxu0
      %539 = vmatprep.mubr.bf16.mxu0 0
      %540 = vmatmul.mubr.bf16.gmra.mxu0 %v413
      %v541 = vpop.f32.mrf.mxu0
      %v542 = vadd.f32 %v294, %v541
      %v543 = vpop.f32.mrf.mxu0
      %v544 = vpop.f32.mrf.mxu0
      %v545 = vadd.f32 %v294, %v544
      %v546 = vpop.f32.mrf.mxu0
      %547 = vmatprep.mubr.bf16.mxu0 0
      %548 = vmatmul.mubr.bf16.gmra.mxu0 %v416
      %v549 = vpop.f32.mrf.mxu0
      %v550 = vadd.f32 %v294, %v549
      %v551 = vpop.f32.mrf.mxu0
      %v552 = vpop.f32.mrf.mxu0
      %v553 = vadd.f32 %v294, %v552
      %v554 = vpop.f32.mrf.mxu0
      %555 = vmatprep.mubr.bf16.mxu0 0
      %556 = vmatmul.mubr.bf16.gmra.mxu0 %v419
      %v557 = vpop.f32.mrf.mxu0
      %v558 = vadd.f32 %v294, %v557
      %v559 = vpop.f32.mrf.mxu0
      %v560 = vpop.f32.mrf.mxu0
      %v561 = vadd.f32 %v294, %v560
      %v562 = vpop.f32.mrf.mxu0
      %563 = vmatprep.mubr.bf16.mxu0 0
      %564 = vmatmul.mubr.bf16.gmra.mxu0 %v422
      %v565 = vpop.f32.mrf.mxu0
      %v566 = vadd.f32 %v294, %v565
      %v567 = vpop.f32.mrf.mxu0
      %v568 = vpop.f32.mrf.mxu0
      %v569 = vadd.f32 %v294, %v568
      %v570 = vpop.f32.mrf.mxu0
      %571 = vmatprep.mubr.bf16.mxu0 0
      %572 = vmatmul.mubr.bf16.gmra.mxu0 %v425
      %v573 = vpop.f32.mrf.mxu0
      %v574 = vadd.f32 %v294, %v573
      %v575 = vpop.f32.mrf.mxu0
      %v576 = vpop.f32.mrf.mxu0
      %v577 = vadd.f32 %v294, %v576
      %v578 = vpop.f32.mrf.mxu0
      %579 = vmatprep.mubr.bf16.mxu0 0
      %580 = vmatmul.mubr.bf16.gmra.mxu0 %v428
      %v581 = vpop.f32.mrf.mxu0
      %v582 = vadd.f32 %v294, %v581
      %v583 = vpop.f32.mrf.mxu0
      %v584 = vpop.f32.mrf.mxu0
      %v585 = vadd.f32 %v294, %v584
      %v586 = vpop.f32.mrf.mxu0
      %587 = vmatprep.mubr.bf16.mxu0 0
      %588 = vmatmul.mubr.bf16.gmra.mxu0 %v431
      %v589 = vpop.f32.mrf.mxu0
      %v590 = vadd.f32 %v294, %v589
      %v591 = vpop.f32.mrf.mxu0
      %v592 = vpop.f32.mrf.mxu0
      %v593 = vadd.f32 %v294, %v592
      %v594 = vpop.f32.mrf.mxu0
      %595 = vmatprep.mubr.bf16.mxu0 0
      %596 = vmatmul.mubr.bf16.gmra.mxu0 %v434
      %v597 = vpop.f32.mrf.mxu0
      %v598 = vadd.f32 %v294, %v597
      %v599 = vpop.f32.mrf.mxu0
      %v600 = vpop.f32.mrf.mxu0
      %v601 = vadd.f32 %v294, %v600
      %v602 = vpop.f32.mrf.mxu0
      %603 = vdwg.mxu0
      %v604 = vmax.f32 %v478, 0.0
      %v605 = vmax.f32 %v481, 0.0
      %v606 = vmax.f32 %v486, 0.0
      %v607 = vmax.f32 %v489, 0.0
      %v608 = vmax.f32 %v494, 0.0
      %v609 = vmax.f32 %v497, 0.0
      %v610 = vmax.f32 %v502, 0.0
      %v611 = vmax.f32 %v505, 0.0
      %v612 = vmax.f32 %v510, 0.0
      %v613 = vmax.f32 %v513, 0.0
      %v614 = vmax.f32 %v518, 0.0
      %v615 = vmax.f32 %v521, 0.0
      %v616 = vmax.f32 %v526, 0.0
      %v617 = vmax.f32 %v529, 0.0
      %v618 = vmax.f32 %v534, 0.0
      %v619 = vmax.f32 %v537, 0.0
      %v620 = vmax.f32 %v542, 0.0
      %v621 = vmax.f32 %v545, 0.0
      %v622 = vmax.f32 %v550, 0.0
      %v623 = vmax.f32 %v553, 0.0
      %v624 = vmax.f32 %v558, 0.0
      %v625 = vmax.f32 %v561, 0.0
      %v626 = vmax.f32 %v566, 0.0
      %v627 = vmax.f32 %v569, 0.0
      %v628 = vmax.f32 %v574, 0.0
      %v629 = vmax.f32 %v577, 0.0
      %v630 = vmax.f32 %v582, 0.0
      %v631 = vmax.f32 %v585, 0.0
      %v632 = vmax.f32 %v590, 0.0
      %v633 = vmax.f32 %v593, 0.0
      %v634 = vmax.f32 %v598, 0.0
      %v635 = vmax.f32 %v601, 0.0
      %vm636 = vcmask 130048
      %v637 = vsel %vm636, %v604, -inf
      %v638 = vsel %vm636, %v606, -inf
      %v639 = vmax.f32 %v637, %v638
      %v640 = vsel %vm636, %v605, -inf
      %v641 = vsel %vm636, %v607, -inf
      %v642 = vmax.f32 %v640, %v641
      %v643 = vsel %vm636, %v608, -inf
      %v644 = vsel %vm636, %v610, -inf
      %v645 = vmax.f32 %v643, %v644
      %v646 = vsel %vm636, %v609, -inf
      %v647 = vsel %vm636, %v611, -inf
      %v648 = vmax.f32 %v646, %v647
      %v649 = vsel %vm636, %v612, -inf
      %v650 = vsel %vm636, %v614, -inf
      %v651 = vmax.f32 %v649, %v650
      %v652 = vsel %vm636, %v613, -inf
      %v653 = vsel %vm636, %v615, -inf
      %v654 = vmax.f32 %v652, %v653
      %v655 = vsel %vm636, %v616, -inf
      %v656 = vsel %vm636, %v618, -inf
      %v657 = vmax.f32 %v655, %v656
      %v658 = vsel %vm636, %v617, -inf
      %v659 = vsel %vm636, %v619, -inf
      %v660 = vmax.f32 %v658, %v659
      %v661 = vsel %vm636, %v620, -inf
      %v662 = vsel %vm636, %v622, -inf
      %v663 = vmax.f32 %v661, %v662
      %v664 = vsel %vm636, %v621, -inf
      %v665 = vsel %vm636, %v623, -inf
      %v666 = vmax.f32 %v664, %v665
      %v667 = vsel %vm636, %v624, -inf
      %v668 = vsel %vm636, %v626, -inf
      %v669 = vmax.f32 %v667, %v668
      %v670 = vsel %vm636, %v625, -inf
      %v671 = vsel %vm636, %v627, -inf
      %v672 = vmax.f32 %v670, %v671
      %v673 = vsel %vm636, %v628, -inf
      %v674 = vsel %vm636, %v630, -inf
      %v675 = vmax.f32 %v673, %v674
      %v676 = vsel %vm636, %v629, -inf
      %v677 = vsel %vm636, %v631, -inf
      %v678 = vmax.f32 %v676, %v677
      %v679 = vsel %vm636, %v632, -inf
      %v680 = vsel %vm636, %v634, -inf
      %v681 = vmax.f32 %v679, %v680
      %v682 = vsel %vm636, %v633, -inf
      %v683 = vsel %vm636, %v635, -inf
      %v684 = vmax.f32 %v682, %v683
      %v701 = vcombine.high %v639, %v639
      %v703 = vunpack.c.l.s4 1983009808
      %v704 = vunpack.c.0.s8 %v703
      %v705 = vlaneseq
      %v706 = vshrl.u32 %v705, 7
      %v707 = vsub.s32 %v704, %v706
      %v708 = vrot.slane %v639, %v707
      %v710 = vunpack.c.l.s4 1983009808
      %v711 = vunpack.c.0.s8 %v710
      %v712 = vlaneseq
      %v713 = vshrl.u32 %v712, 7
      %v714 = vsub.s32 %v711, %v713
      %v715 = vrot.slane %v701, %v714
      %v716 = vcombine.high %v708, %v708
      %v717 = vcombine.high %v715, %v715
      %v718 = vcombine.high %v642, %v642
      %v720 = vunpack.c.l.s4 1983009808
      %v721 = vunpack.c.0.s8 %v720
      %v722 = vlaneseq
      %v723 = vshrl.u32 %v722, 7
      %v724 = vsub.s32 %v721, %v723
      %v725 = vrot.slane %v642, %v724
      %v727 = vunpack.c.l.s4 1983009808
      %v728 = vunpack.c.0.s8 %v727
      %v729 = vlaneseq
      %v730 = vshrl.u32 %v729, 7
      %v731 = vsub.s32 %v728, %v730
      %v732 = vrot.slane %v718, %v731
      %v733 = vcombine.high %v725, %v725
      %v734 = vcombine.high %v732, %v732
      %v735 = vcombine.high %v645, %v645
      %v737 = vunpack.c.l.s4 1983009808
      %v738 = vunpack.c.0.s8 %v737
      %v739 = vlaneseq
      %v740 = vshrl.u32 %v739, 7
      %v741 = vsub.s32 %v738, %v740
      %v742 = vrot.slane %v645, %v741
      %v744 = vunpack.c.l.s4 1983009808
      %v745 = vunpack.c.0.s8 %v744
      %v746 = vlaneseq
      %v747 = vshrl.u32 %v746, 7
      %v748 = vsub.s32 %v745, %v747
      %v749 = vrot.slane %v735, %v748
      %v750 = vcombine.high %v742, %v742
      %v751 = vcombine.high %v749, %v749
      %v752 = vcombine.high %v648, %v648
      %v754 = vunpack.c.l.s4 1983009808
      %v755 = vunpack.c.0.s8 %v754
      %v756 = vlaneseq
      %v757 = vshrl.u32 %v756, 7
      %v758 = vsub.s32 %v755, %v757
      %v759 = vrot.slane %v648, %v758
      %v761 = vunpack.c.l.s4 1983009808
      %v762 = vunpack.c.0.s8 %v761
      %v763 = vlaneseq
      %v764 = vshrl.u32 %v763, 7
      %v765 = vsub.s32 %v762, %v764
      %v766 = vrot.slane %v752, %v765
      %v767 = vcombine.high %v759, %v759
      %v768 = vcombine.high %v766, %v766
      %v769 = vcombine.high %v651, %v651
      %v771 = vunpack.c.l.s4 1983009808
      %v772 = vunpack.c.0.s8 %v771
      %v773 = vlaneseq
      %v774 = vshrl.u32 %v773, 7
      %v775 = vsub.s32 %v772, %v774
      %v776 = vrot.slane %v651, %v775
      %v778 = vunpack.c.l.s4 1983009808
      %v779 = vunpack.c.0.s8 %v778
      %v780 = vlaneseq
      %v781 = vshrl.u32 %v780, 7
      %v782 = vsub.s32 %v779, %v781
      %v783 = vrot.slane %v769, %v782
      %v784 = vcombine.high %v776, %v776
      %v785 = vcombine.high %v783, %v783
      %v786 = vcombine.high %v654, %v654
      %v788 = vunpack.c.l.s4 1983009808
      %v789 = vunpack.c.0.s8 %v788
      %v790 = vlaneseq
      %v791 = vshrl.u32 %v790, 7
      %v792 = vsub.s32 %v789, %v791
      %v793 = vrot.slane %v654, %v792
      %v795 = vunpack.c.l.s4 1983009808
      %v796 = vunpack.c.0.s8 %v795
      %v797 = vlaneseq
      %v798 = vshrl.u32 %v797, 7
      %v799 = vsub.s32 %v796, %v798
      %v800 = vrot.slane %v786, %v799
      %v801 = vcombine.high %v793, %v793
      %v802 = vcombine.high %v800, %v800
      %v803 = vcombine.high %v657, %v657
      %v805 = vunpack.c.l.s4 1983009808
      %v806 = vunpack.c.0.s8 %v805
      %v807 = vlaneseq
      %v808 = vshrl.u32 %v807, 7
      %v809 = vsub.s32 %v806, %v808
      %v810 = vrot.slane %v657, %v809
      %v812 = vunpack.c.l.s4 1983009808
      %v813 = vunpack.c.0.s8 %v812
      %v814 = vlaneseq
      %v815 = vshrl.u32 %v814, 7
      %v816 = vsub.s32 %v813, %v815
      %v817 = vrot.slane %v803, %v816
      %v818 = vcombine.high %v810, %v810
      %v819 = vcombine.high %v817, %v817
      %v820 = vcombine.high %v660, %v660
      %v822 = vunpack.c.l.s4 1983009808
      %v823 = vunpack.c.0.s8 %v822
      %v824 = vlaneseq
      %v825 = vshrl.u32 %v824, 7
      %v826 = vsub.s32 %v823, %v825
      %v827 = vrot.slane %v660, %v826
      %v829 = vunpack.c.l.s4 1983009808
      %v830 = vunpack.c.0.s8 %v829
      %v831 = vlaneseq
      %v832 = vshrl.u32 %v831, 7
      %v833 = vsub.s32 %v830, %v832
      %v834 = vrot.slane %v820, %v833
      %v835 = vcombine.high %v827, %v827
      %v836 = vcombine.high %v834, %v834
      %v837 = vcombine.high %v663, %v663
      %v839 = vunpack.c.l.s4 1983009808
      %v840 = vunpack.c.0.s8 %v839
      %v841 = vlaneseq
      %v842 = vshrl.u32 %v841, 7
      %v843 = vsub.s32 %v840, %v842
      %v844 = vrot.slane %v663, %v843
      %v846 = vunpack.c.l.s4 1983009808
      %v847 = vunpack.c.0.s8 %v846
      %v848 = vlaneseq
      %v849 = vshrl.u32 %v848, 7
      %v850 = vsub.s32 %v847, %v849
      %v851 = vrot.slane %v837, %v850
      %v852 = vcombine.high %v844, %v844
      %v853 = vcombine.high %v851, %v851
      %v854 = vcombine.high %v666, %v666
      %v856 = vunpack.c.l.s4 1983009808
      %v857 = vunpack.c.0.s8 %v856
      %v858 = vlaneseq
      %v859 = vshrl.u32 %v858, 7
      %v860 = vsub.s32 %v857, %v859
      %v861 = vrot.slane %v666, %v860
      %v863 = vunpack.c.l.s4 1983009808
      %v864 = vunpack.c.0.s8 %v863
      %v865 = vlaneseq
      %v866 = vshrl.u32 %v865, 7
      %v867 = vsub.s32 %v864, %v866
      %v868 = vrot.slane %v854, %v867
      %v869 = vcombine.high %v861, %v861
      %v870 = vcombine.high %v868, %v868
      %v871 = vcombine.high %v669, %v669
      %v873 = vunpack.c.l.s4 1983009808
      %v874 = vunpack.c.0.s8 %v873
      %v875 = vlaneseq
      %v876 = vshrl.u32 %v875, 7
      %v877 = vsub.s32 %v874, %v876
      %v878 = vrot.slane %v669, %v877
      %v880 = vunpack.c.l.s4 1983009808
      %v881 = vunpack.c.0.s8 %v880
      %v882 = vlaneseq
      %v883 = vshrl.u32 %v882, 7
      %v884 = vsub.s32 %v881, %v883
      %v885 = vrot.slane %v871, %v884
      %v886 = vcombine.high %v878, %v878
      %v887 = vcombine.high %v885, %v885
      %v888 = vcombine.high %v672, %v672
      %v890 = vunpack.c.l.s4 1983009808
      %v891 = vunpack.c.0.s8 %v890
      %v892 = vlaneseq
      %v893 = vshrl.u32 %v892, 7
      %v894 = vsub.s32 %v891, %v893
      %v895 = vrot.slane %v672, %v894
      %v897 = vunpack.c.l.s4 1983009808
      %v898 = vunpack.c.0.s8 %v897
      %v899 = vlaneseq
      %v900 = vshrl.u32 %v899, 7
      %v901 = vsub.s32 %v898, %v900
      %v902 = vrot.slane %v888, %v901
      %v903 = vcombine.high %v895, %v895
      %v904 = vcombine.high %v902, %v902
      %v905 = vcombine.high %v675, %v675
      %v907 = vunpack.c.l.s4 1983009808
      %v908 = vunpack.c.0.s8 %v907
      %v909 = vlaneseq
      %v910 = vshrl.u32 %v909, 7
      %v911 = vsub.s32 %v908, %v910
      %v912 = vrot.slane %v675, %v911
      %v914 = vunpack.c.l.s4 1983009808
      %v915 = vunpack.c.0.s8 %v914
      %v916 = vlaneseq
      %v917 = vshrl.u32 %v916, 7
      %v918 = vsub.s32 %v915, %v917
      %v919 = vrot.slane %v905, %v918
      %v920 = vcombine.high %v912, %v912
      %v921 = vcombine.high %v919, %v919
      %v922 = vcombine.high %v678, %v678
      %v924 = vunpack.c.l.s4 1983009808
      %v925 = vunpack.c.0.s8 %v924
      %v926 = vlaneseq
      %v927 = vshrl.u32 %v926, 7
      %v928 = vsub.s32 %v925, %v927
      %v929 = vrot.slane %v678, %v928
      %v931 = vunpack.c.l.s4 1983009808
      %v932 = vunpack.c.0.s8 %v931
      %v933 = vlaneseq
      %v934 = vshrl.u32 %v933, 7
      %v935 = vsub.s32 %v932, %v934
      %v936 = vrot.slane %v922, %v935
      %v937 = vcombine.high %v929, %v929
      %v938 = vcombine.high %v936, %v936
      %v939 = vcombine.high %v681, %v681
      %v941 = vunpack.c.l.s4 1983009808
      %v942 = vunpack.c.0.s8 %v941
      %v943 = vlaneseq
      %v944 = vshrl.u32 %v943, 7
      %v945 = vsub.s32 %v942, %v944
      %v946 = vrot.slane %v681, %v945
      %v948 = vunpack.c.l.s4 1983009808
      %v949 = vunpack.c.0.s8 %v948
      %v950 = vlaneseq
      %v951 = vshrl.u32 %v950, 7
      %v952 = vsub.s32 %v949, %v951
      %v953 = vrot.slane %v939, %v952
      %v954 = vcombine.high %v946, %v946
      %v955 = vcombine.high %v953, %v953
      %v956 = vcombine.high %v684, %v684
      %v958 = vunpack.c.l.s4 1983009808
      %v959 = vunpack.c.0.s8 %v958
      %v960 = vlaneseq
      %v961 = vshrl.u32 %v960, 7
      %v962 = vsub.s32 %v959, %v961
      %v963 = vrot.slane %v684, %v962
      %v965 = vunpack.c.l.s4 1983009808
      %v966 = vunpack.c.0.s8 %v965
      %v967 = vlaneseq
      %v968 = vshrl.u32 %v967, 7
      %v969 = vsub.s32 %v966, %v968
      %v970 = vrot.slane %v956, %v969
      %v971 = vcombine.high %v963, %v963
      %v972 = vcombine.high %v970, %v970
      %vm1037 = vcmask 123904
      %v1038 = vsel %vm1037, %v708, -inf
      %v1039 = vrot.slane %v1038, 4
      %v1040 = vmax.f32 %v1038, %v1039
      %v1041 = vrot.slane %v1040, 2
      %v1042 = vmax.f32 %v1040, %v1041
      %v1043 = vrot.slane %v1042, 1
      %v1044 = vmax.f32 %v1042, %v1043
      %v1045 = vsel %vm1037, %v716, -inf
      %v1046 = vrot.slane %v1045, 4
      %v1047 = vmax.f32 %v1045, %v1046
      %v1048 = vrot.slane %v1047, 2
      %v1049 = vmax.f32 %v1047, %v1048
      %v1050 = vrot.slane %v1049, 1
      %v1051 = vmax.f32 %v1049, %v1050
      %v1052 = vsel %vm1037, %v715, -inf
      %v1053 = vrot.slane %v1052, 4
      %v1054 = vmax.f32 %v1052, %v1053
      %v1055 = vrot.slane %v1054, 2
      %v1056 = vmax.f32 %v1054, %v1055
      %v1057 = vrot.slane %v1056, 1
      %v1058 = vmax.f32 %v1056, %v1057
      %v1059 = vsel %vm1037, %v717, -inf
      %v1060 = vrot.slane %v1059, 4
      %v1061 = vmax.f32 %v1059, %v1060
      %v1062 = vrot.slane %v1061, 2
      %v1063 = vmax.f32 %v1061, %v1062
      %v1064 = vrot.slane %v1063, 1
      %v1065 = vmax.f32 %v1063, %v1064
      %v1066 = vsel %vm1037, %v725, -inf
      %v1067 = vrot.slane %v1066, 4
      %v1068 = vmax.f32 %v1066, %v1067
      %v1069 = vrot.slane %v1068, 2
      %v1070 = vmax.f32 %v1068, %v1069
      %v1071 = vrot.slane %v1070, 1
      %v1072 = vmax.f32 %v1070, %v1071
      %v1073 = vsel %vm1037, %v733, -inf
      %v1074 = vrot.slane %v1073, 4
      %v1075 = vmax.f32 %v1073, %v1074
      %v1076 = vrot.slane %v1075, 2
      %v1077 = vmax.f32 %v1075, %v1076
      %v1078 = vrot.slane %v1077, 1
      %v1079 = vmax.f32 %v1077, %v1078
      %v1080 = vsel %vm1037, %v732, -inf
      %v1081 = vrot.slane %v1080, 4
      %v1082 = vmax.f32 %v1080, %v1081
      %v1083 = vrot.slane %v1082, 2
      %v1084 = vmax.f32 %v1082, %v1083
      %v1085 = vrot.slane %v1084, 1
      %v1086 = vmax.f32 %v1084, %v1085
      %v1087 = vsel %vm1037, %v734, -inf
      %v1088 = vrot.slane %v1087, 4
      %v1089 = vmax.f32 %v1087, %v1088
      %v1090 = vrot.slane %v1089, 2
      %v1091 = vmax.f32 %v1089, %v1090
      %v1092 = vrot.slane %v1091, 1
      %v1093 = vmax.f32 %v1091, %v1092
      %v1094 = vsel %vm1037, %v742, -inf
      %v1095 = vrot.slane %v1094, 4
      %v1096 = vmax.f32 %v1094, %v1095
      %v1097 = vrot.slane %v1096, 2
      %v1098 = vmax.f32 %v1096, %v1097
      %v1099 = vrot.slane %v1098, 1
      %v1100 = vmax.f32 %v1098, %v1099
      %v1101 = vsel %vm1037, %v750, -inf
      %v1102 = vrot.slane %v1101, 4
      %v1103 = vmax.f32 %v1101, %v1102
      %v1104 = vrot.slane %v1103, 2
      %v1105 = vmax.f32 %v1103, %v1104
      %v1106 = vrot.slane %v1105, 1
      %v1107 = vmax.f32 %v1105, %v1106
      %v1108 = vsel %vm1037, %v749, -inf
      %v1109 = vrot.slane %v1108, 4
      %v1110 = vmax.f32 %v1108, %v1109
      %v1111 = vrot.slane %v1110, 2
      %v1112 = vmax.f32 %v1110, %v1111
      %v1113 = vrot.slane %v1112, 1
      %v1114 = vmax.f32 %v1112, %v1113
      %v1115 = vsel %vm1037, %v751, -inf
      %v1116 = vrot.slane %v1115, 4
      %v1117 = vmax.f32 %v1115, %v1116
      %v1118 = vrot.slane %v1117, 2
      %v1119 = vmax.f32 %v1117, %v1118
      %v1120 = vrot.slane %v1119, 1
      %v1121 = vmax.f32 %v1119, %v1120
      %v1122 = vsel %vm1037, %v759, -inf
      %v1123 = vrot.slane %v1122, 4
      %v1124 = vmax.f32 %v1122, %v1123
      %v1125 = vrot.slane %v1124, 2
      %v1126 = vmax.f32 %v1124, %v1125
      %v1127 = vrot.slane %v1126, 1
      %v1128 = vmax.f32 %v1126, %v1127
      %v1129 = vsel %vm1037, %v767, -inf
      %v1130 = vrot.slane %v1129, 4
      %v1131 = vmax.f32 %v1129, %v1130
      %v1132 = vrot.slane %v1131, 2
      %v1133 = vmax.f32 %v1131, %v1132
      %v1134 = vrot.slane %v1133, 1
      %v1135 = vmax.f32 %v1133, %v1134
      %v1136 = vsel %vm1037, %v766, -inf
      %v1137 = vrot.slane %v1136, 4
      %v1138 = vmax.f32 %v1136, %v1137
      %v1139 = vrot.slane %v1138, 2
      %v1140 = vmax.f32 %v1138, %v1139
      %v1141 = vrot.slane %v1140, 1
      %v1142 = vmax.f32 %v1140, %v1141
      %v1143 = vsel %vm1037, %v768, -inf
      %v1144 = vrot.slane %v1143, 4
      %v1145 = vmax.f32 %v1143, %v1144
      %v1146 = vrot.slane %v1145, 2
      %v1147 = vmax.f32 %v1145, %v1146
      %v1148 = vrot.slane %v1147, 1
      %v1149 = vmax.f32 %v1147, %v1148
      %v1150 = vsel %vm1037, %v776, -inf
      %v1151 = vrot.slane %v1150, 4
      %v1152 = vmax.f32 %v1150, %v1151
      %v1153 = vrot.slane %v1152, 2
      %v1154 = vmax.f32 %v1152, %v1153
      %v1155 = vrot.slane %v1154, 1
      %v1156 = vmax.f32 %v1154, %v1155
      %v1157 = vsel %vm1037, %v784, -inf
      %v1158 = vrot.slane %v1157, 4
      %v1159 = vmax.f32 %v1157, %v1158
      %v1160 = vrot.slane %v1159, 2
      %v1161 = vmax.f32 %v1159, %v1160
      %v1162 = vrot.slane %v1161, 1
      %v1163 = vmax.f32 %v1161, %v1162
      %v1164 = vsel %vm1037, %v783, -inf
      %v1165 = vrot.slane %v1164, 4
      %v1166 = vmax.f32 %v1164, %v1165
      %v1167 = vrot.slane %v1166, 2
      %v1168 = vmax.f32 %v1166, %v1167
      %v1169 = vrot.slane %v1168, 1
      %v1170 = vmax.f32 %v1168, %v1169
      %v1171 = vsel %vm1037, %v785, -inf
      %v1172 = vrot.slane %v1171, 4
      %v1173 = vmax.f32 %v1171, %v1172
      %v1174 = vrot.slane %v1173, 2
      %v1175 = vmax.f32 %v1173, %v1174
      %v1176 = vrot.slane %v1175, 1
      %v1177 = vmax.f32 %v1175, %v1176
      %v1178 = vsel %vm1037, %v793, -inf
      %v1179 = vrot.slane %v1178, 4
      %v1180 = vmax.f32 %v1178, %v1179
      %v1181 = vrot.slane %v1180, 2
      %v1182 = vmax.f32 %v1180, %v1181
      %v1183 = vrot.slane %v1182, 1
      %v1184 = vmax.f32 %v1182, %v1183
      %v1185 = vsel %vm1037, %v801, -inf
      %v1186 = vrot.slane %v1185, 4
      %v1187 = vmax.f32 %v1185, %v1186
      %v1188 = vrot.slane %v1187, 2
      %v1189 = vmax.f32 %v1187, %v1188
      %v1190 = vrot.slane %v1189, 1
      %v1191 = vmax.f32 %v1189, %v1190
      %v1192 = vsel %vm1037, %v800, -inf
      %v1193 = vrot.slane %v1192, 4
      %v1194 = vmax.f32 %v1192, %v1193
      %v1195 = vrot.slane %v1194, 2
      %v1196 = vmax.f32 %v1194, %v1195
      %v1197 = vrot.slane %v1196, 1
      %v1198 = vmax.f32 %v1196, %v1197
      %v1199 = vsel %vm1037, %v802, -inf
      %v1200 = vrot.slane %v1199, 4
      %v1201 = vmax.f32 %v1199, %v1200
      %v1202 = vrot.slane %v1201, 2
      %v1203 = vmax.f32 %v1201, %v1202
      %v1204 = vrot.slane %v1203, 1
      %v1205 = vmax.f32 %v1203, %v1204
      %v1206 = vsel %vm1037, %v810, -inf
      %v1207 = vrot.slane %v1206, 4
      %v1208 = vmax.f32 %v1206, %v1207
      %v1209 = vrot.slane %v1208, 2
      %v1210 = vmax.f32 %v1208, %v1209
      %v1211 = vrot.slane %v1210, 1
      %v1212 = vmax.f32 %v1210, %v1211
      %v1213 = vsel %vm1037, %v818, -inf
      %v1214 = vrot.slane %v1213, 4
      %v1215 = vmax.f32 %v1213, %v1214
      %v1216 = vrot.slane %v1215, 2
      %v1217 = vmax.f32 %v1215, %v1216
      %v1218 = vrot.slane %v1217, 1
      %v1219 = vmax.f32 %v1217, %v1218
      %v1220 = vsel %vm1037, %v817, -inf
      %v1221 = vrot.slane %v1220, 4
      %v1222 = vmax.f32 %v1220, %v1221
      %v1223 = vrot.slane %v1222, 2
      %v1224 = vmax.f32 %v1222, %v1223
      %v1225 = vrot.slane %v1224, 1
      %v1226 = vmax.f32 %v1224, %v1225
      %v1227 = vsel %vm1037, %v819, -inf
      %v1228 = vrot.slane %v1227, 4
      %v1229 = vmax.f32 %v1227, %v1228
      %v1230 = vrot.slane %v1229, 2
      %v1231 = vmax.f32 %v1229, %v1230
      %v1232 = vrot.slane %v1231, 1
      %v1233 = vmax.f32 %v1231, %v1232
      %v1234 = vsel %vm1037, %v827, -inf
      %v1235 = vrot.slane %v1234, 4
      %v1236 = vmax.f32 %v1234, %v1235
      %v1237 = vrot.slane %v1236, 2
      %v1238 = vmax.f32 %v1236, %v1237
      %v1239 = vrot.slane %v1238, 1
      %v1240 = vmax.f32 %v1238, %v1239
      %v1241 = vsel %vm1037, %v835, -inf
      %v1242 = vrot.slane %v1241, 4
      %v1243 = vmax.f32 %v1241, %v1242
      %v1244 = vrot.slane %v1243, 2
      %v1245 = vmax.f32 %v1243, %v1244
      %v1246 = vrot.slane %v1245, 1
      %v1247 = vmax.f32 %v1245, %v1246
      %v1248 = vsel %vm1037, %v834, -inf
      %v1249 = vrot.slane %v1248, 4
      %v1250 = vmax.f32 %v1248, %v1249
      %v1251 = vrot.slane %v1250, 2
      %v1252 = vmax.f32 %v1250, %v1251
      %v1253 = vrot.slane %v1252, 1
      %v1254 = vmax.f32 %v1252, %v1253
      %v1255 = vsel %vm1037, %v836, -inf
      %v1256 = vrot.slane %v1255, 4
      %v1257 = vmax.f32 %v1255, %v1256
      %v1258 = vrot.slane %v1257, 2
      %v1259 = vmax.f32 %v1257, %v1258
      %v1260 = vrot.slane %v1259, 1
      %v1261 = vmax.f32 %v1259, %v1260
      %v1262 = vsel %vm1037, %v844, -inf
      %v1263 = vrot.slane %v1262, 4
      %v1264 = vmax.f32 %v1262, %v1263
      %v1265 = vrot.slane %v1264, 2
      %v1266 = vmax.f32 %v1264, %v1265
      %v1267 = vrot.slane %v1266, 1
      %v1268 = vmax.f32 %v1266, %v1267
      %v1269 = vsel %vm1037, %v852, -inf
      %v1270 = vrot.slane %v1269, 4
      %v1271 = vmax.f32 %v1269, %v1270
      %v1272 = vrot.slane %v1271, 2
      %v1273 = vmax.f32 %v1271, %v1272
      %v1274 = vrot.slane %v1273, 1
      %v1275 = vmax.f32 %v1273, %v1274
      %v1276 = vsel %vm1037, %v851, -inf
      %v1277 = vrot.slane %v1276, 4
      %v1278 = vmax.f32 %v1276, %v1277
      %v1279 = vrot.slane %v1278, 2
      %v1280 = vmax.f32 %v1278, %v1279
      %v1281 = vrot.slane %v1280, 1
      %v1282 = vmax.f32 %v1280, %v1281
      %v1283 = vsel %vm1037, %v853, -inf
      %v1284 = vrot.slane %v1283, 4
      %v1285 = vmax.f32 %v1283, %v1284
      %v1286 = vrot.slane %v1285, 2
      %v1287 = vmax.f32 %v1285, %v1286
      %v1288 = vrot.slane %v1287, 1
      %v1289 = vmax.f32 %v1287, %v1288
      %v1290 = vsel %vm1037, %v861, -inf
      %v1291 = vrot.slane %v1290, 4
      %v1292 = vmax.f32 %v1290, %v1291
      %v1293 = vrot.slane %v1292, 2
      %v1294 = vmax.f32 %v1292, %v1293
      %v1295 = vrot.slane %v1294, 1
      %v1296 = vmax.f32 %v1294, %v1295
      %v1297 = vsel %vm1037, %v869, -inf
      %v1298 = vrot.slane %v1297, 4
      %v1299 = vmax.f32 %v1297, %v1298
      %v1300 = vrot.slane %v1299, 2
      %v1301 = vmax.f32 %v1299, %v1300
      %v1302 = vrot.slane %v1301, 1
      %v1303 = vmax.f32 %v1301, %v1302
      %v1304 = vsel %vm1037, %v868, -inf
      %v1305 = vrot.slane %v1304, 4
      %v1306 = vmax.f32 %v1304, %v1305
      %v1307 = vrot.slane %v1306, 2
      %v1308 = vmax.f32 %v1306, %v1307
      %v1309 = vrot.slane %v1308, 1
      %v1310 = vmax.f32 %v1308, %v1309
      %v1311 = vsel %vm1037, %v870, -inf
      %v1312 = vrot.slane %v1311, 4
      %v1313 = vmax.f32 %v1311, %v1312
      %v1314 = vrot.slane %v1313, 2
      %v1315 = vmax.f32 %v1313, %v1314
      %v1316 = vrot.slane %v1315, 1
      %v1317 = vmax.f32 %v1315, %v1316
      %v1318 = vsel %vm1037, %v878, -inf
      %v1319 = vrot.slane %v1318, 4
      %v1320 = vmax.f32 %v1318, %v1319
      %v1321 = vrot.slane %v1320, 2
      %v1322 = vmax.f32 %v1320, %v1321
      %v1323 = vrot.slane %v1322, 1
      %v1324 = vmax.f32 %v1322, %v1323
      %v1325 = vsel %vm1037, %v886, -inf
      %v1326 = vrot.slane %v1325, 4
      %v1327 = vmax.f32 %v1325, %v1326
      %v1328 = vrot.slane %v1327, 2
      %v1329 = vmax.f32 %v1327, %v1328
      %v1330 = vrot.slane %v1329, 1
      %v1331 = vmax.f32 %v1329, %v1330
      %v1332 = vsel %vm1037, %v885, -inf
      %v1333 = vrot.slane %v1332, 4
      %v1334 = vmax.f32 %v1332, %v1333
      %v1335 = vrot.slane %v1334, 2
      %v1336 = vmax.f32 %v1334, %v1335
      %v1337 = vrot.slane %v1336, 1
      %v1338 = vmax.f32 %v1336, %v1337
      %v1339 = vsel %vm1037, %v887, -inf
      %v1340 = vrot.slane %v1339, 4
      %v1341 = vmax.f32 %v1339, %v1340
      %v1342 = vrot.slane %v1341, 2
      %v1343 = vmax.f32 %v1341, %v1342
      %v1344 = vrot.slane %v1343, 1
      %v1345 = vmax.f32 %v1343, %v1344
      %v1346 = vsel %vm1037, %v895, -inf
      %v1347 = vrot.slane %v1346, 4
      %v1348 = vmax.f32 %v1346, %v1347
      %v1349 = vrot.slane %v1348, 2
      %v1350 = vmax.f32 %v1348, %v1349
      %v1351 = vrot.slane %v1350, 1
      %v1352 = vmax.f32 %v1350, %v1351
      %v1353 = vsel %vm1037, %v903, -inf
      %v1354 = vrot.slane %v1353, 4
      %v1355 = vmax.f32 %v1353, %v1354
      %v1356 = vrot.slane %v1355, 2
      %v1357 = vmax.f32 %v1355, %v1356
      %v1358 = vrot.slane %v1357, 1
      %v1359 = vmax.f32 %v1357, %v1358
      %v1360 = vsel %vm1037, %v902, -inf
      %v1361 = vrot.slane %v1360, 4
      %v1362 = vmax.f32 %v1360, %v1361
      %v1363 = vrot.slane %v1362, 2
      %v1364 = vmax.f32 %v1362, %v1363
      %v1365 = vrot.slane %v1364, 1
      %v1366 = vmax.f32 %v1364, %v1365
      %v1367 = vsel %vm1037, %v904, -inf
      %v1368 = vrot.slane %v1367, 4
      %v1369 = vmax.f32 %v1367, %v1368
      %v1370 = vrot.slane %v1369, 2
      %v1371 = vmax.f32 %v1369, %v1370
      %v1372 = vrot.slane %v1371, 1
      %v1373 = vmax.f32 %v1371, %v1372
      %v1374 = vsel %vm1037, %v912, -inf
      %v1375 = vrot.slane %v1374, 4
      %v1376 = vmax.f32 %v1374, %v1375
      %v1377 = vrot.slane %v1376, 2
      %v1378 = vmax.f32 %v1376, %v1377
      %v1379 = vrot.slane %v1378, 1
      %v1380 = vmax.f32 %v1378, %v1379
      %v1381 = vsel %vm1037, %v920, -inf
      %v1382 = vrot.slane %v1381, 4
      %v1383 = vmax.f32 %v1381, %v1382
      %v1384 = vrot.slane %v1383, 2
      %v1385 = vmax.f32 %v1383, %v1384
      %v1386 = vrot.slane %v1385, 1
      %v1387 = vmax.f32 %v1385, %v1386
      %v1388 = vsel %vm1037, %v919, -inf
      %v1389 = vrot.slane %v1388, 4
      %v1390 = vmax.f32 %v1388, %v1389
      %v1391 = vrot.slane %v1390, 2
      %v1392 = vmax.f32 %v1390, %v1391
      %v1393 = vrot.slane %v1392, 1
      %v1394 = vmax.f32 %v1392, %v1393
      %v1395 = vsel %vm1037, %v921, -inf
      %v1396 = vrot.slane %v1395, 4
      %v1397 = vmax.f32 %v1395, %v1396
      %v1398 = vrot.slane %v1397, 2
      %v1399 = vmax.f32 %v1397, %v1398
      %v1400 = vrot.slane %v1399, 1
      %v1401 = vmax.f32 %v1399, %v1400
      %v1402 = vsel %vm1037, %v929, -inf
      %v1403 = vrot.slane %v1402, 4
      %v1404 = vmax.f32 %v1402, %v1403
      %v1405 = vrot.slane %v1404, 2
      %v1406 = vmax.f32 %v1404, %v1405
      %v1407 = vrot.slane %v1406, 1
      %v1408 = vmax.f32 %v1406, %v1407
      %v1409 = vsel %vm1037, %v937, -inf
      %v1410 = vrot.slane %v1409, 4
      %v1411 = vmax.f32 %v1409, %v1410
      %v1412 = vrot.slane %v1411, 2
      %v1413 = vmax.f32 %v1411, %v1412
      %v1414 = vrot.slane %v1413, 1
      %v1415 = vmax.f32 %v1413, %v1414
      %v1416 = vsel %vm1037, %v936, -inf
      %v1417 = vrot.slane %v1416, 4
      %v1418 = vmax.f32 %v1416, %v1417
      %v1419 = vrot.slane %v1418, 2
      %v1420 = vmax.f32 %v1418, %v1419
      %v1421 = vrot.slane %v1420, 1
      %v1422 = vmax.f32 %v1420, %v1421
      %v1423 = vsel %vm1037, %v938, -inf
      %v1424 = vrot.slane %v1423, 4
      %v1425 = vmax.f32 %v1423, %v1424
      %v1426 = vrot.slane %v1425, 2
      %v1427 = vmax.f32 %v1425, %v1426
      %v1428 = vrot.slane %v1427, 1
      %v1429 = vmax.f32 %v1427, %v1428
      %v1430 = vsel %vm1037, %v946, -inf
      %v1431 = vrot.slane %v1430, 4
      %v1432 = vmax.f32 %v1430, %v1431
      %v1433 = vrot.slane %v1432, 2
      %v1434 = vmax.f32 %v1432, %v1433
      %v1435 = vrot.slane %v1434, 1
      %v1436 = vmax.f32 %v1434, %v1435
      %v1437 = vsel %vm1037, %v954, -inf
      %v1438 = vrot.slane %v1437, 4
      %v1439 = vmax.f32 %v1437, %v1438
      %v1440 = vrot.slane %v1439, 2
      %v1441 = vmax.f32 %v1439, %v1440
      %v1442 = vrot.slane %v1441, 1
      %v1443 = vmax.f32 %v1441, %v1442
      %v1444 = vsel %vm1037, %v953, -inf
      %v1445 = vrot.slane %v1444, 4
      %v1446 = vmax.f32 %v1444, %v1445
      %v1447 = vrot.slane %v1446, 2
      %v1448 = vmax.f32 %v1446, %v1447
      %v1449 = vrot.slane %v1448, 1
      %v1450 = vmax.f32 %v1448, %v1449
      %v1451 = vsel %vm1037, %v955, -inf
      %v1452 = vrot.slane %v1451, 4
      %v1453 = vmax.f32 %v1451, %v1452
      %v1454 = vrot.slane %v1453, 2
      %v1455 = vmax.f32 %v1453, %v1454
      %v1456 = vrot.slane %v1455, 1
      %v1457 = vmax.f32 %v1455, %v1456
      %v1458 = vsel %vm1037, %v963, -inf
      %v1459 = vrot.slane %v1458, 4
      %v1460 = vmax.f32 %v1458, %v1459
      %v1461 = vrot.slane %v1460, 2
      %v1462 = vmax.f32 %v1460, %v1461
      %v1463 = vrot.slane %v1462, 1
      %v1464 = vmax.f32 %v1462, %v1463
      %v1465 = vsel %vm1037, %v971, -inf
      %v1466 = vrot.slane %v1465, 4
      %v1467 = vmax.f32 %v1465, %v1466
      %v1468 = vrot.slane %v1467, 2
      %v1469 = vmax.f32 %v1467, %v1468
      %v1470 = vrot.slane %v1469, 1
      %v1471 = vmax.f32 %v1469, %v1470
      %v1472 = vsel %vm1037, %v970, -inf
      %v1473 = vrot.slane %v1472, 4
      %v1474 = vmax.f32 %v1472, %v1473
      %v1475 = vrot.slane %v1474, 2
      %v1476 = vmax.f32 %v1474, %v1475
      %v1477 = vrot.slane %v1476, 1
      %v1478 = vmax.f32 %v1476, %v1477
      %v1479 = vsel %vm1037, %v972, -inf
      %v1480 = vrot.slane %v1479, 4
      %v1481 = vmax.f32 %v1479, %v1480
      %v1482 = vrot.slane %v1481, 2
      %v1483 = vmax.f32 %v1481, %v1482
      %v1484 = vrot.slane %v1483, 1
      %v1485 = vmax.f32 %v1483, %v1484
      %1486 = vst.msk [vmem:[#allocation2] sm:$0xff] %vm636, 0.0
      %1487 = vst.msk [vmem:[#allocation2 + $0x8] sm:$0x3] %vm1037, 0.0
      %s1488 = scalar_lea.vmem [#allocation2], 144
      %1489 = vst.msk [vmem:[%s1488] sm:$0xff] %vm636, 0.0
      %1490 = vst.msk [vmem:[%s1488 + $0x8] sm:$0x3] %vm1037, 0.0
      %vm1491 = vcmask 122880
      %1492 = vst.msk [vmem:[#allocation2] sm:$0x1] %vm1491, 0.0
      %1493 = vst.msk [vmem:[#allocation2 + $0x10] sm:$0x1] %vm1491, 0.0
      %1494 = vst.msk [vmem:[#allocation2 + $0x20] sm:$0x1] %vm1491, 0.0
      %1495 = vst.msk [vmem:[#allocation2 + $0x30] sm:$0x1] %vm1491, 0.0
      %1496 = vst.msk [vmem:[#allocation2 + $0x40] sm:$0x1] %vm1491, 0.0
      %1497 = vst.msk [vmem:[#allocation2 + $0x50] sm:$0x1] %vm1491, 0.0
      %1498 = vst.msk [vmem:[#allocation2 + $0x60] sm:$0x1] %vm1491, 0.0
      %1499 = vst.msk [vmem:[#allocation2 + $0x70] sm:$0x1] %vm1491, 0.0
      %1500 = vst.msk [vmem:[#allocation2 + $0x80] sm:$0x1] %vm1491, 0.0
      %1501 = vst.msk [vmem:[#allocation2 + $0x90] sm:$0x1] %vm1491, 0.0
      %1502 = vst.msk [vmem:[#allocation2 + $0x9] sm:$0x1] %vm1491, 0.0
      %1503 = vst.msk [vmem:[#allocation2 + $0x19] sm:$0x1] %vm1491, 0.0
      %1504 = vst.msk [vmem:[#allocation2 + $0x29] sm:$0x1] %vm1491, 0.0
      %1505 = vst.msk [vmem:[#allocation2 + $0x39] sm:$0x1] %vm1491, 0.0
      %1506 = vst.msk [vmem:[#allocation2 + $0x49] sm:$0x1] %vm1491, 0.0
      %1507 = vst.msk [vmem:[#allocation2 + $0x59] sm:$0x1] %vm1491, 0.0
      %1508 = vst.msk [vmem:[#allocation2 + $0x69] sm:$0x1] %vm1491, 0.0
      %1509 = vst.msk [vmem:[#allocation2 + $0x79] sm:$0x1] %vm1491, 0.0
      %1510 = vst.msk [vmem:[#allocation2 + $0x89] sm:$0x1] %vm1491, 0.0
      %1511 = vst.msk [vmem:[#allocation2 + $0x99] sm:$0x1] %vm1491, 0.0
      %vm1576 = vcmask 1041409
      %v1577 = vsel %vm1576, %v1051, %v1044
      %vm1578 = vcmask 1042434
      %v1579 = vsel %vm1578, %v1058, %v1577
      %vm1580 = vcmask 1043459
      %v1581 = vsel %vm1580, %v1065, %v1579
      %vm1582 = vcmask 1044484
      %v1583 = vsel %vm1582, %v1072, %v1581
      %vm1584 = vcmask 1045509
      %v1585 = vsel %vm1584, %v1079, %v1583
      %vm1586 = vcmask 1046534
      %v1587 = vsel %vm1586, %v1086, %v1585
      %vm1588 = vcmask 1047559
      %v1589 = vsel %vm1588, %v1093, %v1587
      %v1590 = vsel %vm1576, %v1107, %v1100
      %v1591 = vsel %vm1578, %v1114, %v1590
      %v1592 = vsel %vm1580, %v1121, %v1591
      %v1593 = vsel %vm1582, %v1128, %v1592
      %v1594 = vsel %vm1584, %v1135, %v1593
      %v1595 = vsel %vm1586, %v1142, %v1594
      %v1596 = vsel %vm1588, %v1149, %v1595
      %v1597 = vsel %vm1576, %v1163, %v1156
      %v1598 = vsel %vm1578, %v1170, %v1597
      %v1599 = vsel %vm1580, %v1177, %v1598
      %v1600 = vsel %vm1582, %v1184, %v1599
      %v1601 = vsel %vm1584, %v1191, %v1600
      %v1602 = vsel %vm1586, %v1198, %v1601
      %v1603 = vsel %vm1588, %v1205, %v1602
      %v1604 = vsel %vm1576, %v1219, %v1212
      %v1605 = vsel %vm1578, %v1226, %v1604
      %v1606 = vsel %vm1580, %v1233, %v1605
      %v1607 = vsel %vm1582, %v1240, %v1606
      %v1608 = vsel %vm1584, %v1247, %v1607
      %v1609 = vsel %vm1586, %v1254, %v1608
      %v1610 = vsel %vm1588, %v1261, %v1609
      %v1611 = vsel %vm1576, %v1275, %v1268
      %v1612 = vsel %vm1578, %v1282, %v1611
      %v1613 = vsel %vm1580, %v1289, %v1612
      %v1614 = vsel %vm1582, %v1296, %v1613
      %v1615 = vsel %vm1584, %v1303, %v1614
      %v1616 = vsel %vm1586, %v1310, %v1615
      %v1617 = vsel %vm1588, %v1317, %v1616
      %v1618 = vsel %vm1576, %v1331, %v1324
      %v1619 = vsel %vm1578, %v1338, %v1618
      %v1620 = vsel %vm1580, %v1345, %v1619
      %v1621 = vsel %vm1582, %v1352, %v1620
      %v1622 = vsel %vm1584, %v1359, %v1621
      %v1623 = vsel %vm1586, %v1366, %v1622
      %v1624 = vsel %vm1588, %v1373, %v1623
      %v1625 = vsel %vm1576, %v1387, %v1380
      %v1626 = vsel %vm1578, %v1394, %v1625
      %v1627 = vsel %vm1580, %v1401, %v1626
      %v1628 = vsel %vm1582, %v1408, %v1627
      %v1629 = vsel %vm1584, %v1415, %v1628
      %v1630 = vsel %vm1586, %v1422, %v1629
      %v1631 = vsel %vm1588, %v1429, %v1630
      %v1632 = vsel %vm1576, %v1443, %v1436
      %v1633 = vsel %vm1578, %v1450, %v1632
      %v1634 = vsel %vm1580, %v1457, %v1633
      %v1635 = vsel %vm1582, %v1464, %v1634
      %v1636 = vsel %vm1584, %v1471, %v1635
      %v1637 = vsel %vm1586, %v1478, %v1636
      %v1638 = vsel %vm1588, %v1485, %v1637
      %s1647 = scalar_lea.vmem [#allocation2], 16
      %1648 = vst.msk [vmem:[%s1647 + $0x1] sm:$0xff] %vm636, %v1589
      %1649 = vst.msk [vmem:[%s1647 + $0x11] sm:$0xff] %vm636, %v1596
      %1650 = vst.msk [vmem:[%s1647 + $0x21] sm:$0xff] %vm636, %v1603
      %1651 = vst.msk [vmem:[%s1647 + $0x31] sm:$0xff] %vm636, %v1610
      %1652 = vst.msk [vmem:[%s1647 + $0x41] sm:$0xff] %vm636, %v1617
      %1653 = vst.msk [vmem:[%s1647 + $0x51] sm:$0xff] %vm636, %v1624
      %1654 = vst.msk [vmem:[%s1647 + $0x61] sm:$0xff] %vm636, %v1631
      %1655 = vst.msk [vmem:[%s1647 + $0x71] sm:$0xff] %vm636, %v1638
      %v1656 = vld [vmem:[#allocation2] sm:$0xff]
      %v1657 = vld [vmem:[#allocation2 + $0x10] sm:$0xff]
      %v1658 = vld [vmem:[#allocation2 + $0x20] sm:$0xff]
      %v1659 = vld [vmem:[#allocation2 + $0x30] sm:$0xff]
      %v1660 = vld [vmem:[#allocation2 + $0x40] sm:$0xff]
      %v1661 = vld [vmem:[#allocation2 + $0x50] sm:$0xff]
      %v1662 = vld [vmem:[#allocation2 + $0x60] sm:$0xff]
      %v1663 = vld [vmem:[#allocation2 + $0x70] sm:$0xff]
      %v1664 = vpack.c.bf16 %v1657, %v1656
      %v1665 = vpack.c.bf16 %v1659, %v1658
      %v1666 = vpack.c.bf16 %v1661, %v1660
      %v1667 = vpack.c.bf16 %v1663, %v1662
      %v1672 = vunpack.c.l.b16 %v1664
      %v1673 = vunpack.c.h.b16 %v1664
      %v1674 = vunpack.c.l.b16 %v1665
      %v1675 = vunpack.c.h.b16 %v1665
      %v1676 = vunpack.c.l.b16 %v1666
      %v1677 = vunpack.c.h.b16 %v1666
      %v1678 = vunpack.c.l.b16 %v1667
      %v1679 = vunpack.c.h.b16 %v1667
      %v1680 = vpack.c.b16 %v1672, %v1672
      %v1681 = vpack.c.b16 %v1673, %v1673
      %v1682 = vpack.c.b16 %v1674, %v1674
      %v1683 = vpack.c.b16 %v1675, %v1675
      %v1684 = vpack.c.b16 %v1676, %v1676
      %v1685 = vpack.c.b16 %v1677, %v1677
      %v1686 = vpack.c.b16 %v1678, %v1678
      %v1687 = vpack.c.b16 %v1679, %v1679
      %vm1696 = vcmask 125952
      %1697 = vst.msk [vmem:[#allocation3] sm:$0xf] %vm1696, %v1680
      %1698 = vst.msk [vmem:[#allocation3 + $0x8] sm:$0xf] %vm1696, %v1681
      %1699 = vst.msk [vmem:[#allocation3 + $0x10] sm:$0xf] %vm1696, %v1682
      %1700 = vst.msk [vmem:[#allocation3 + $0x18] sm:$0xf] %vm1696, %v1683
      %1701 = vst.msk [vmem:[#allocation3 + $0x20] sm:$0xf] %vm1696, %v1684
      %1702 = vst.msk [vmem:[#allocation3 + $0x28] sm:$0xf] %vm1696, %v1685
      %1703 = vst.msk [vmem:[#allocation3 + $0x30] sm:$0xf] %vm1696, %v1686
      %1704 = vst.msk [vmem:[#allocation3 + $0x38] sm:$0xf] %vm1696, %v1687
      %v1705 = vld [vmem:[#allocation2 + $0x1] sm:$0xff]
      %v1706 = vld [vmem:[#allocation2 + $0x11] sm:$0xff]
      %v1707 = vld [vmem:[#allocation2 + $0x21] sm:$0xff]
      %v1708 = vld [vmem:[#allocation2 + $0x31] sm:$0xff]
      %v1709 = vld [vmem:[#allocation2 + $0x41] sm:$0xff]
      %v1710 = vld [vmem:[#allocation2 + $0x51] sm:$0xff]
      %v1711 = vld [vmem:[#allocation2 + $0x61] sm:$0xff]
      %v1712 = vld [vmem:[#allocation2 + $0x71] sm:$0xff]
      %v1713 = vpack.c.bf16 %v1706, %v1705
      %v1714 = vpack.c.bf16 %v1708, %v1707
      %v1715 = vpack.c.bf16 %v1710, %v1709
      %v1716 = vpack.c.bf16 %v1712, %v1711
      %v1721 = vunpack.c.l.b16 %v1713
      %v1722 = vunpack.c.h.b16 %v1713
      %v1723 = vunpack.c.l.b16 %v1714
      %v1724 = vunpack.c.h.b16 %v1714
      %v1725 = vunpack.c.l.b16 %v1715
      %v1726 = vunpack.c.h.b16 %v1715
      %v1727 = vunpack.c.l.b16 %v1716
      %v1728 = vunpack.c.h.b16 %v1716
      %v1729 = vpack.c.b16 %v1721, %v1721
      %v1730 = vpack.c.b16 %v1722, %v1722
      %v1731 = vpack.c.b16 %v1723, %v1723
      %v1732 = vpack.c.b16 %v1724, %v1724
      %v1733 = vpack.c.b16 %v1725, %v1725
      %v1734 = vpack.c.b16 %v1726, %v1726
      %v1735 = vpack.c.b16 %v1727, %v1727
      %v1736 = vpack.c.b16 %v1728, %v1728
      %1737 = vrot.lane.b32.xlu0 %v1729, 16
      %v1738 = vpop.permute.xlu0 %1737
      %1739 = vrot.lane.b32.xlu0 %v1730, 16
      %v1740 = vpop.permute.xlu0 %1739
      %1741 = vrot.lane.b32.xlu0 %v1731, 16
      %v1742 = vpop.permute.xlu0 %1741
      %1743 = vrot.lane.b32.xlu0 %v1732, 16
      %v1744 = vpop.permute.xlu0 %1743
      %1745 = vrot.lane.b32.xlu0 %v1733, 16
      %v1746 = vpop.permute.xlu0 %1745
      %1747 = vrot.lane.b32.xlu0 %v1734, 16
      %v1748 = vpop.permute.xlu0 %1747
      %1749 = vrot.lane.b32.xlu0 %v1735, 16
      %v1750 = vpop.permute.xlu0 %1749
      %1751 = vrot.lane.b32.xlu0 %v1736, 16
      %v1752 = vpop.permute.xlu0 %1751
      %vm1761 = vcmask 257152
      %1762 = vst.msk [vmem:[#allocation3] sm:$0xf] %vm1761, %v1738
      %1763 = vst.msk [vmem:[#allocation3 + $0x8] sm:$0xf] %vm1761, %v1740
      %1764 = vst.msk [vmem:[#allocation3 + $0x10] sm:$0xf] %vm1761, %v1742
      %1765 = vst.msk [vmem:[#allocation3 + $0x18] sm:$0xf] %vm1761, %v1744
      %1766 = vst.msk [vmem:[#allocation3 + $0x20] sm:$0xf] %vm1761, %v1746
      %1767 = vst.msk [vmem:[#allocation3 + $0x28] sm:$0xf] %vm1761, %v1748
      %1768 = vst.msk [vmem:[#allocation3 + $0x30] sm:$0xf] %vm1761, %v1750
      %1769 = vst.msk [vmem:[#allocation3 + $0x38] sm:$0xf] %vm1761, %v1752
      %v1770 = vld [vmem:[#allocation2 + $0x2] sm:$0xff]
      %v1771 = vld [vmem:[#allocation2 + $0x12] sm:$0xff]
      %v1772 = vld [vmem:[#allocation2 + $0x22] sm:$0xff]
      %v1773 = vld [vmem:[#allocation2 + $0x32] sm:$0xff]
      %v1774 = vld [vmem:[#allocation2 + $0x42] sm:$0xff]
      %v1775 = vld [vmem:[#allocation2 + $0x52] sm:$0xff]
      %v1776 = vld [vmem:[#allocation2 + $0x62] sm:$0xff]
      %v1777 = vld [vmem:[#allocation2 + $0x72] sm:$0xff]
      %v1778 = vpack.c.bf16 %v1771, %v1770
      %v1779 = vpack.c.bf16 %v1773, %v1772
      %v1780 = vpack.c.bf16 %v1775, %v1774
      %v1781 = vpack.c.bf16 %v1777, %v1776
      %v1786 = vunpack.c.l.b16 %v1778
      %v1787 = vunpack.c.h.b16 %v1778
      %v1788 = vunpack.c.l.b16 %v1779
      %v1789 = vunpack.c.h.b16 %v1779
      %v1790 = vunpack.c.l.b16 %v1780
      %v1791 = vunpack.c.h.b16 %v1780
      %v1792 = vunpack.c.l.b16 %v1781
      %v1793 = vunpack.c.h.b16 %v1781
      %v1794 = vpack.c.b16 %v1786, %v1786
      %v1795 = vpack.c.b16 %v1787, %v1787
      %v1796 = vpack.c.b16 %v1788, %v1788
      %v1797 = vpack.c.b16 %v1789, %v1789
      %v1798 = vpack.c.b16 %v1790, %v1790
      %v1799 = vpack.c.b16 %v1791, %v1791
      %v1800 = vpack.c.b16 %v1792, %v1792
      %v1801 = vpack.c.b16 %v1793, %v1793
      %1802 = vrot.lane.b32.xlu0 %v1794, 32
      %v1803 = vpop.permute.xlu0 %1802
      %1804 = vrot.lane.b32.xlu0 %v1795, 32
      %v1805 = vpop.permute.xlu0 %1804
      %1806 = vrot.lane.b32.xlu0 %v1796, 32
      %v1807 = vpop.permute.xlu0 %1806
      %1808 = vrot.lane.b32.xlu0 %v1797, 32
      %v1809 = vpop.permute.xlu0 %1808
      %1810 = vrot.lane.b32.xlu0 %v1798, 32
      %v1811 = vpop.permute.xlu0 %1810
      %1812 = vrot.lane.b32.xlu0 %v1799, 32
      %v1813 = vpop.permute.xlu0 %1812
      %1814 = vrot.lane.b32.xlu0 %v1800, 32
      %v1815 = vpop.permute.xlu0 %1814
      %1816 = vrot.lane.b32.xlu0 %v1801, 32
      %v1817 = vpop.permute.xlu0 %1816
      %vm1826 = vcmask 388352
      %1827 = vst.msk [vmem:[#allocation3] sm:$0xf] %vm1826, %v1803
      %1828 = vst.msk [vmem:[#allocation3 + $0x8] sm:$0xf] %vm1826, %v1805
      %1829 = vst.msk [vmem:[#allocation3 + $0x10] sm:$0xf] %vm1826, %v1807
      %1830 = vst.msk [vmem:[#allocation3 + $0x18] sm:$0xf] %vm1826, %v1809
      %1831 = vst.msk [vmem:[#allocation3 + $0x20] sm:$0xf] %vm1826, %v1811
      %1832 = vst.msk [vmem:[#allocation3 + $0x28] sm:$0xf] %vm1826, %v1813
      %1833 = vst.msk [vmem:[#allocation3 + $0x30] sm:$0xf] %vm1826, %v1815
      %1834 = vst.msk [vmem:[#allocation3 + $0x38] sm:$0xf] %vm1826, %v1817
      %v1835 = vld [vmem:[%s1647] sm:$0xff]
      %v1836 = vld [vmem:[%s1647 + $0x10] sm:$0xff]
      %v1837 = vld [vmem:[%s1647 + $0x20] sm:$0xff]
      %v1838 = vld [vmem:[%s1647 + $0x30] sm:$0xff]
      %v1839 = vld [vmem:[%s1647 + $0x40] sm:$0xff]
      %v1840 = vld [vmem:[%s1647 + $0x50] sm:$0xff]
      %v1841 = vld [vmem:[%s1647 + $0x60] sm:$0xff]
      %v1842 = vld [vmem:[%s1647 + $0x70] sm:$0xff]
      %v1843 = vpack.c.bf16 %v1836, %v1835
      %v1844 = vpack.c.bf16 %v1838, %v1837
      %v1845 = vpack.c.bf16 %v1840, %v1839
      %v1846 = vpack.c.bf16 %v1842, %v1841
      %v1851 = vunpack.c.l.b16 %v1843
      %v1852 = vunpack.c.h.b16 %v1843
      %v1853 = vunpack.c.l.b16 %v1844
      %v1854 = vunpack.c.h.b16 %v1844
      %v1855 = vunpack.c.l.b16 %v1845
      %v1856 = vunpack.c.h.b16 %v1845
      %v1857 = vunpack.c.l.b16 %v1846
      %v1858 = vunpack.c.h.b16 %v1846
      %v1859 = vpack.c.b16 %v1851, %v1851
      %v1860 = vpack.c.b16 %v1852, %v1852
      %v1861 = vpack.c.b16 %v1853, %v1853
      %v1862 = vpack.c.b16 %v1854, %v1854
      %v1863 = vpack.c.b16 %v1855, %v1855
      %v1864 = vpack.c.b16 %v1856, %v1856
      %v1865 = vpack.c.b16 %v1857, %v1857
      %v1866 = vpack.c.b16 %v1858, %v1858
      %1867 = vrot.lane.b32.xlu0 %v1859, 48
      %v1868 = vpop.permute.xlu0 %1867
      %1869 = vrot.lane.b32.xlu0 %v1860, 48
      %v1870 = vpop.permute.xlu0 %1869
      %1871 = vrot.lane.b32.xlu0 %v1861, 48
      %v1872 = vpop.permute.xlu0 %1871
      %1873 = vrot.lane.b32.xlu0 %v1862, 48
      %v1874 = vpop.permute.xlu0 %1873
      %1875 = vrot.lane.b32.xlu0 %v1863, 48
      %v1876 = vpop.permute.xlu0 %1875
      %1877 = vrot.lane.b32.xlu0 %v1864, 48
      %v1878 = vpop.permute.xlu0 %1877
      %1879 = vrot.lane.b32.xlu0 %v1865, 48
      %v1880 = vpop.permute.xlu0 %1879
      %1881 = vrot.lane.b32.xlu0 %v1866, 48
      %v1882 = vpop.permute.xlu0 %1881
      %vm1891 = vcmask 519552
      %1892 = vst.msk [vmem:[#allocation3] sm:$0xf] %vm1891, %v1868
      %1893 = vst.msk [vmem:[#allocation3 + $0x8] sm:$0xf] %vm1891, %v1870
      %1894 = vst.msk [vmem:[#allocation3 + $0x10] sm:$0xf] %vm1891, %v1872
      %1895 = vst.msk [vmem:[#allocation3 + $0x18] sm:$0xf] %vm1891, %v1874
      %1896 = vst.msk [vmem:[#allocation3 + $0x20] sm:$0xf] %vm1891, %v1876
      %1897 = vst.msk [vmem:[#allocation3 + $0x28] sm:$0xf] %vm1891, %v1878
      %1898 = vst.msk [vmem:[#allocation3 + $0x30] sm:$0xf] %vm1891, %v1880
      %1899 = vst.msk [vmem:[#allocation3 + $0x38] sm:$0xf] %vm1891, %v1882
      %v1900 = vld [vmem:[%s1647 + $0x1] sm:$0xff]
      %v1901 = vld [vmem:[%s1647 + $0x11] sm:$0xff]
      %v1902 = vld [vmem:[%s1647 + $0x21] sm:$0xff]
      %v1903 = vld [vmem:[%s1647 + $0x31] sm:$0xff]
      %v1904 = vld [vmem:[%s1647 + $0x41] sm:$0xff]
      %v1905 = vld [vmem:[%s1647 + $0x51] sm:$0xff]
      %v1906 = vld [vmem:[%s1647 + $0x61] sm:$0xff]
      %v1907 = vld [vmem:[%s1647 + $0x71] sm:$0xff]
      %v1908 = vpack.c.bf16 %v1901, %v1900
      %v1909 = vpack.c.bf16 %v1903, %v1902
      %v1910 = vpack.c.bf16 %v1905, %v1904
      %v1911 = vpack.c.bf16 %v1907, %v1906
      %v1916 = vunpack.c.l.b16 %v1908
      %v1917 = vunpack.c.h.b16 %v1908
      %v1918 = vunpack.c.l.b16 %v1909
      %v1919 = vunpack.c.h.b16 %v1909
      %v1920 = vunpack.c.l.b16 %v1910
      %v1921 = vunpack.c.h.b16 %v1910
      %v1922 = vunpack.c.l.b16 %v1911
      %v1923 = vunpack.c.h.b16 %v1911
      %v1924 = vpack.c.b16 %v1916, %v1916
      %v1925 = vpack.c.b16 %v1917, %v1917
      %v1926 = vpack.c.b16 %v1918, %v1918
      %v1927 = vpack.c.b16 %v1919, %v1919
      %v1928 = vpack.c.b16 %v1920, %v1920
      %v1929 = vpack.c.b16 %v1921, %v1921
      %v1930 = vpack.c.b16 %v1922, %v1922
      %v1931 = vpack.c.b16 %v1923, %v1923
      %1932 = vrot.lane.b32.xlu0 %v1924, 64
      %v1933 = vpop.permute.xlu0 %1932
      %1934 = vrot.lane.b32.xlu0 %v1925, 64
      %v1935 = vpop.permute.xlu0 %1934
      %1936 = vrot.lane.b32.xlu0 %v1926, 64
      %v1937 = vpop.permute.xlu0 %1936
      %1938 = vrot.lane.b32.xlu0 %v1927, 64
      %v1939 = vpop.permute.xlu0 %1938
      %1940 = vrot.lane.b32.xlu0 %v1928, 64
      %v1941 = vpop.permute.xlu0 %1940
      %1942 = vrot.lane.b32.xlu0 %v1929, 64
      %v1943 = vpop.permute.xlu0 %1942
      %1944 = vrot.lane.b32.xlu0 %v1930, 64
      %v1945 = vpop.permute.xlu0 %1944
      %1946 = vrot.lane.b32.xlu0 %v1931, 64
      %v1947 = vpop.permute.xlu0 %1946
      %vm1956 = vcmask 650752
      %1957 = vst.msk [vmem:[#allocation3] sm:$0xf] %vm1956, %v1933
      %1958 = vst.msk [vmem:[#allocation3 + $0x8] sm:$0xf] %vm1956, %v1935
      %1959 = vst.msk [vmem:[#allocation3 + $0x10] sm:$0xf] %vm1956, %v1937
      %1960 = vst.msk [vmem:[#allocation3 + $0x18] sm:$0xf] %vm1956, %v1939
      %1961 = vst.msk [vmem:[#allocation3 + $0x20] sm:$0xf] %vm1956, %v1941
      %1962 = vst.msk [vmem:[#allocation3 + $0x28] sm:$0xf] %vm1956, %v1943
      %1963 = vst.msk [vmem:[#allocation3 + $0x30] sm:$0xf] %vm1956, %v1945
      %1964 = vst.msk [vmem:[#allocation3 + $0x38] sm:$0xf] %vm1956, %v1947
      %v1965 = vld [vmem:[%s1647 + $0x2] sm:$0xff]
      %v1966 = vld [vmem:[%s1647 + $0x12] sm:$0xff]
      %v1967 = vld [vmem:[%s1647 + $0x22] sm:$0xff]
      %v1968 = vld [vmem:[%s1647 + $0x32] sm:$0xff]
      %v1969 = vld [vmem:[%s1647 + $0x42] sm:$0xff]
      %v1970 = vld [vmem:[%s1647 + $0x52] sm:$0xff]
      %v1971 = vld [vmem:[%s1647 + $0x62] sm:$0xff]
      %v1972 = vld [vmem:[%s1647 + $0x72] sm:$0xff]
      %v1973 = vpack.c.bf16 %v1966, %v1965
      %v1974 = vpack.c.bf16 %v1968, %v1967
      %v1975 = vpack.c.bf16 %v1970, %v1969
      %v1976 = vpack.c.bf16 %v1972, %v1971
      %v1981 = vunpack.c.l.b16 %v1973
      %v1982 = vunpack.c.h.b16 %v1973
      %v1983 = vunpack.c.l.b16 %v1974
      %v1984 = vunpack.c.h.b16 %v1974
      %v1985 = vunpack.c.l.b16 %v1975
      %v1986 = vunpack.c.h.b16 %v1975
      %v1987 = vunpack.c.l.b16 %v1976
      %v1988 = vunpack.c.h.b16 %v1976
      %v1989 = vpack.c.b16 %v1981, %v1981
      %v1990 = vpack.c.b16 %v1982, %v1982
      %v1991 = vpack.c.b16 %v1983, %v1983
      %v1992 = vpack.c.b16 %v1984, %v1984
      %v1993 = vpack.c.b16 %v1985, %v1985
      %v1994 = vpack.c.b16 %v1986, %v1986
      %v1995 = vpack.c.b16 %v1987, %v1987
      %v1996 = vpack.c.b16 %v1988, %v1988
      %1997 = vrot.lane.b32.xlu0 %v1989, 80
      %v1998 = vpop.permute.xlu0 %1997
      %1999 = vrot.lane.b32.xlu0 %v1990, 80
      %v2000 = vpop.permute.xlu0 %1999
      %2001 = vrot.lane.b32.xlu0 %v1991, 80
      %v2002 = vpop.permute.xlu0 %2001
      %2003 = vrot.lane.b32.xlu0 %v1992, 80
      %v2004 = vpop.permute.xlu0 %2003
      %2005 = vrot.lane.b32.xlu0 %v1993, 80
      %v2006 = vpop.permute.xlu0 %2005
      %2007 = vrot.lane.b32.xlu0 %v1994, 80
      %v2008 = vpop.permute.xlu0 %2007
      %2009 = vrot.lane.b32.xlu0 %v1995, 80
      %v2010 = vpop.permute.xlu0 %2009
      %2011 = vrot.lane.b32.xlu0 %v1996, 80
      %v2012 = vpop.permute.xlu0 %2011
      %vm2021 = vcmask 781952
      %2022 = vst.msk [vmem:[#allocation3] sm:$0xf] %vm2021, %v1998
      %2023 = vst.msk [vmem:[#allocation3 + $0x8] sm:$0xf] %vm2021, %v2000
      %2024 = vst.msk [vmem:[#allocation3 + $0x10] sm:$0xf] %vm2021, %v2002
      %2025 = vst.msk [vmem:[#allocation3 + $0x18] sm:$0xf] %vm2021, %v2004
      %2026 = vst.msk [vmem:[#allocation3 + $0x20] sm:$0xf] %vm2021, %v2006
      %2027 = vst.msk [vmem:[#allocation3 + $0x28] sm:$0xf] %vm2021, %v2008
      %2028 = vst.msk [vmem:[#allocation3 + $0x30] sm:$0xf] %vm2021, %v2010
      %2029 = vst.msk [vmem:[#allocation3 + $0x38] sm:$0xf] %vm2021, %v2012
      %s2030 = scalar_lea.vmem [#allocation2], 32
      %v2031 = vld [vmem:[%s2030] sm:$0xff]
      %v2032 = vld [vmem:[%s2030 + $0x10] sm:$0xff]
      %v2033 = vld [vmem:[%s2030 + $0x20] sm:$0xff]
      %v2034 = vld [vmem:[%s2030 + $0x30] sm:$0xff]
      %v2035 = vld [vmem:[%s2030 + $0x40] sm:$0xff]
      %v2036 = vld [vmem:[%s2030 + $0x50] sm:$0xff]
      %v2037 = vld [vmem:[%s2030 + $0x60] sm:$0xff]
      %v2038 = vld [vmem:[%s2030 + $0x70] sm:$0xff]
      %v2039 = vpack.c.bf16 %v2032, %v2031
      %v2040 = vpack.c.bf16 %v2034, %v2033
      %v2041 = vpack.c.bf16 %v2036, %v2035
      %v2042 = vpack.c.bf16 %v2038, %v2037
      %v2047 = vunpack.c.l.b16 %v2039
      %v2048 = vunpack.c.h.b16 %v2039
      %v2049 = vunpack.c.l.b16 %v2040
      %v2050 = vunpack.c.h.b16 %v2040
      %v2051 = vunpack.c.l.b16 %v2041
      %v2052 = vunpack.c.h.b16 %v2041
      %v2053 = vunpack.c.l.b16 %v2042
      %v2054 = vunpack.c.h.b16 %v2042
      %v2055 = vpack.c.b16 %v2047, %v2047
      %v2056 = vpack.c.b16 %v2048, %v2048
      %v2057 = vpack.c.b16 %v2049, %v2049
      %v2058 = vpack.c.b16 %v2050, %v2050
      %v2059 = vpack.c.b16 %v2051, %v2051
      %v2060 = vpack.c.b16 %v2052, %v2052
      %v2061 = vpack.c.b16 %v2053, %v2053
      %v2062 = vpack.c.b16 %v2054, %v2054
      %2063 = vrot.lane.b32.xlu0 %v2055, 96
      %v2064 = vpop.permute.xlu0 %2063
      %2065 = vrot.lane.b32.xlu0 %v2056, 96
      %v2066 = vpop.permute.xlu0 %2065
      %2067 = vrot.lane.b32.xlu0 %v2057, 96
      %v2068 = vpop.permute.xlu0 %2067
      %2069 = vrot.lane.b32.xlu0 %v2058, 96
      %v2070 = vpop.permute.xlu0 %2069
      %2071 = vrot.lane.b32.xlu0 %v2059, 96
      %v2072 = vpop.permute.xlu0 %2071
      %2073 = vrot.lane.b32.xlu0 %v2060, 96
      %v2074 = vpop.permute.xlu0 %2073
      %2075 = vrot.lane.b32.xlu0 %v2061, 96
      %v2076 = vpop.permute.xlu0 %2075
      %2077 = vrot.lane.b32.xlu0 %v2062, 96
      %v2078 = vpop.permute.xlu0 %2077
      %vm2087 = vcmask 913152
      %2088 = vst.msk [vmem:[#allocation3] sm:$0xf] %vm2087, %v2064
      %2089 = vst.msk [vmem:[#allocation3 + $0x8] sm:$0xf] %vm2087, %v2066
      %2090 = vst.msk [vmem:[#allocation3 + $0x10] sm:$0xf] %vm2087, %v2068
      %2091 = vst.msk [vmem:[#allocation3 + $0x18] sm:$0xf] %vm2087, %v2070
      %2092 = vst.msk [vmem:[#allocation3 + $0x20] sm:$0xf] %vm2087, %v2072
      %2093 = vst.msk [vmem:[#allocation3 + $0x28] sm:$0xf] %vm2087, %v2074
      %2094 = vst.msk [vmem:[#allocation3 + $0x30] sm:$0xf] %vm2087, %v2076
      %2095 = vst.msk [vmem:[#allocation3 + $0x38] sm:$0xf] %vm2087, %v2078
      %v2096 = vld [vmem:[%s2030 + $0x1] sm:$0xff]
      %v2097 = vld [vmem:[%s2030 + $0x11] sm:$0xff]
      %v2098 = vld [vmem:[%s2030 + $0x21] sm:$0xff]
      %v2099 = vld [vmem:[%s2030 + $0x31] sm:$0xff]
      %v2100 = vld [vmem:[%s2030 + $0x41] sm:$0xff]
      %v2101 = vld [vmem:[%s2030 + $0x51] sm:$0xff]
      %v2102 = vld [vmem:[%s2030 + $0x61] sm:$0xff]
      %v2103 = vld [vmem:[%s2030 + $0x71] sm:$0xff]
      %v2104 = vpack.c.bf16 %v2097, %v2096
      %v2105 = vpack.c.bf16 %v2099, %v2098
      %v2106 = vpack.c.bf16 %v2101, %v2100
      %v2107 = vpack.c.bf16 %v2103, %v2102
      %v2112 = vunpack.c.l.b16 %v2104
      %v2113 = vunpack.c.h.b16 %v2104
      %v2114 = vunpack.c.l.b16 %v2105
      %v2115 = vunpack.c.h.b16 %v2105
      %v2116 = vunpack.c.l.b16 %v2106
      %v2117 = vunpack.c.h.b16 %v2106
      %v2118 = vunpack.c.l.b16 %v2107
      %v2119 = vunpack.c.h.b16 %v2107
      %v2120 = vpack.c.b16 %v2112, %v2112
      %v2121 = vpack.c.b16 %v2113, %v2113
      %v2122 = vpack.c.b16 %v2114, %v2114
      %v2123 = vpack.c.b16 %v2115, %v2115
      %v2124 = vpack.c.b16 %v2116, %v2116
      %v2125 = vpack.c.b16 %v2117, %v2117
      %v2126 = vpack.c.b16 %v2118, %v2118
      %v2127 = vpack.c.b16 %v2119, %v2119
      %2128 = vrot.lane.b32.xlu0 %v2120, 112
      %v2129 = vpop.permute.xlu0 %2128
      %2130 = vrot.lane.b32.xlu0 %v2121, 112
      %v2131 = vpop.permute.xlu0 %2130
      %2132 = vrot.lane.b32.xlu0 %v2122, 112
      %v2133 = vpop.permute.xlu0 %2132
      %2134 = vrot.lane.b32.xlu0 %v2123, 112
      %v2135 = vpop.permute.xlu0 %2134
      %2136 = vrot.lane.b32.xlu0 %v2124, 112
      %v2137 = vpop.permute.xlu0 %2136
      %2138 = vrot.lane.b32.xlu0 %v2125, 112
      %v2139 = vpop.permute.xlu0 %2138
      %2140 = vrot.lane.b32.xlu0 %v2126, 112
      %v2141 = vpop.permute.xlu0 %2140
      %2142 = vrot.lane.b32.xlu0 %v2127, 112
      %v2143 = vpop.permute.xlu0 %2142
      %vm2152 = vcmask 1044352
      %2153 = vst.msk [vmem:[#allocation3] sm:$0xf] %vm2152, %v2129
      %2154 = vst.msk [vmem:[#allocation3 + $0x8] sm:$0xf] %vm2152, %v2131
      %2155 = vst.msk [vmem:[#allocation3 + $0x10] sm:$0xf] %vm2152, %v2133
      %2156 = vst.msk [vmem:[#allocation3 + $0x18] sm:$0xf] %vm2152, %v2135
      %2157 = vst.msk [vmem:[#allocation3 + $0x20] sm:$0xf] %vm2152, %v2137
      %2158 = vst.msk [vmem:[#allocation3 + $0x28] sm:$0xf] %vm2152, %v2139
      %2159 = vst.msk [vmem:[#allocation3 + $0x30] sm:$0xf] %vm2152, %v2141
      %2160 = vst.msk [vmem:[#allocation3 + $0x38] sm:$0xf] %vm2152, %v2143
      %v2161 = vld [vmem:[%s2030 + $0x2] sm:$0xff]
      %v2162 = vld [vmem:[%s2030 + $0x12] sm:$0xff]
      %v2163 = vld [vmem:[%s2030 + $0x22] sm:$0xff]
      %v2164 = vld [vmem:[%s2030 + $0x32] sm:$0xff]
      %v2165 = vld [vmem:[%s2030 + $0x42] sm:$0xff]
      %v2166 = vld [vmem:[%s2030 + $0x52] sm:$0xff]
      %v2167 = vld [vmem:[%s2030 + $0x62] sm:$0xff]
      %v2168 = vld [vmem:[%s2030 + $0x72] sm:$0xff]
      %v2169 = vpack.c.bf16 %v2162, %v2161
      %v2170 = vpack.c.bf16 %v2164, %v2163
      %v2171 = vpack.c.bf16 %v2166, %v2165
      %v2172 = vpack.c.bf16 %v2168, %v2167
      %v2177 = vunpack.c.l.b16 %v2169
      %v2178 = vunpack.c.h.b16 %v2169
      %v2179 = vunpack.c.l.b16 %v2170
      %v2180 = vunpack.c.h.b16 %v2170
      %v2181 = vunpack.c.l.b16 %v2171
      %v2182 = vunpack.c.h.b16 %v2171
      %v2183 = vunpack.c.l.b16 %v2172
      %v2184 = vunpack.c.h.b16 %v2172
      %v2185 = vpack.c.b16 %v2177, %v2177
      %v2186 = vpack.c.b16 %v2178, %v2178
      %v2187 = vpack.c.b16 %v2179, %v2179
      %v2188 = vpack.c.b16 %v2180, %v2180
      %v2189 = vpack.c.b16 %v2181, %v2181
      %v2190 = vpack.c.b16 %v2182, %v2182
      %v2191 = vpack.c.b16 %v2183, %v2183
      %v2192 = vpack.c.b16 %v2184, %v2184
      %2201 = vst.msk [vmem:[#allocation3 + $0x4] sm:$0xf] %vm1696, %v2185
      %2202 = vst.msk [vmem:[#allocation3 + $0xc] sm:$0xf] %vm1696, %v2186
      %2203 = vst.msk [vmem:[#allocation3 + $0x14] sm:$0xf] %vm1696, %v2187
      %2204 = vst.msk [vmem:[#allocation3 + $0x1c] sm:$0xf] %vm1696, %v2188
      %2205 = vst.msk [vmem:[#allocation3 + $0x24] sm:$0xf] %vm1696, %v2189
      %2206 = vst.msk [vmem:[#allocation3 + $0x2c] sm:$0xf] %vm1696, %v2190
      %2207 = vst.msk [vmem:[#allocation3 + $0x34] sm:$0xf] %vm1696, %v2191
      %2208 = vst.msk [vmem:[#allocation3 + $0x3c] sm:$0xf] %vm1696, %v2192
      %v2209 = vld [vmem:[#allocation3] sm:$0xff]
      %v2210 = vld [vmem:[#allocation3 + $0x8] sm:$0xff]
      %v2211 = vld [vmem:[#allocation3 + $0x10] sm:$0xff]
      %v2212 = vld [vmem:[#allocation3 + $0x18] sm:$0xff]
      %v2213 = vld [vmem:[#allocation3 + $0x20] sm:$0xff]
      %v2214 = vld [vmem:[#allocation3 + $0x28] sm:$0xff]
      %v2215 = vld [vmem:[#allocation3 + $0x30] sm:$0xff]
      %v2216 = vld [vmem:[#allocation3 + $0x38] sm:$0xff]
      %v2217 = vld [vmem:[%s3] sm:$0xf]
      %v2218 = vld [vmem:[%s3 + $0x4] sm:$0xf]
      %v2219 = vld [vmem:[%s3 + $0x8] sm:$0xf]
      %v2220 = vld [vmem:[%s3 + $0xc] sm:$0xf]
      %v2221 = vld [vmem:[%s3 + $0x10] sm:$0xf]
      %v2222 = vld [vmem:[%s3 + $0x14] sm:$0xf]
      %v2223 = vld [vmem:[%s3 + $0x18] sm:$0xf]
      %v2224 = vld [vmem:[%s3 + $0x1c] sm:$0xf]
      %v2225 = vld [vmem:[%s3 + $0x20] sm:$0xf]
      %v2226 = vld [vmem:[%s3 + $0x24] sm:$0xf]
      %v2227 = vld [vmem:[%s3 + $0x28] sm:$0xf]
      %v2228 = vld [vmem:[%s3 + $0x2c] sm:$0xf]
      %v2229 = vld [vmem:[%s3 + $0x30] sm:$0xf]
      %v2230 = vld [vmem:[%s3 + $0x34] sm:$0xf]
      %v2231 = vld [vmem:[%s3 + $0x38] sm:$0xf]
      %v2232 = vld [vmem:[%s3 + $0x3c] sm:$0xf]
      %v2233 = vld [vmem:[%s3 + $0x40] sm:$0xf]
      %v2234 = vld [vmem:[%s3 + $0x44] sm:$0xf]
      %v2235 = vld [vmem:[%s4] sm:$0x1]
      %v2237 = vlaneseq
      %v2238 = vshrl.u32 %v2237, 7
      %v2239 = vsub.s32 0, %v2238
      %v2240 = vrot.slane %v2235, %v2239
      %v2250 = vunpack.c.l.b16 %v2209
      %v2251 = vunpack.c.h.b16 %v2209
      %v2252 = vunpack.c.l.b16 %v2210
      %v2253 = vunpack.c.h.b16 %v2210
      %v2254 = vunpack.c.l.b16 %v2211
      %v2255 = vunpack.c.h.b16 %v2211
      %v2256 = vunpack.c.l.b16 %v2212
      %v2257 = vunpack.c.h.b16 %v2212
      %v2258 = vunpack.c.l.b16 %v2213
      %v2259 = vunpack.c.h.b16 %v2213
      %v2260 = vunpack.c.l.b16 %v2214
      %v2261 = vunpack.c.h.b16 %v2214
      %v2262 = vunpack.c.l.b16 %v2215
      %v2263 = vunpack.c.h.b16 %v2215
      %v2264 = vunpack.c.l.b16 %v2216
      %v2265 = vunpack.c.h.b16 %v2216
      %v2266 = vpack.c.b16 %v2252, %v2250
      %v2267 = vpack.c.b16 %v2253, %v2251
      %v2268 = vpack.c.b16 %v2256, %v2254
      %v2269 = vpack.c.b16 %v2257, %v2255
      %v2270 = vpack.c.b16 %v2260, %v2258
      %v2271 = vpack.c.b16 %v2261, %v2259
      %v2272 = vpack.c.b16 %v2264, %v2262
      %v2273 = vpack.c.b16 %v2265, %v2263
      %v2296 = vunpack.c.l.b16 %v2217
      %v2297 = vunpack.c.l.b16 %v2218
      %v2298 = vunpack.c.l.b16 %v2219
      %v2299 = vunpack.c.l.b16 %v2220
      %v2300 = vunpack.c.l.b16 %v2221
      %v2301 = vunpack.c.l.b16 %v2222
      %v2302 = vunpack.c.l.b16 %v2223
      %v2303 = vunpack.c.l.b16 %v2224
      %v2304 = vunpack.c.l.b16 %v2225
      %v2305 = vunpack.c.l.b16 %v2226
      %v2306 = vunpack.c.l.b16 %v2227
      %v2307 = vunpack.c.l.b16 %v2228
      %v2308 = vunpack.c.l.b16 %v2229
      %v2309 = vunpack.c.l.b16 %v2230
      %v2310 = vunpack.c.l.b16 %v2231
      %v2311 = vunpack.c.l.b16 %v2232
      %v2312 = vunpack.c.l.b16 %v2233
      %v2313 = vunpack.c.l.b16 %v2234
      %v2314 = vpack.c.b16 %v2297, %v2296
      %v2315 = vpack.c.b16 %v2299, %v2298
      %v2316 = vpack.c.b16 %v2301, %v2300
      %v2317 = vpack.c.b16 %v2303, %v2302
      %v2318 = vpack.c.b16 %v2305, %v2304
      %v2319 = vpack.c.b16 %v2307, %v2306
      %v2320 = vpack.c.b16 %v2309, %v2308
      %v2321 = vpack.c.b16 %v2311, %v2310
      %v2322 = vpack.c.b16 %v2313, %v2312
      %v2333 = vsel %vm636, %v2267, 0
      %v2336 = vsel %vm636, %v2269, 0
      %v2339 = vsel %vm636, %v2271, 0
      %v2342 = vsel %vm636, %v2273, 0
      %2344 = vmatprep.subr.bf16.mxu0 0
      %2345 = vmatpush1.bf16.msra.mxu0 %v2321
      %2346 = vmatprep.subr.bf16.mxu0 0
      %2347 = vmatpush1.bf16.msra.mxu0 %v2320
      %2348 = vmatprep.subr.bf16.mxu0 0
      %2349 = vmatpush1.bf16.msra.mxu0 %v2319
      %2350 = vmatprep.subr.bf16.mxu0 0
      %2351 = vmatpush1.bf16.msra.mxu0 %v2318
      %2352 = vmatprep.subr.bf16.mxu0 0
      %2353 = vmatpush1.bf16.msra.mxu0 %v2317
      %2354 = vmatprep.subr.bf16.mxu0 0
      %2355 = vmatpush1.bf16.msra.mxu0 %v2316
      %2356 = vmatprep.subr.bf16.mxu0 0
      %2357 = vmatpush1.bf16.msra.mxu0 %v2315
      %2358 = vmatprep.subr.bf16.mxu0 0
      %2359 = vmatpush1.bf16.msra.mxu0 %v2314
      %2360 = vmatprep.subr.bf16.mxu0 0
      %2361 = vmatpush2.bf16.msra.mxu0 0
      %2362 = vmatprep.subr.bf16.mxu0 0
      %2363 = vmatpush2.bf16.msra.mxu0 0
      %2364 = vmatprep.subr.bf16.mxu0 0
      %2365 = vmatpush2.bf16.msra.mxu0 0
      %2366 = vmatprep.subr.bf16.mxu0 0
      %2367 = vmatpush2.bf16.msra.mxu0 0
      %2368 = vmatprep.subr.bf16.mxu0 0
      %2369 = vmatpush2.bf16.msra.mxu0 0
      %2370 = vmatprep.subr.bf16.mxu0 0
      %2371 = vmatpush2.bf16.msra.mxu0 0
      %2372 = vmatprep.subr.bf16.mxu0 0
      %2373 = vmatpush2.bf16.msra.mxu0 0
      %2374 = vmatprep.subr.bf16.mxu0 0
      %2375 = vmatpush2.bf16.msra.mxu0 %v2322
      %2376 = vmatprep.mubr.bf16.mxu0 %v2333
      %2377 = vmatmul.mubr.bf16.gmra.mxu0 %v2266
      %v2378 = vpop.f32.mrf.mxu0
      %v2379 = vadd.f32 %v2240, %v2378
      %v2380 = vpop.f32.mrf.mxu0
      %v2381 = vpop.f32.mrf.mxu0
      %v2382 = vadd.f32 %v2240, %v2381
      %v2383 = vpop.f32.mrf.mxu0
      %2384 = vmatprep.mubr.bf16.mxu0 %v2336
      %2385 = vmatmul.mubr.bf16.gmra.mxu0 %v2268
      %v2386 = vpop.f32.mrf.mxu0
      %v2387 = vadd.f32 %v2240, %v2386
      %v2388 = vpop.f32.mrf.mxu0
      %v2389 = vpop.f32.mrf.mxu0
      %v2390 = vadd.f32 %v2240, %v2389
      %v2391 = vpop.f32.mrf.mxu0
      %2392 = vmatprep.mubr.bf16.mxu0 %v2339
      %2393 = vmatmul.mubr.bf16.gmra.mxu0 %v2270
      %v2394 = vpop.f32.mrf.mxu0
      %v2395 = vadd.f32 %v2240, %v2394
      %v2396 = vpop.f32.mrf.mxu0
      %v2397 = vpop.f32.mrf.mxu0
      %v2398 = vadd.f32 %v2240, %v2397
      %v2399 = vpop.f32.mrf.mxu0
      %2400 = vmatprep.mubr.bf16.mxu0 %v2342
      %2401 = vmatmul.mubr.bf16.gmra.mxu0 %v2272
      %v2402 = vpop.f32.mrf.mxu0
      %v2403 = vadd.f32 %v2240, %v2402
      %v2404 = vpop.f32.mrf.mxu0
      %v2405 = vpop.f32.mrf.mxu0
      %v2406 = vadd.f32 %v2240, %v2405
      %v2407 = vpop.f32.mrf.mxu0
      %2408 = vdwg.mxu0
      %v2409 = vmax.f32 %v2379, 0.0
      %v2410 = vmax.f32 %v2382, 0.0
      %v2411 = vmax.f32 %v2387, 0.0
      %v2412 = vmax.f32 %v2390, 0.0
      %v2413 = vmax.f32 %v2395, 0.0
      %v2414 = vmax.f32 %v2398, 0.0
      %v2415 = vmax.f32 %v2403, 0.0
      %v2416 = vmax.f32 %v2406, 0.0
      %vm2417 = vcmask 261120
      %v2418 = vsel %vm2417, %v2409, -inf
      %v2419 = vsel %vm2417, %v2410, -inf
      %v2420 = vmax.f32 %v2418, %v2419
      %v2421 = vsel %vm2417, %v2411, -inf
      %v2422 = vsel %vm2417, %v2412, -inf
      %v2423 = vmax.f32 %v2421, %v2422
      %v2424 = vsel %vm2417, %v2413, -inf
      %v2425 = vsel %vm2417, %v2414, -inf
      %v2426 = vmax.f32 %v2424, %v2425
      %v2427 = vsel %vm2417, %v2415, -inf
      %v2428 = vsel %vm2417, %v2416, -inf
      %v2429 = vmax.f32 %v2427, %v2428
      %v2434 = vcombine.high %v2420, %v2420
      %v2436 = vunpack.c.l.s4 1983009808
      %v2437 = vunpack.c.0.s8 %v2436
      %v2438 = vlaneseq
      %v2439 = vshrl.u32 %v2438, 7
      %v2440 = vsub.s32 %v2437, %v2439
      %v2441 = vrot.slane %v2420, %v2440
      %v2443 = vunpack.c.l.s4 1983009808
      %v2444 = vunpack.c.0.s8 %v2443
      %v2445 = vlaneseq
      %v2446 = vshrl.u32 %v2445, 7
      %v2447 = vsub.s32 %v2444, %v2446
      %v2448 = vrot.slane %v2434, %v2447
      %v2449 = vcombine.high %v2441, %v2441
      %v2450 = vcombine.high %v2448, %v2448
      %v2451 = vcombine.high %v2423, %v2423
      %v2453 = vunpack.c.l.s4 1983009808
      %v2454 = vunpack.c.0.s8 %v2453
      %v2455 = vlaneseq
      %v2456 = vshrl.u32 %v2455, 7
      %v2457 = vsub.s32 %v2454, %v2456
      %v2458 = vrot.slane %v2423, %v2457
      %v2460 = vunpack.c.l.s4 1983009808
      %v2461 = vunpack.c.0.s8 %v2460
      %v2462 = vlaneseq
      %v2463 = vshrl.u32 %v2462, 7
      %v2464 = vsub.s32 %v2461, %v2463
      %v2465 = vrot.slane %v2451, %v2464
      %v2466 = vcombine.high %v2458, %v2458
      %v2467 = vcombine.high %v2465, %v2465
      %v2468 = vcombine.high %v2426, %v2426
      %v2470 = vunpack.c.l.s4 1983009808
      %v2471 = vunpack.c.0.s8 %v2470
      %v2472 = vlaneseq
      %v2473 = vshrl.u32 %v2472, 7
      %v2474 = vsub.s32 %v2471, %v2473
      %v2475 = vrot.slane %v2426, %v2474
      %v2477 = vunpack.c.l.s4 1983009808
      %v2478 = vunpack.c.0.s8 %v2477
      %v2479 = vlaneseq
      %v2480 = vshrl.u32 %v2479, 7
      %v2481 = vsub.s32 %v2478, %v2480
      %v2482 = vrot.slane %v2468, %v2481
      %v2483 = vcombine.high %v2475, %v2475
      %v2484 = vcombine.high %v2482, %v2482
      %v2485 = vcombine.high %v2429, %v2429
      %v2487 = vunpack.c.l.s4 1983009808
      %v2488 = vunpack.c.0.s8 %v2487
      %v2489 = vlaneseq
      %v2490 = vshrl.u32 %v2489, 7
      %v2491 = vsub.s32 %v2488, %v2490
      %v2492 = vrot.slane %v2429, %v2491
      %v2494 = vunpack.c.l.s4 1983009808
      %v2495 = vunpack.c.0.s8 %v2494
      %v2496 = vlaneseq
      %v2497 = vshrl.u32 %v2496, 7
      %v2498 = vsub.s32 %v2495, %v2497
      %v2499 = vrot.slane %v2485, %v2498
      %v2500 = vcombine.high %v2492, %v2492
      %v2501 = vcombine.high %v2499, %v2499
      %vm2518 = vcmask 254976
      %v2519 = vsel %vm2518, %v2441, -inf
      %v2520 = vrot.slane %v2519, 4
      %v2521 = vmax.f32 %v2519, %v2520
      %v2522 = vrot.slane %v2521, 2
      %v2523 = vmax.f32 %v2521, %v2522
      %v2524 = vrot.slane %v2523, 1
      %v2525 = vmax.f32 %v2523, %v2524
      %v2526 = vsel %vm2518, %v2449, -inf
      %v2527 = vrot.slane %v2526, 4
      %v2528 = vmax.f32 %v2526, %v2527
      %v2529 = vrot.slane %v2528, 2
      %v2530 = vmax.f32 %v2528, %v2529
      %v2531 = vrot.slane %v2530, 1
      %v2532 = vmax.f32 %v2530, %v2531
      %v2533 = vsel %vm2518, %v2448, -inf
      %v2534 = vrot.slane %v2533, 4
      %v2535 = vmax.f32 %v2533, %v2534
      %v2536 = vrot.slane %v2535, 2
      %v2537 = vmax.f32 %v2535, %v2536
      %v2538 = vrot.slane %v2537, 1
      %v2539 = vmax.f32 %v2537, %v2538
      %v2540 = vsel %vm2518, %v2450, -inf
      %v2541 = vrot.slane %v2540, 4
      %v2542 = vmax.f32 %v2540, %v2541
      %v2543 = vrot.slane %v2542, 2
      %v2544 = vmax.f32 %v2542, %v2543
      %v2545 = vrot.slane %v2544, 1
      %v2546 = vmax.f32 %v2544, %v2545
      %v2547 = vsel %vm2518, %v2458, -inf
      %v2548 = vrot.slane %v2547, 4
      %v2549 = vmax.f32 %v2547, %v2548
      %v2550 = vrot.slane %v2549, 2
      %v2551 = vmax.f32 %v2549, %v2550
      %v2552 = vrot.slane %v2551, 1
      %v2553 = vmax.f32 %v2551, %v2552
      %v2554 = vsel %vm2518, %v2466, -inf
      %v2555 = vrot.slane %v2554, 4
      %v2556 = vmax.f32 %v2554, %v2555
      %v2557 = vrot.slane %v2556, 2
      %v2558 = vmax.f32 %v2556, %v2557
      %v2559 = vrot.slane %v2558, 1
      %v2560 = vmax.f32 %v2558, %v2559
      %v2561 = vsel %vm2518, %v2465, -inf
      %v2562 = vrot.slane %v2561, 4
      %v2563 = vmax.f32 %v2561, %v2562
      %v2564 = vrot.slane %v2563, 2
      %v2565 = vmax.f32 %v2563, %v2564
      %v2566 = vrot.slane %v2565, 1
      %v2567 = vmax.f32 %v2565, %v2566
      %v2568 = vsel %vm2518, %v2467, -inf
      %v2569 = vrot.slane %v2568, 4
      %v2570 = vmax.f32 %v2568, %v2569
      %v2571 = vrot.slane %v2570, 2
      %v2572 = vmax.f32 %v2570, %v2571
      %v2573 = vrot.slane %v2572, 1
      %v2574 = vmax.f32 %v2572, %v2573
      %v2575 = vsel %vm2518, %v2475, -inf
      %v2576 = vrot.slane %v2575, 4
      %v2577 = vmax.f32 %v2575, %v2576
      %v2578 = vrot.slane %v2577, 2
      %v2579 = vmax.f32 %v2577, %v2578
      %v2580 = vrot.slane %v2579, 1
      %v2581 = vmax.f32 %v2579, %v2580
      %v2582 = vsel %vm2518, %v2483, -inf
      %v2583 = vrot.slane %v2582, 4
      %v2584 = vmax.f32 %v2582, %v2583
      %v2585 = vrot.slane %v2584, 2
      %v2586 = vmax.f32 %v2584, %v2585
      %v2587 = vrot.slane %v2586, 1
      %v2588 = vmax.f32 %v2586, %v2587
      %v2589 = vsel %vm2518, %v2482, -inf
      %v2590 = vrot.slane %v2589, 4
      %v2591 = vmax.f32 %v2589, %v2590
      %v2592 = vrot.slane %v2591, 2
      %v2593 = vmax.f32 %v2591, %v2592
      %v2594 = vrot.slane %v2593, 1
      %v2595 = vmax.f32 %v2593, %v2594
      %v2596 = vsel %vm2518, %v2484, -inf
      %v2597 = vrot.slane %v2596, 4
      %v2598 = vmax.f32 %v2596, %v2597
      %v2599 = vrot.slane %v2598, 2
      %v2600 = vmax.f32 %v2598, %v2599
      %v2601 = vrot.slane %v2600, 1
      %v2602 = vmax.f32 %v2600, %v2601
      %v2603 = vsel %vm2518, %v2492, -inf
      %v2604 = vrot.slane %v2603, 4
      %v2605 = vmax.f32 %v2603, %v2604
      %v2606 = vrot.slane %v2605, 2
      %v2607 = vmax.f32 %v2605, %v2606
      %v2608 = vrot.slane %v2607, 1
      %v2609 = vmax.f32 %v2607, %v2608
      %v2610 = vsel %vm2518, %v2500, -inf
      %v2611 = vrot.slane %v2610, 4
      %v2612 = vmax.f32 %v2610, %v2611
      %v2613 = vrot.slane %v2612, 2
      %v2614 = vmax.f32 %v2612, %v2613
      %v2615 = vrot.slane %v2614, 1
      %v2616 = vmax.f32 %v2614, %v2615
      %v2617 = vsel %vm2518, %v2499, -inf
      %v2618 = vrot.slane %v2617, 4
      %v2619 = vmax.f32 %v2617, %v2618
      %v2620 = vrot.slane %v2619, 2
      %v2621 = vmax.f32 %v2619, %v2620
      %v2622 = vrot.slane %v2621, 1
      %v2623 = vmax.f32 %v2621, %v2622
      %v2624 = vsel %vm2518, %v2501, -inf
      %v2625 = vrot.slane %v2624, 4
      %v2626 = vmax.f32 %v2624, %v2625
      %v2627 = vrot.slane %v2626, 2
      %v2628 = vmax.f32 %v2626, %v2627
      %v2629 = vrot.slane %v2628, 1
      %v2630 = vmax.f32 %v2628, %v2629
      %v2631 = vld [vmem:[%s5] sm:$0xff]
      %v2632 = vld [vmem:[%s5 + $0x8] sm:$0xff]
      %v2633 = vld [vmem:[%s5 + $0x10] sm:$0xff]
      %v2634 = vld [vmem:[%s5 + $0x18] sm:$0xff]
      %v2635 = vld [vmem:[%s5 + $0x20] sm:$0xff]
      %v2636 = vld [vmem:[%s5 + $0x28] sm:$0xff]
      %v2637 = vld [vmem:[%s5 + $0x30] sm:$0x1]
      %v2654 = vsel %vm1576, %v2532, %v2525
      %v2655 = vsel %vm1578, %v2539, %v2654
      %v2656 = vsel %vm1580, %v2546, %v2655
      %v2657 = vsel %vm1582, %v2553, %v2656
      %v2658 = vsel %vm1584, %v2560, %v2657
      %v2659 = vsel %vm1586, %v2567, %v2658
      %v2660 = vsel %vm1588, %v2574, %v2659
      %v2661 = vsel %vm1576, %v2588, %v2581
      %v2662 = vsel %vm1578, %v2595, %v2661
      %v2663 = vsel %vm1580, %v2602, %v2662
      %v2664 = vsel %vm1582, %v2609, %v2663
      %v2665 = vsel %vm1584, %v2616, %v2664
      %v2666 = vsel %vm1586, %v2623, %v2665
      %v2667 = vsel %vm1588, %v2630, %v2666
      %v2671 = vsel %vm636, %v2631, 0
      %v2674 = vsel %vm636, %v2632, 0
      %v2677 = vsel %vm636, %v2633, 0
      %v2680 = vsel %vm636, %v2634, 0
      %v2683 = vsel %vm636, %v2635, 0
      %v2686 = vsel %vm636, %v2636, 0
      %v2689 = vsel %vm636, %v2637, 0
      %2691 = vmatprep.subr.mxu0 0.0
      %2692 = vmatpush1.msra.mxu0 0.0
      %2693 = vmatprep.subr.mxu0 0.0
      %2694 = vmatpush1.msra.mxu0 0.0
      %2695 = vmatprep.subr.mxu0 0.0
      %2696 = vmatpush1.msra.mxu0 0.0
      %2697 = vmatprep.subr.mxu0 0.0
      %2698 = vmatpush1.msra.mxu0 0.0
      %2699 = vmatprep.subr.mxu0 0.0
      %2700 = vmatpush1.msra.mxu0 0.0
      %2701 = vmatprep.subr.mxu0 0.0
      %2702 = vmatpush1.msra.mxu0 0.0
      %2703 = vmatprep.subr.mxu0 0.0
      %2704 = vmatpush1.msra.mxu0 0.0
      %2705 = vmatprep.subr.mxu0 0.0
      %2706 = vmatpush1.msra.mxu0 0.0
      %2707 = vmatprep.subr.mxu0 0.0
      %2708 = vmatpush1.msra.mxu0 0.0
      %2709 = vmatprep.subr.mxu0 0.0
      %2710 = vmatpush1.msra.mxu0 0.0
      %2711 = vmatprep.subr.mxu0 0.0
      %2712 = vmatpush1.msra.mxu0 0.0
      %2713 = vmatprep.subr.mxu0 0.0
      %2714 = vmatpush1.msra.mxu0 0.0
      %2715 = vmatprep.subr.mxu0 0.0
      %2716 = vmatpush1.msra.mxu0 0.0
      %2717 = vmatprep.subr.mxu0 0.0
      %2718 = vmatpush1.msra.mxu0 0.0
      %2719 = vmatprep.subr.mxu0 0.0
      %2720 = vmatpush1.msra.mxu0 %v2667
      %2721 = vmatprep.subr.mxu0 0.0
      %2722 = vmatpush1.msra.mxu0 %v2660
      %2723 = vmatprep.subr.mxu0 0.0
      %2724 = vmatpush2.msra.mxu0 0.0
      %2725 = vmatprep.subr.mxu0 0.0
      %2726 = vmatpush2.msra.mxu0 0.0
      %2727 = vmatprep.subr.mxu0 0.0
      %2728 = vmatpush2.msra.mxu0 0.0
      %2729 = vmatprep.subr.mxu0 0.0
      %2730 = vmatpush2.msra.mxu0 0.0
      %2731 = vmatprep.subr.mxu0 0.0
      %2732 = vmatpush2.msra.mxu0 0.0
      %2733 = vmatprep.subr.mxu0 0.0
      %2734 = vmatpush2.msra.mxu0 0.0
      %2735 = vmatprep.subr.mxu0 0.0
      %2736 = vmatpush2.msra.mxu0 0.0
      %2737 = vmatprep.subr.mxu0 0.0
      %2738 = vmatpush2.msra.mxu0 0.0
      %2739 = vmatprep.subr.mxu0 0.0
      %2740 = vmatpush2.msra.mxu0 0.0
      %2741 = vmatprep.subr.mxu0 0.0
      %2742 = vmatpush2.msra.mxu0 0.0
      %2743 = vmatprep.subr.mxu0 0.0
      %2744 = vmatpush2.msra.mxu0 0.0
      %2745 = vmatprep.subr.mxu0 0.0
      %2746 = vmatpush2.msra.mxu0 0.0
      %2747 = vmatprep.subr.mxu0 0.0
      %2748 = vmatpush2.msra.mxu0 0.0
      %2749 = vmatprep.subr.mxu0 0.0
      %2750 = vmatpush2.msra.mxu0 0.0
      %2751 = vmatprep.subr.mxu0 0.0
      %2752 = vmatpush2.msra.mxu0 0.0
      %2753 = vmatprep.subr.mxu0 0.0
      %2754 = vmatpush2.msra.mxu0 0.0
      %2755 = vmatprep.mubr.f32.mxu0 0.0
      %2756 = vmatmul.mubr.f32.gmra.mxu0 %v2671
      %v2757 = vpop.f32.mrf.mxu0
      %v2758 = vadd.f32 0.0, %v2757
      %v2759 = vpop.f32.mrf.mxu0
      %2760 = vmatprep.mubr.f32.mxu0 0.0
      %2761 = vmatmul.mubr.f32.gmra.mxu0 %v2674
      %v2762 = vpop.f32.mrf.mxu0
      %v2763 = vadd.f32 0.0, %v2762
      %v2764 = vpop.f32.mrf.mxu0
      %2765 = vmatprep.mubr.f32.mxu0 0.0
      %2766 = vmatmul.mubr.f32.gmra.mxu0 %v2677
      %v2767 = vpop.f32.mrf.mxu0
      %v2768 = vadd.f32 0.0, %v2767
      %v2769 = vpop.f32.mrf.mxu0
      %2770 = vmatprep.mubr.f32.mxu0 0.0
      %2771 = vmatmul.mubr.f32.gmra.mxu0 %v2680
      %v2772 = vpop.f32.mrf.mxu0
      %v2773 = vadd.f32 0.0, %v2772
      %v2774 = vpop.f32.mrf.mxu0
      %2775 = vmatprep.mubr.f32.mxu0 0.0
      %2776 = vmatmul.mubr.f32.gmra.mxu0 %v2683
      %v2777 = vpop.f32.mrf.mxu0
      %v2778 = vadd.f32 0.0, %v2777
      %v2779 = vpop.f32.mrf.mxu0
      %2780 = vmatprep.mubr.f32.mxu0 0.0
      %2781 = vmatmul.mubr.f32.gmra.mxu0 %v2686
      %v2782 = vpop.f32.mrf.mxu0
      %v2783 = vadd.f32 0.0, %v2782
      %v2784 = vpop.f32.mrf.mxu0
      %2785 = vmatprep.mubr.f32.mxu0 0.0
      %2786 = vmatmul.mubr.f32.gmra.mxu0 %v2689
      %v2787 = vpop.f32.mrf.mxu0
      %v2788 = vadd.f32 0.0, %v2787
      %v2789 = vpop.f32.mrf.mxu0
      %2790 = vdwg.mxu0
      %v2791 = vpack.c.bf16 %v2763, %v2758
      %v2792 = vpack.c.bf16 %v2773, %v2768
      %v2793 = vpack.c.bf16 %v2783, %v2778
      %v2794 = vpack.c.bf16 %v2788, %v2788
      %v2799 = vunpack.c.l.b16 %v2791
      %v2800 = vunpack.c.h.b16 %v2791
      %v2801 = vunpack.c.l.b16 %v2792
      %v2802 = vunpack.c.h.b16 %v2792
      %v2803 = vunpack.c.l.b16 %v2793
      %v2804 = vunpack.c.h.b16 %v2793
      %v2805 = vunpack.c.l.b16 %v2794
      %v2806 = vpack.c.b16 %v2799, %v2799
      %v2807 = vpack.c.b16 %v2800, %v2800
      %v2808 = vpack.c.b16 %v2801, %v2801
      %v2809 = vpack.c.b16 %v2802, %v2802
      %v2810 = vpack.c.b16 %v2803, %v2803
      %v2811 = vpack.c.b16 %v2804, %v2804
      %v2812 = vpack.c.b16 %v2805, %v2805
      %vm2820 = vcmask 257024
      %2821 = vst.msk [vmem:[%s251] sm:$0xf] %vm2820, %v2806
      %2822 = vst.msk [vmem:[%s251 + $0x4] sm:$0xf] %vm2820, %v2807
      %2823 = vst.msk [vmem:[%s251 + $0x8] sm:$0xf] %vm2820, %v2808
      %2824 = vst.msk [vmem:[%s251 + $0xc] sm:$0xf] %vm2820, %v2809
      %2825 = vst.msk [vmem:[%s251 + $0x10] sm:$0xf] %vm2820, %v2810
      %2826 = vst.msk [vmem:[%s251 + $0x14] sm:$0xf] %vm2820, %v2811
      %vm2827 = vcmask 253952
      %vm2828 = vsmask.f32 256
      %vm2829 = vmand %vm2827, %vm2828
      %v2830 = vld [vmem:[%s251 + $0x18] sm:$0x1]
      %v2831 = vsel %vm2829, %v2812, %v2830
      %2832 = vst [vmem:[%s251 + $0x18] sm:$0x1] %v2831
      %p2833 = scmp.lt.s32.totalorder %s17, 1
      %s2834 = scalar_select %p2833, %s17, 1
      %s2835 = smul.addr %s2834, 7
      %s2836 = smul.addr %s2835, 4
      %s2837 = scalar_lea.vmem %s6, %s2836
      // Predicated region
      $region45: #{vgg_forward.4} parent=43 // pred_check
        %p2838 = pneg %p166
      $region46: #{vgg_forward.4} parent=43 // pred_check_branch
        %2840 = sbr.rel (%p2838) target = $region48
      $region47: #{vgg_forward.4} parent=43 // pred_region
        _
      $region48: #{vgg_forward.4} parent=43 // pred_fallthru
        _
    $region44: #{vgg_forward.4} parent=5 // pred_fallthru
      _
    %p2841 = scmp.le.s32.totalorder 2, %s12
    // Predicated region
    $region49: #{vgg_forward.4} parent=5 // pred_check
      %p2842 = pneg %p2841
    $region50: #{vgg_forward.4} parent=5 // pred_check_branch
      %2844 = sbr.rel (%p2842) target = $region52
    $region51: #{vgg_forward.4} parent=5 // pred_region
      %s2845 = ssub.s32 %s12, 2
      // Predicated region
      $region53: #{vgg_forward.4} parent=51 // pred_check
        %p2846 = pneg %p172
      $region54: #{vgg_forward.4} parent=51 // pred_check_branch
        %2848 = sbr.rel (%p2846) target = $region56
      $region55: #{vgg_forward.4} parent=51 // pred_region
        %p2849 = scmp.lt.s32.totalorder %s18, 1
        %s2850 = scalar_select %p2849, %s18, 1
        %s2851 = smul.addr %s2850, 7
        %s2852 = smul.addr %s2851, 4
        %s2853 = scalar_lea.vmem %s6, %s2852
      $region56: #{vgg_forward.4} parent=51 // pred_fallthru
        _
    $region52: #{vgg_forward.4} parent=5 // pred_fallthru
      _
  $region6: #{vgg_forward.4} parent=0 // loop_footer
    %s16 = sadd.s32 1, %s12
  $region7: #{vgg_forward.4} parent=0 // loop_footer_branch
    %11 = sbr.rel target = $region3
  $region8: #{vgg_forward.4} parent=0 // loop_exit
    _

</llo_original>
